<compile_context>
chip_gen: v5e
topology: v5e:2x2
jax: 0.10.0
libtpu: 0.0.40
codegen_flags: <defaults>
</compile_context>

<pallas_src>
import functools
import math

import jax
import jax.numpy as jnp
import numpy as np
from jax.experimental import pallas as pl
from jax.experimental.pallas import tpu as pltpu


def _cdiv(a, b):
    return -(-a // b)


# ----------------------------------------------------------------------------
# Pallas kernel: multi-head window attention over a block of w_blk windows
# ----------------------------------------------------------------------------
def _swin_attn_kernel(x_ref, wqkv_ref, bqkv_ref, wproj_ref, bproj_ref,
                      bias_ref, o_ref, acc_ref, *, num_heads, seq_n):
    # x_ref:     (M, C)      M = w_blk * N rows of windowed tokens (2D I/O)
    # wqkv_ref:  (C, 3C)     fused QKV weight (Q columns pre-scaled)
    # bqkv_ref:  (1, 3C)     QKV bias (f32, Q part pre-scaled)
    # wproj_ref: (C, C)      output projection weight
    # bproj_ref: (1, C)      output projection bias (f32)
    # bias_ref:  (nh, N, N)  relative position bias (f32)
    # o_ref:     (M, C)
    # acc_ref:   (M, C) f32  VMEM scratch collecting per-head outputs
    M, C = x_ref.shape
    N = seq_n
    w_blk = M // N
    hd = C // num_heads
    cdt = wqkv_ref.dtype                      # compute dtype (bf16 or f32)

    # --- fused QKV projection: one (M, C) x (C, 3C) MXU matmul ---------------
    qkv = jnp.dot(x_ref[...], wqkv_ref[...], preferred_element_type=jnp.float32)
    qkv = (qkv + bqkv_ref[0]).astype(cdt)     # single cast; (M, 3C)

    rel_bias = bias_ref[...]                  # (nh, N, N) f32, hoisted once

    # --- per-head attention via static lane slices (no head transposes) -----
    for h in range(num_heads):                # small nh -> fully unrolled
        lo = h * hd
        qh = qkv[:, lo:lo + hd].reshape(w_blk, N, hd)
        kh = qkv[:, C + lo:C + lo + hd].reshape(w_blk, N, hd)
        vh = qkv[:, 2 * C + lo:2 * C + lo + hd].reshape(w_blk, N, hd)

        s = jnp.einsum('wnd,wmd->wnm', qh, kh,
                       preferred_element_type=jnp.float32)   # (w_blk, N, N)
        s = s + rel_bias[h]

        # softmax over keys (f32)
        s = s - jnp.max(s, axis=-1, keepdims=True)
        p = jnp.exp(s)
        p = p * pl.reciprocal(jnp.sum(p, axis=-1, keepdims=True), approx=True)

        oh = jnp.einsum('wnm,wmd->wnd', p.astype(cdt), vh,
                        preferred_element_type=jnp.float32)  # (w_blk, N, hd)
        # write this head into its static lane slice of the scratch: keeps one
        # head live at a time, no lane-wise concat of nh narrow pieces.
        acc_ref[:, lo:lo + hd] = oh.reshape(M, hd)

    # --- fused output projection from the scratch ----------------------------
    y = jnp.dot(acc_ref[...].astype(cdt), wproj_ref[...],
                preferred_element_type=jnp.float32)
    o_ref[...] = (y + bproj_ref[0]).astype(o_ref.dtype)


# ----------------------------------------------------------------------------
# Wrapper around pallas_call
# ----------------------------------------------------------------------------
def _phys_vmem_bytes():
    try:
        return int(pltpu.get_tpu_info().vmem_capacity_bytes)
    except Exception:
        return 64 * 1024 * 1024        # conservative (v7x per-TC VMEM)


def _vmem_estimate(m_blk, C, num_heads, N, cdt_bytes, out_bytes):
    io = 2 * m_blk * C * (cdt_bytes + out_bytes)          # double-buffered x / out
    weights = 4 * C * C * cdt_bytes + 4 * C * 4 + num_heads * N * N * 4
    scratch = m_blk * C * 4
    interm = m_blk * 3 * C * (4 + cdt_bytes)              # f32 qkv + cdt copy
    return io + weights + scratch + interm


def _invariant_spec(shape, index_map):
    """BlockSpec for a grid-invariant operand: single VMEM buffer if supported."""
    if hasattr(pl, "Buffered"):
        try:
            return pl.BlockSpec(shape, index_map, pipeline_mode=pl.Buffered(1))
        except Exception:
            pass
    return pl.BlockSpec(shape, index_map)


def _window_attention_pallas(x2d, params, num_heads, seq_n, *,
                             compute_dtype=jnp.bfloat16, target_rows=1024):
    # x2d: (nWB * N, C) windowed tokens, row-major
    total_rows, C = x2d.shape
    N = seq_n
    nWB = total_rows // N
    out_dtype = x2d.dtype
    cdt_bytes = jnp.dtype(compute_dtype).itemsize
    out_bytes = jnp.dtype(out_dtype).itemsize

    vmem_budget = max(int(_phys_vmem_bytes() * 0.55), 32 * 1024 * 1024)

    # --- pick w_blk (windows per grid step) ----------------------------------
    # * w_blk*N ~ target_rows rows/step so the QKV/proj matmuls see fat M tiles
    # * when the grid has > 1 step, w_blk*N must be a multiple of 8 (sublanes)
    # * shrink (halving) if the VMEM estimate exceeds the chip budget
    step = 8 // math.gcd(N, 8)

    def legalize(w):
        if w >= nWB:
            return nWB
        return max(step, (w // step) * step)

    w_blk = legalize(max(1, target_rows // N))
    while w_blk > step and _vmem_estimate(w_blk * N, C, num_heads, N,
                                          cdt_bytes, out_bytes) > vmem_budget:
        w_blk = legalize(max(step, w_blk // 2))

    nWB_pad = _cdiv(nWB, w_blk) * w_blk
    m_blk = w_blk * N
    if nWB_pad != nWB:
        # padded windows are all-zero; computed then dropped (no NaN risk)
        x2d = jnp.pad(x2d, ((0, (nWB_pad - nWB) * N), (0, 0)))

    est = _vmem_estimate(m_blk, C, num_heads, N, cdt_bytes, out_bytes)
    vmem_limit = int(min(max(32 * 1024 * 1024, est + 8 * 1024 * 1024),
                         vmem_budget))

    kernel = functools.partial(_swin_attn_kernel,
                               num_heads=num_heads, seq_n=N)
    out = pl.pallas_call(
        kernel,
        out_shape=jax.ShapeDtypeStruct((nWB_pad * N, C), out_dtype),
        grid_spec=pltpu.PrefetchScalarGridSpec(
            num_scalar_prefetch=0,
            grid=(nWB_pad // w_blk,),
            in_specs=[
                pl.BlockSpec((m_blk, C), lambda i: (i, 0)),
                # grid-invariant operands: single VMEM buffer each
                _invariant_spec((C, 3 * C), lambda i: (0, 0)),
                _invariant_spec((1, 3 * C), lambda i: (0, 0)),
                _invariant_spec((C, C), lambda i: (0, 0)),
                _invariant_spec((1, C), lambda i: (0, 0)),
                _invariant_spec((num_heads, N, N), lambda i: (0, 0, 0)),
            ],
            out_specs=pl.BlockSpec((m_blk, C), lambda i: (i, 0)),
            scratch_shapes=[pltpu.VMEM((m_blk, C), jnp.float32)],
        ),
        compiler_params=pltpu.CompilerParams(
            dimension_semantics=("parallel",),
            vmem_limit_bytes=vmem_limit),
    )(x2d.astype(compute_dtype), params['wqkv'], params['bqkv'],
      params['wproj'], params['bproj'], params['bias'])
    return out[:nWB * N]


# ----------------------------------------------------------------------------
# Window partition / reverse (pure JAX glue, same semantics as the PyTorch fns)
# ----------------------------------------------------------------------------
def window_partition(x, window_size):
    B, H, W, C = x.shape
    x = x.reshape(B, H // window_size, window_size, W // window_size,
                  window_size, C)
    x = jnp.transpose(x, (0, 1, 3, 2, 4, 5))
    return x.reshape(-1, window_size, window_size, C)


def window_reverse(windows, window_size, H, W):
    B = windows.shape[0] // (H * W // window_size // window_size)
    x = windows.reshape(B, H // window_size, W // window_size, window_size,
                        window_size, -1)
    x = jnp.transpose(x, (0, 1, 3, 2, 4, 5))
    return x.reshape(B, H, W, -1)


# ----------------------------------------------------------------------------
# Module-equivalent wrapper
# ----------------------------------------------------------------------------
class ShiftedWindowAttentionPallas:
    def __init__(self, dim, window_size, num_heads, shift_size=0,
                 qkv_bias=True, qk_scale=None, key=None,
                 compute_dtype=jnp.bfloat16, target_rows=1024):
        assert dim % num_heads == 0
        self.dim = dim
        self.window_size = window_size
        self.shift_size = shift_size
        self.num_heads = num_heads
        head_dim = dim // num_heads
        self.scale = qk_scale or head_dim ** (-0.5)
        self.compute_dtype = compute_dtype
        self.target_rows = target_rows

        if key is None:
            key = jax.random.PRNGKey(0)
        k1, k2, k3, k4, k5 = jax.random.split(key, 5)

        # relative position bias table: ((2*ws-1)^2, num_heads), trunc_normal std=0.02
        tbl_shape = ((2 * window_size - 1) * (2 * window_size - 1), num_heads)
        self.relative_position_bias_table = (
            0.02 * jax.random.truncated_normal(k1, -2.0, 2.0, tbl_shape,
                                               jnp.float32))

        # relative position index (same construction as the torch module)
        coords_h = np.arange(window_size)
        coords_w = np.arange(window_size)
        coords = np.stack(np.meshgrid(coords_h, coords_w, indexing='ij'))
        coords_flatten = coords.reshape(2, -1)
        rel = coords_flatten[:, :, None] - coords_flatten[:, None, :]
        rel = rel.transpose(1, 2, 0)
        rel[:, :, 0] += window_size - 1
        rel[:, :, 1] += window_size - 1
        rel[:, :, 0] *= 2 * window_size - 1
        self.relative_position_index = jnp.asarray(rel.sum(-1))   # (N, N)

        # qkv / proj linear params (torch-Linear-like uniform init), (in, out)
        bound = 1.0 / math.sqrt(dim)
        self.qkv_weight = jax.random.uniform(k2, (dim, 3 * dim), jnp.float32,
                                             -bound, bound)
        self.qkv_bias = (jax.random.uniform(k3, (3 * dim,), jnp.float32,
                                            -bound, bound)
                         if qkv_bias else jnp.zeros((3 * dim,), jnp.float32))
        self.proj_weight = jax.random.uniform(k4, (dim, dim), jnp.float32,
                                              -bound, bound)
        self.proj_bias = jax.random.uniform(k5, (dim,), jnp.float32,
                                            -bound, bound)

        # Fold the softmax scale into the Q columns of the qkv weight/bias
        # (one-time host op; removes an in-kernel VPU multiply per grid step).
        scale_vec = jnp.concatenate([
            jnp.full((dim,), self.scale, jnp.float32),
            jnp.ones((2 * dim,), jnp.float32)])
        self.qkv_weight_scaled = self.qkv_weight * scale_vec[None, :]
        self.qkv_bias_scaled = self.qkv_bias * scale_vec

        # Precompute the (nh, N, N) relative position bias once.
        self.rel_bias = self._relative_bias()

        # Per-compute-dtype prepared operands (built once, cached).
        self._param_cache = {}

        # TODO(synk): attn_drop / proj_drop are identity at inference (p=0.0); not implemented.
        # NOTE: the reference PyTorch module applies no attention mask for
        # shift_size > 0 and does not clamp shift_size, so neither does this
        # kernel (matching the spec exactly).

    def _relative_bias(self):
        ws = self.window_size
        N = ws * ws
        idx = self.relative_position_index.reshape(-1)
        bias = self.relative_position_bias_table[idx]
        bias = bias.reshape(N, N, self.num_heads)
        return jnp.transpose(bias, (2, 0, 1))                    # (nh, N, N)

    def _prepared(self, compute_dtype):
        key = jnp.dtype(compute_dtype).name
        if key not in self._param_cache:
            self._param_cache[key] = {
                'wqkv': self.qkv_weight_scaled.astype(compute_dtype),
                'bqkv': self.qkv_bias_scaled.reshape(1, -1).astype(jnp.float32),
                'wproj': self.proj_weight.astype(compute_dtype),
                'bproj': self.proj_bias.reshape(1, -1).astype(jnp.float32),
                'bias': self.rel_bias.astype(jnp.float32),
            }
        return self._param_cache[key]

    def __call__(self, x):
        # x: (B, H, W, C)
        B, H, W, C = x.shape
        ws, ss = self.window_size, self.shift_size
        pad_b = (ws - H % ws) % ws
        pad_r = (ws - W % ws) % ws
        x = jnp.pad(x, ((0, 0), (0, pad_b), (0, pad_r), (0, 0)))
        Hp, Wp = H + pad_b, W + pad_r

        if ss > 0:
            x = jnp.roll(x, shift=(-ss, -ss), axis=(1, 2))

        # TODO(synk): fold pad/roll/window_partition/window_reverse into the
        # kernel grid (image-layout blocks + in-VMEM transpose) to remove the
        # remaining full-tensor HBM glue passes.
        x2d = window_partition(x, ws).reshape(-1, C)              # (nWB*N, C)

        params = self._prepared(self.compute_dtype)
        attn_out = _window_attention_pallas(
            x2d, params, self.num_heads, ws * ws,
            compute_dtype=self.compute_dtype,
            target_rows=self.target_rows)

        attn_out = attn_out.reshape(-1, ws, ws, C)
        x = window_reverse(attn_out, ws, Hp, Wp)

        if ss > 0:
            x = jnp.roll(x, shift=(ss, ss), axis=(1, 2))
        if pad_b > 0 or pad_r > 0:
            x = x[:, :H, :W, :]
        return x


# ----------------------------------------------------------------------------
# Pure-JAX reference (mirrors the torch forward) for a sanity check
# ----------------------------------------------------------------------------
def _reference_forward(mod, x):
    B, H, W, C = x.shape
    ws, ss = mod.window_size, mod.shift_size
    pad_b = (ws - H % ws) % ws
    pad_r = (ws - W % ws) % ws
    x = jnp.pad(x, ((0, 0), (0, pad_b), (0, pad_r), (0, 0)))
    Hp, Wp = H + pad_b, W + pad_r
    if ss > 0:
        x = jnp.roll(x, shift=(-ss, -ss), axis=(1, 2))
    xw = window_partition(x, ws).reshape(-1, ws * ws, C)
    qkv = xw @ mod.qkv_weight + mod.qkv_bias
    nWB, N, _ = xw.shape
    nh, hd = mod.num_heads, C // mod.num_heads
    qkv = qkv.reshape(nWB, N, 3, nh, hd).transpose(2, 0, 3, 1, 4)
    q, k, v = qkv[0] * mod.scale, qkv[1], qkv[2]
    attn = jnp.einsum('bhnd,bhmd->bhnm', q, k) + mod._relative_bias()[None]
    attn = jax.nn.softmax(attn, axis=-1)
    out = jnp.einsum('bhnm,bhmd->bhnd', attn, v)
    out = out.transpose(0, 2, 1, 3).reshape(nWB, N, C)
    out = out @ mod.proj_weight + mod.proj_bias
    x = window_reverse(out.reshape(-1, ws, ws, C), ws, Hp, Wp)
    if ss > 0:
        x = jnp.roll(x, shift=(ss, ss), axis=(1, 2))
    if pad_b > 0 or pad_r > 0:
        x = x[:, :H, :W, :]
    return x


if __name__ == "__main__":
    key = jax.random.PRNGKey(0)
    k_param, k_x = jax.random.split(key)

    B, H, W, C = 2, 8, 8, 32
    window_size, num_heads, shift_size = 4, 4, 2

    mod = ShiftedWindowAttentionPallas(C, window_size, num_heads,
                                       shift_size=shift_size, key=k_param)
    x = jax.random.normal(k_x, (B, H, W, C), jnp.float32)

    ref = jax.block_until_ready(_reference_forward(mod, x))

    # f32 compute path (tight check; approx reciprocal in softmax denom).
    mod.compute_dtype = jnp.float32
    out_f32 = jax.block_until_ready(mod(x))
    np.testing.assert_allclose(np.asarray(out_f32), np.asarray(ref),
                               rtol=1e-2, atol=1e-2)

    # bf16 compute path (default; MXU-friendly on v5e/v6e/v7x), f32 accumulation.
    mod.compute_dtype = jnp.bfloat16
    out_bf16 = jax.block_until_ready(mod(x))
    np.testing.assert_allclose(np.asarray(out_bf16), np.asarray(ref),
                               rtol=8e-2, atol=8e-2)

    print("KERNEL_OK")
</pallas_src>

<mosaic_0001>
module attributes {stable_mosaic.version = 11 : i64} {
  func.func @_swin_attn_kernel(%arg0: i32, %arg1: memref<128x32xf32, #tpu.memory_space<vmem>>, %arg2: memref<32x96xf32, #tpu.memory_space<vmem>>, %arg3: memref<1x96xf32, #tpu.memory_space<vmem>>, %arg4: memref<32x32xf32, #tpu.memory_space<vmem>>, %arg5: memref<1x32xf32, #tpu.memory_space<vmem>>, %arg6: memref<4x16x16xf32, #tpu.memory_space<vmem>>, %arg7: memref<128x32xf32, #tpu.memory_space<vmem>>, %arg8: memref<128x32xf32, #tpu.memory_space<vmem>>) attributes {dimension_semantics = [#tpu.dimension_semantics<parallel>], iteration_bounds = array<i64: 1>, scalar_prefetch = 0 : i64, scratch_operands = 1 : i64, tpu.core_type = #tpu.core_type<tc>, window_params = [{transform_indices = @transform_0, window_bounds = array<i64: 128, 32>}, {pipeline_mode = #tpu.pipeline_mode<synchronous>, transform_indices = @transform_1, window_bounds = array<i64: 32, 96>}, {pipeline_mode = #tpu.pipeline_mode<synchronous>, transform_indices = @transform_2, window_bounds = array<i64: 1, 96>}, {pipeline_mode = #tpu.pipeline_mode<synchronous>, transform_indices = @transform_3, window_bounds = array<i64: 32, 32>}, {pipeline_mode = #tpu.pipeline_mode<synchronous>, transform_indices = @transform_4, window_bounds = array<i64: 1, 32>}, {pipeline_mode = #tpu.pipeline_mode<synchronous>, transform_indices = @transform_5, window_bounds = array<i64: 4, 16, 16>}, {transform_indices = @transform_6, window_bounds = array<i64: 128, 32>}]} {
    %c0 = arith.constant 0 : index
    %c0_0 = arith.constant 0 : index
    %0 = vector.load %arg1[%c0, %c0_0] : memref<128x32xf32, #tpu.memory_space<vmem>>, vector<128x32xf32>
    %c0_1 = arith.constant 0 : index
    %c0_2 = arith.constant 0 : index
    %1 = vector.load %arg2[%c0_1, %c0_2] : memref<32x96xf32, #tpu.memory_space<vmem>>, vector<32x96xf32>
    %cst = arith.constant dense<0.000000e+00> : vector<128x96xf32>
    %2 = tpu.matmul %0, %1, %cst {dimension_numbers = #tpu.dot_dimension_numbers<[1], [0], [0], [1], [0, 0, 1, 1], [], []>} : vector<128x32xf32>, vector<32x96xf32>, vector<128x96xf32> -> vector<128x96xf32>
    %c0_3 = arith.constant 0 : index
    %c0_4 = arith.constant 0 : index
    %3 = vector.load %arg3[%c0_3, %c0_4] : memref<1x96xf32, #tpu.memory_space<vmem>>, vector<1x96xf32>
    %4 = vector.shape_cast %3 : vector<1x96xf32> to vector<96xf32>
    %5 = vector.shape_cast %4 : vector<96xf32> to vector<1x96xf32>
    %6 = vector.broadcast %5 : vector<1x96xf32> to vector<128x96xf32>
    %7 = arith.addf %2, %6 : vector<128x96xf32>
    %c0_5 = arith.constant 0 : index
    %c0_6 = arith.constant 0 : index
    %c0_7 = arith.constant 0 : index
    %8 = vector.load %arg6[%c0_5, %c0_6, %c0_7] : memref<4x16x16xf32, #tpu.memory_space<vmem>>, vector<4x16x16xf32>
    %9 = vector.extract_strided_slice %7 {offsets = [0, 0], sizes = [128, 8], strides = [1, 1]} : vector<128x96xf32> to vector<128x8xf32>
    %10 = vector.shape_cast %9 : vector<128x8xf32> to vector<8x16x8xf32>
    %11 = vector.extract_strided_slice %7 {offsets = [0, 32], sizes = [128, 8], strides = [1, 1]} : vector<128x96xf32> to vector<128x8xf32>
    %12 = vector.shape_cast %11 : vector<128x8xf32> to vector<8x16x8xf32>
    %13 = vector.extract_strided_slice %7 {offsets = [0, 64], sizes = [128, 8], strides = [1, 1]} : vector<128x96xf32> to vector<128x8xf32>
    %14 = vector.shape_cast %13 : vector<128x8xf32> to vector<8x16x8xf32>
    "tpu.trace_start"() <{level = 10 : i32, message = "wnd,wmd->wnm"}> : () -> ()
    %cst_8 = arith.constant dense<0.000000e+00> : vector<8x16x16xf32>
    %15 = tpu.matmul %10, %12, %cst_8 {dimension_numbers = #tpu.dot_dimension_numbers<[2], [2], [1], [1], [0, 0, 0, 1, 1, 1], [0], [0]>} : vector<8x16x8xf32>, vector<8x16x8xf32>, vector<8x16x16xf32> -> vector<8x16x16xf32>
    "tpu.trace_stop"() : () -> ()
    %16 = vector.extract_strided_slice %8 {offsets = [0, 0, 0], sizes = [1, 16, 16], strides = [1, 1, 1]} : vector<4x16x16xf32> to vector<1x16x16xf32>
    %17 = vector.shape_cast %16 : vector<1x16x16xf32> to vector<16x16xf32>
    %18 = vector.shape_cast %17 : vector<16x16xf32> to vector<1x16x16xf32>
    %19 = vector.broadcast %18 : vector<1x16x16xf32> to vector<8x16x16xf32>
    %20 = arith.addf %15, %19 : vector<8x16x16xf32>
    %cst_9 = arith.constant dense<0xFF800000> : vector<8x16xf32>
    %21 = vector.multi_reduction <maximumf>, %20, %cst_9 [2] : vector<8x16x16xf32> to vector<8x16xf32>
    %22 = vector.shape_cast %21 : vector<8x16xf32> to vector<8x16x1xf32>
    %23 = vector.broadcast %22 : vector<8x16x1xf32> to vector<8x16x16xf32>
    %24 = arith.subf %20, %23 : vector<8x16x16xf32>
    %25 = math.exp %24 : vector<8x16x16xf32>
    %cst_10 = arith.constant dense<0.000000e+00> : vector<8x16xf32>
    %26 = vector.multi_reduction <add>, %25, %cst_10 [2] : vector<8x16x16xf32> to vector<8x16xf32>
    %27 = vector.shape_cast %26 : vector<8x16xf32> to vector<8x16x1xf32>
    %28 = tpu.reciprocal %27 {approx = true} : vector<8x16x1xf32> -> vector<8x16x1xf32>
    %29 = vector.broadcast %28 : vector<8x16x1xf32> to vector<8x16x16xf32>
    %30 = arith.mulf %25, %29 : vector<8x16x16xf32>
    "tpu.trace_start"() <{level = 10 : i32, message = "wnm,wmd->wnd"}> : () -> ()
    %cst_11 = arith.constant dense<0.000000e+00> : vector<8x16x8xf32>
    %31 = tpu.matmul %30, %14, %cst_11 {dimension_numbers = #tpu.dot_dimension_numbers<[2], [1], [1], [2], [0, 0, 0, 1, 1, 2], [0], [0]>} : vector<8x16x16xf32>, vector<8x16x8xf32>, vector<8x16x8xf32> -> vector<8x16x8xf32>
    "tpu.trace_stop"() : () -> ()
    %32 = vector.shape_cast %31 : vector<8x16x8xf32> to vector<128x8xf32>
    %c0_12 = arith.constant 0 : index
    %c0_13 = arith.constant 0 : index
    %33 = vector.load %arg8[%c0_12, %c0_13] : memref<128x32xf32, #tpu.memory_space<vmem>>, vector<128x8xf32>
    tpu.vector_store %arg8[%c0_12, %c0_13], %32 {strides = array<i32>} : memref<128x32xf32, #tpu.memory_space<vmem>>, vector<128x8xf32>,
    %34 = vector.extract_strided_slice %7 {offsets = [0, 8], sizes = [128, 8], strides = [1, 1]} : vector<128x96xf32> to vector<128x8xf32>
    %35 = vector.shape_cast %34 : vector<128x8xf32> to vector<8x16x8xf32>
    %36 = vector.extract_strided_slice %7 {offsets = [0, 40], sizes = [128, 8], strides = [1, 1]} : vector<128x96xf32> to vector<128x8xf32>
    %37 = vector.shape_cast %36 : vector<128x8xf32> to vector<8x16x8xf32>
    %38 = vector.extract_strided_slice %7 {offsets = [0, 72], sizes = [128, 8], strides = [1, 1]} : vector<128x96xf32> to vector<128x8xf32>
    %39 = vector.shape_cast %38 : vector<128x8xf32> to vector<8x16x8xf32>
    "tpu.trace_start"() <{level = 10 : i32, message = "wnd,wmd->wnm"}> : () -> ()
    %cst_14 = arith.constant dense<0.000000e+00> : vector<8x16x16xf32>
    %40 = tpu.matmul %35, %37, %cst_14 {dimension_numbers = #tpu.dot_dimension_numbers<[2], [2], [1], [1], [0, 0, 0, 1, 1, 1], [0], [0]>} : vector<8x16x8xf32>, vector<8x16x8xf32>, vector<8x16x16xf32> -> vector<8x16x16xf32>
    "tpu.trace_stop"() : () -> ()
    %41 = vector.extract_strided_slice %8 {offsets = [1, 0, 0], sizes = [1, 16, 16], strides = [1, 1, 1]} : vector<4x16x16xf32> to vector<1x16x16xf32>
    %42 = vector.shape_cast %41 : vector<1x16x16xf32> to vector<16x16xf32>
    %43 = vector.shape_cast %42 : vector<16x16xf32> to vector<1x16x16xf32>
    %44 = vector.broadcast %43 : vector<1x16x16xf32> to vector<8x16x16xf32>
    %45 = arith.addf %40, %44 : vector<8x16x16xf32>
    %cst_15 = arith.constant dense<0xFF800000> : vector<8x16xf32>
    %46 = vector.multi_reduction <maximumf>, %45, %cst_15 [2] : vector<8x16x16xf32> to vector<8x16xf32>
    %47 = vector.shape_cast %46 : vector<8x16xf32> to vector<8x16x1xf32>
    %48 = vector.broadcast %47 : vector<8x16x1xf32> to vector<8x16x16xf32>
    %49 = arith.subf %45, %48 : vector<8x16x16xf32>
    %50 = math.exp %49 : vector<8x16x16xf32>
    %cst_16 = arith.constant dense<0.000000e+00> : vector<8x16xf32>
    %51 = vector.multi_reduction <add>, %50, %cst_16 [2] : vector<8x16x16xf32> to vector<8x16xf32>
    %52 = vector.shape_cast %51 : vector<8x16xf32> to vector<8x16x1xf32>
    %53 = tpu.reciprocal %52 {approx = true} : vector<8x16x1xf32> -> vector<8x16x1xf32>
    %54 = vector.broadcast %53 : vector<8x16x1xf32> to vector<8x16x16xf32>
    %55 = arith.mulf %50, %54 : vector<8x16x16xf32>
    "tpu.trace_start"() <{level = 10 : i32, message = "wnm,wmd->wnd"}> : () -> ()
    %cst_17 = arith.constant dense<0.000000e+00> : vector<8x16x8xf32>
    %56 = tpu.matmul %55, %39, %cst_17 {dimension_numbers = #tpu.dot_dimension_numbers<[2], [1], [1], [2], [0, 0, 0, 1, 1, 2], [0], [0]>} : vector<8x16x16xf32>, vector<8x16x8xf32>, vector<8x16x8xf32> -> vector<8x16x8xf32>
    "tpu.trace_stop"() : () -> ()
    %57 = vector.shape_cast %56 : vector<8x16x8xf32> to vector<128x8xf32>
    %c0_18 = arith.constant 0 : index
    %c8 = arith.constant 8 : index
    %58 = vector.load %arg8[%c0_18, %c8] : memref<128x32xf32, #tpu.memory_space<vmem>>, vector<128x8xf32>
    tpu.vector_store %arg8[%c0_18, %c8], %57 {strides = array<i32>} : memref<128x32xf32, #tpu.memory_space<vmem>>, vector<128x8xf32>,
    %59 = vector.extract_strided_slice %7 {offsets = [0, 16], sizes = [128, 8], strides = [1, 1]} : vector<128x96xf32> to vector<128x8xf32>
    %60 = vector.shape_cast %59 : vector<128x8xf32> to vector<8x16x8xf32>
    %61 = vector.extract_strided_slice %7 {offsets = [0, 48], sizes = [128, 8], strides = [1, 1]} : vector<128x96xf32> to vector<128x8xf32>
    %62 = vector.shape_cast %61 : vector<128x8xf32> to vector<8x16x8xf32>
    %63 = vector.extract_strided_slice %7 {offsets = [0, 80], sizes = [128, 8], strides = [1, 1]} : vector<128x96xf32> to vector<128x8xf32>
    %64 = vector.shape_cast %63 : vector<128x8xf32> to vector<8x16x8xf32>
    "tpu.trace_start"() <{level = 10 : i32, message = "wnd,wmd->wnm"}> : () -> ()
    %cst_19 = arith.constant dense<0.000000e+00> : vector<8x16x16xf32>
    %65 = tpu.matmul %60, %62, %cst_19 {dimension_numbers = #tpu.dot_dimension_numbers<[2], [2], [1], [1], [0, 0, 0, 1, 1, 1], [0], [0]>} : vector<8x16x8xf32>, vector<8x16x8xf32>, vector<8x16x16xf32> -> vector<8x16x16xf32>
    "tpu.trace_stop"() : () -> ()
    %66 = vector.extract_strided_slice %8 {offsets = [2, 0, 0], sizes = [1, 16, 16], strides = [1, 1, 1]} : vector<4x16x16xf32> to vector<1x16x16xf32>
    %67 = vector.shape_cast %66 : vector<1x16x16xf32> to vector<16x16xf32>
    %68 = vector.shape_cast %67 : vector<16x16xf32> to vector<1x16x16xf32>
    %69 = vector.broadcast %68 : vector<1x16x16xf32> to vector<8x16x16xf32>
    %70 = arith.addf %65, %69 : vector<8x16x16xf32>
    %cst_20 = arith.constant dense<0xFF800000> : vector<8x16xf32>
    %71 = vector.multi_reduction <maximumf>, %70, %cst_20 [2] : vector<8x16x16xf32> to vector<8x16xf32>
    %72 = vector.shape_cast %71 : vector<8x16xf32> to vector<8x16x1xf32>
    %73 = vector.broadcast %72 : vector<8x16x1xf32> to vector<8x16x16xf32>
    %74 = arith.subf %70, %73 : vector<8x16x16xf32>
    %75 = math.exp %74 : vector<8x16x16xf32>
    %cst_21 = arith.constant dense<0.000000e+00> : vector<8x16xf32>
    %76 = vector.multi_reduction <add>, %75, %cst_21 [2] : vector<8x16x16xf32> to vector<8x16xf32>
    %77 = vector.shape_cast %76 : vector<8x16xf32> to vector<8x16x1xf32>
    %78 = tpu.reciprocal %77 {approx = true} : vector<8x16x1xf32> -> vector<8x16x1xf32>
    %79 = vector.broadcast %78 : vector<8x16x1xf32> to vector<8x16x16xf32>
    %80 = arith.mulf %75, %79 : vector<8x16x16xf32>
    "tpu.trace_start"() <{level = 10 : i32, message = "wnm,wmd->wnd"}> : () -> ()
    %cst_22 = arith.constant dense<0.000000e+00> : vector<8x16x8xf32>
    %81 = tpu.matmul %80, %64, %cst_22 {dimension_numbers = #tpu.dot_dimension_numbers<[2], [1], [1], [2], [0, 0, 0, 1, 1, 2], [0], [0]>} : vector<8x16x16xf32>, vector<8x16x8xf32>, vector<8x16x8xf32> -> vector<8x16x8xf32>
    "tpu.trace_stop"() : () -> ()
    %82 = vector.shape_cast %81 : vector<8x16x8xf32> to vector<128x8xf32>
    %c0_23 = arith.constant 0 : index
    %c16 = arith.constant 16 : index
    %83 = vector.load %arg8[%c0_23, %c16] : memref<128x32xf32, #tpu.memory_space<vmem>>, vector<128x8xf32>
    tpu.vector_store %arg8[%c0_23, %c16], %82 {strides = array<i32>} : memref<128x32xf32, #tpu.memory_space<vmem>>, vector<128x8xf32>,
    %84 = vector.extract_strided_slice %7 {offsets = [0, 24], sizes = [128, 8], strides = [1, 1]} : vector<128x96xf32> to vector<128x8xf32>
    %85 = vector.shape_cast %84 : vector<128x8xf32> to vector<8x16x8xf32>
    %86 = vector.extract_strided_slice %7 {offsets = [0, 56], sizes = [128, 8], strides = [1, 1]} : vector<128x96xf32> to vector<128x8xf32>
    %87 = vector.shape_cast %86 : vector<128x8xf32> to vector<8x16x8xf32>
    %88 = vector.extract_strided_slice %7 {offsets = [0, 88], sizes = [128, 8], strides = [1, 1]} : vector<128x96xf32> to vector<128x8xf32>
    %89 = vector.shape_cast %88 : vector<128x8xf32> to vector<8x16x8xf32>
    "tpu.trace_start"() <{level = 10 : i32, message = "wnd,wmd->wnm"}> : () -> ()
    %cst_24 = arith.constant dense<0.000000e+00> : vector<8x16x16xf32>
    %90 = tpu.matmul %85, %87, %cst_24 {dimension_numbers = #tpu.dot_dimension_numbers<[2], [2], [1], [1], [0, 0, 0, 1, 1, 1], [0], [0]>} : vector<8x16x8xf32>, vector<8x16x8xf32>, vector<8x16x16xf32> -> vector<8x16x16xf32>
    "tpu.trace_stop"() : () -> ()
    %91 = vector.extract_strided_slice %8 {offsets = [3, 0, 0], sizes = [1, 16, 16], strides = [1, 1, 1]} : vector<4x16x16xf32> to vector<1x16x16xf32>
    %92 = vector.shape_cast %91 : vector<1x16x16xf32> to vector<16x16xf32>
    %93 = vector.shape_cast %92 : vector<16x16xf32> to vector<1x16x16xf32>
    %94 = vector.broadcast %93 : vector<1x16x16xf32> to vector<8x16x16xf32>
    %95 = arith.addf %90, %94 : vector<8x16x16xf32>
    %cst_25 = arith.constant dense<0xFF800000> : vector<8x16xf32>
    %96 = vector.multi_reduction <maximumf>, %95, %cst_25 [2] : vector<8x16x16xf32> to vector<8x16xf32>
    %97 = vector.shape_cast %96 : vector<8x16xf32> to vector<8x16x1xf32>
    %98 = vector.broadcast %97 : vector<8x16x1xf32> to vector<8x16x16xf32>
    %99 = arith.subf %95, %98 : vector<8x16x16xf32>
    %100 = math.exp %99 : vector<8x16x16xf32>
    %cst_26 = arith.constant dense<0.000000e+00> : vector<8x16xf32>
    %101 = vector.multi_reduction <add>, %100, %cst_26 [2] : vector<8x16x16xf32> to vector<8x16xf32>
    %102 = vector.shape_cast %101 : vector<8x16xf32> to vector<8x16x1xf32>
    %103 = tpu.reciprocal %102 {approx = true} : vector<8x16x1xf32> -> vector<8x16x1xf32>
    %104 = vector.broadcast %103 : vector<8x16x1xf32> to vector<8x16x16xf32>
    %105 = arith.mulf %100, %104 : vector<8x16x16xf32>
    "tpu.trace_start"() <{level = 10 : i32, message = "wnm,wmd->wnd"}> : () -> ()
    %cst_27 = arith.constant dense<0.000000e+00> : vector<8x16x8xf32>
    %106 = tpu.matmul %105, %89, %cst_27 {dimension_numbers = #tpu.dot_dimension_numbers<[2], [1], [1], [2], [0, 0, 0, 1, 1, 2], [0], [0]>} : vector<8x16x16xf32>, vector<8x16x8xf32>, vector<8x16x8xf32> -> vector<8x16x8xf32>
    "tpu.trace_stop"() : () -> ()
    %107 = vector.shape_cast %106 : vector<8x16x8xf32> to vector<128x8xf32>
    %c0_28 = arith.constant 0 : index
    %c24 = arith.constant 24 : index
    %108 = vector.load %arg8[%c0_28, %c24] : memref<128x32xf32, #tpu.memory_space<vmem>>, vector<128x8xf32>
    tpu.vector_store %arg8[%c0_28, %c24], %107 {strides = array<i32>} : memref<128x32xf32, #tpu.memory_space<vmem>>, vector<128x8xf32>,
    %c0_29 = arith.constant 0 : index
    %c0_30 = arith.constant 0 : index
    %109 = vector.load %arg8[%c0_29, %c0_30] : memref<128x32xf32, #tpu.memory_space<vmem>>, vector<128x32xf32>
    %c0_31 = arith.constant 0 : index
    %c0_32 = arith.constant 0 : index
    %110 = vector.load %arg4[%c0_31, %c0_32] : memref<32x32xf32, #tpu.memory_space<vmem>>, vector<32x32xf32>
    %cst_33 = arith.constant dense<0.000000e+00> : vector<128x32xf32>
    %111 = tpu.matmul %109, %110, %cst_33 {dimension_numbers = #tpu.dot_dimension_numbers<[1], [0], [0], [1], [0, 0, 1, 1], [], []>} : vector<128x32xf32>, vector<32x32xf32>, vector<128x32xf32> -> vector<128x32xf32>
    %c0_34 = arith.constant 0 : index
    %c0_35 = arith.constant 0 : index
    %112 = vector.load %arg5[%c0_34, %c0_35] : memref<1x32xf32, #tpu.memory_space<vmem>>, vector<1x32xf32>
    %113 = vector.shape_cast %112 : vector<1x32xf32> to vector<32xf32>
    %114 = vector.shape_cast %113 : vector<32xf32> to vector<1x32xf32>
    %115 = vector.broadcast %114 : vector<1x32xf32> to vector<128x32xf32>
    %116 = arith.addf %111, %115 : vector<128x32xf32>
    %c0_36 = arith.constant 0 : index
    %c0_37 = arith.constant 0 : index
    %117 = vector.load %arg7[%c0_36, %c0_37] : memref<128x32xf32, #tpu.memory_space<vmem>>, vector<128x32xf32>
    tpu.vector_store %arg7[%c0_36, %c0_37], %116 {strides = array<i32>} : memref<128x32xf32, #tpu.memory_space<vmem>>, vector<128x32xf32>,
    return
  }
  func.func @transform_0(%arg0: i32) -> (i32, i32) {
    %c0_i32 = arith.constant 0 : i32
    %c0_i32_0 = arith.constant 0 : i32
    return %arg0, %c0_i32 : i32, i32
  }
  func.func @transform_1(%arg0: i32) -> (i32, i32) {
    %c0_i32 = arith.constant 0 : i32
    %c0_i32_0 = arith.constant 0 : i32
    %c0_i32_1 = arith.constant 0 : i32
    return %c0_i32, %c0_i32_0 : i32, i32
  }
  func.func @transform_2(%arg0: i32) -> (i32, i32) {
    %c0_i32 = arith.constant 0 : i32
    %c0_i32_0 = arith.constant 0 : i32
    %c0_i32_1 = arith.constant 0 : i32
    return %c0_i32, %c0_i32_0 : i32, i32
  }
  func.func @transform_3(%arg0: i32) -> (i32, i32) {
    %c0_i32 = arith.constant 0 : i32
    %c0_i32_0 = arith.constant 0 : i32
    %c0_i32_1 = arith.constant 0 : i32
    return %c0_i32, %c0_i32_0 : i32, i32
  }
  func.func @transform_4(%arg0: i32) -> (i32, i32) {
    %c0_i32 = arith.constant 0 : i32
    %c0_i32_0 = arith.constant 0 : i32
    %c0_i32_1 = arith.constant 0 : i32
    return %c0_i32, %c0_i32_0 : i32, i32
  }
  func.func @transform_5(%arg0: i32) -> (i32, i32, i32) {
    %c0_i32 = arith.constant 0 : i32
    %c0_i32_0 = arith.constant 0 : i32
    %c0_i32_1 = arith.constant 0 : i32
    %c0_i32_2 = arith.constant 0 : i32
    return %c0_i32, %c0_i32_0, %c0_i32_1 : i32, i32, i32
  }
  func.func @transform_6(%arg0: i32) -> (i32, i32) {
    %c0_i32 = arith.constant 0 : i32
    %c0_i32_0 = arith.constant 0 : i32
    return %arg0, %c0_i32 : i32, i32
  }
}

</mosaic_0001>

<llo_original>
// kernel: tpu_custom_call.1
$region0: #{tpu_custom_call.1}
  #allocation0 [shape = 'u32[]', space=smem, size = 0x4, offset = 0x4, fixed_abs, tag = 'smem constant byte address 0x4 - core index']
  #allocation1 [shape = 'u32[72,128]{1,0:T(1,128)}', space=vmem, size = 0x9000, scoped, tag = 'internal scratch']
  #allocation2 [shape = 'f32[128,32]{1,0:T(8,128)}', space=vmem, size = 0x10000, scoped, tag = 'scratch operand']
  %s0 = inlined_call_operand.vmem [shape: f32[128,32], index: 0, kind: input, shape index: {}]
  %s1 = inlined_call_operand.vmem [shape: f32[32,96], index: 1, kind: input, shape index: {}]
  %s2 = inlined_call_operand.vmem [shape: f32[1,96], index: 2, kind: input, shape index: {}]
  %s3 = inlined_call_operand.vmem [shape: f32[32,32], index: 3, kind: input, shape index: {}]
  %s4 = inlined_call_operand.vmem [shape: f32[1,32], index: 4, kind: input, shape index: {}]
  %s5 = inlined_call_operand.vmem [shape: f32[4,16,16], index: 5, kind: input, shape index: {}]
  %s6 = inlined_call_operand.vmem [shape: f32[128,32], index: 6, kind: output, shape index: {}]
  %s7 = sld [smem:[#allocation0]]
  $region34: #{tpu_custom_call.1} parent=0
    _
  %s9 = ssub.s32 1, %s7
  %s10 = scalar_select 0, %s9, %s7
  // Predicated region
  $region2: #{tpu_custom_call.1} parent=0 // pred_check
    _
  $region3: #{tpu_custom_call.1} parent=0 // pred_check_branch
    %12 = sbr.rel (0) target = $region5
  $region4: #{tpu_custom_call.1} parent=0 // pred_region
    _
  $region5: #{tpu_custom_call.1} parent=0 // pred_fallthru
    _
  // Predicated region
  $region6: #{tpu_custom_call.1} parent=0 // pred_check
    _
  $region7: #{tpu_custom_call.1} parent=0 // pred_check_branch
    %14 = sbr.rel (0) target = $region9
  $region8: #{tpu_custom_call.1} parent=0 // pred_region
    _
  $region9: #{tpu_custom_call.1} parent=0 // pred_fallthru
    _
  // Predicated region
  $region10: #{tpu_custom_call.1} parent=0 // pred_check
    _
  $region11: #{tpu_custom_call.1} parent=0 // pred_check_branch
    %16 = sbr.rel (0) target = $region13
  $region12: #{tpu_custom_call.1} parent=0 // pred_region
    _
  $region13: #{tpu_custom_call.1} parent=0 // pred_fallthru
    _
  // Predicated region
  $region14: #{tpu_custom_call.1} parent=0 // pred_check
    _
  $region15: #{tpu_custom_call.1} parent=0 // pred_check_branch
    %18 = sbr.rel (0) target = $region17
  $region16: #{tpu_custom_call.1} parent=0 // pred_region
    _
  $region17: #{tpu_custom_call.1} parent=0 // pred_fallthru
    _
  // Predicated region
  $region18: #{tpu_custom_call.1} parent=0 // pred_check
    _
  $region19: #{tpu_custom_call.1} parent=0 // pred_check_branch
    %20 = sbr.rel (0) target = $region21
  $region20: #{tpu_custom_call.1} parent=0 // pred_region
    _
  $region21: #{tpu_custom_call.1} parent=0 // pred_fallthru
    _
  // Predicated region
  $region22: #{tpu_custom_call.1} parent=0 // pred_check
    _
  $region23: #{tpu_custom_call.1} parent=0 // pred_check_branch
    %22 = sbr.rel (0) target = $region25
  $region24: #{tpu_custom_call.1} parent=0 // pred_region
    _
  $region25: #{tpu_custom_call.1} parent=0 // pred_fallthru
    _
  %v23 = vld [vmem:[%s0] sm:$0xff]
  %v24 = vld [vmem:[%s0 + $0x8] sm:$0xff]
  %v25 = vld [vmem:[%s0 + $0x10] sm:$0xff]
  %v26 = vld [vmem:[%s0 + $0x18] sm:$0xff]
  %v27 = vld [vmem:[%s0 + $0x20] sm:$0xff]
  %v28 = vld [vmem:[%s0 + $0x28] sm:$0xff]
  %v29 = vld [vmem:[%s0 + $0x30] sm:$0xff]
  %v30 = vld [vmem:[%s0 + $0x38] sm:$0xff]
  %v31 = vld [vmem:[%s0 + $0x40] sm:$0xff]
  %v32 = vld [vmem:[%s0 + $0x48] sm:$0xff]
  %v33 = vld [vmem:[%s0 + $0x50] sm:$0xff]
  %v34 = vld [vmem:[%s0 + $0x58] sm:$0xff]
  %v35 = vld [vmem:[%s0 + $0x60] sm:$0xff]
  %v36 = vld [vmem:[%s0 + $0x68] sm:$0xff]
  %v37 = vld [vmem:[%s0 + $0x70] sm:$0xff]
  %v38 = vld [vmem:[%s0 + $0x78] sm:$0xff]
  %v39 = vld [vmem:[%s1] sm:$0xff]
  %v40 = vld [vmem:[%s1 + $0x8] sm:$0xff]
  %v41 = vld [vmem:[%s1 + $0x10] sm:$0xff]
  %v42 = vld [vmem:[%s1 + $0x18] sm:$0xff]
  %v43 = vld [vmem:[%s2] sm:$0x1]
  %v45 = vperm.slane %v43, 0
  %vm47 = vcmask 261120
  %v49 = vsel %vm47, %v23, 0
  %v52 = vsel %vm47, %v24, 0
  %v55 = vsel %vm47, %v25, 0
  %v58 = vsel %vm47, %v26, 0
  %v61 = vsel %vm47, %v27, 0
  %v64 = vsel %vm47, %v28, 0
  %v67 = vsel %vm47, %v29, 0
  %v70 = vsel %vm47, %v30, 0
  %v73 = vsel %vm47, %v31, 0
  %v76 = vsel %vm47, %v32, 0
  %v79 = vsel %vm47, %v33, 0
  %v82 = vsel %vm47, %v34, 0
  %v85 = vsel %vm47, %v35, 0
  %v88 = vsel %vm47, %v36, 0
  %v91 = vsel %vm47, %v37, 0
  %v94 = vsel %vm47, %v38, 0
  %96 = vmatpush.msra.mxu0 0.0
  %97 = vmatpush.msra.mxu0 0.0
  %98 = vmatpush.msra.mxu0 0.0
  %99 = vmatpush.msra.mxu0 0.0
  %100 = vmatpush.msra.mxu0 0.0
  %101 = vmatpush.msra.mxu0 0.0
  %102 = vmatpush.msra.mxu0 0.0
  %103 = vmatpush.msra.mxu0 0.0
  %104 = vmatpush.msra.mxu0 0.0
  %105 = vmatpush.msra.mxu0 0.0
  %106 = vmatpush.msra.mxu0 0.0
  %107 = vmatpush.msra.mxu0 0.0
  %108 = vmatpush.msra.mxu0 %v42
  %109 = vmatpush.msra.mxu0 %v41
  %110 = vmatpush.msra.mxu0 %v40
  %111 = vmatpush.msra.mxu0 %v39
  %112 = vmatmul.f32.gmra.mxu0 %v49
  %v113 = vpop.f32.mrf.mxu0
  %v114 = vadd.f32 %v45, %v113
  %115 = vmatmul.f32.gmra.mxu0 %v52
  %v116 = vpop.f32.mrf.mxu0
  %v117 = vadd.f32 %v45, %v116
  %118 = vmatmul.f32.gmra.mxu0 %v55
  %v119 = vpop.f32.mrf.mxu0
  %v120 = vadd.f32 %v45, %v119
  %121 = vmatmul.f32.gmra.mxu0 %v58
  %v122 = vpop.f32.mrf.mxu0
  %v123 = vadd.f32 %v45, %v122
  %124 = vmatmul.f32.gmra.mxu0 %v61
  %v125 = vpop.f32.mrf.mxu0
  %v126 = vadd.f32 %v45, %v125
  %127 = vmatmul.f32.gmra.mxu0 %v64
  %v128 = vpop.f32.mrf.mxu0
  %v129 = vadd.f32 %v45, %v128
  %130 = vmatmul.f32.gmra.mxu0 %v67
  %v131 = vpop.f32.mrf.mxu0
  %v132 = vadd.f32 %v45, %v131
  %133 = vmatmul.f32.gmra.mxu0 %v70
  %v134 = vpop.f32.mrf.mxu0
  %v135 = vadd.f32 %v45, %v134
  %136 = vmatmul.f32.gmra.mxu0 %v73
  %v137 = vpop.f32.mrf.mxu0
  %v138 = vadd.f32 %v45, %v137
  %139 = vmatmul.f32.gmra.mxu0 %v76
  %v140 = vpop.f32.mrf.mxu0
  %v141 = vadd.f32 %v45, %v140
  %142 = vmatmul.f32.gmra.mxu0 %v79
  %v143 = vpop.f32.mrf.mxu0
  %v144 = vadd.f32 %v45, %v143
  %145 = vmatmul.f32.gmra.mxu0 %v82
  %v146 = vpop.f32.mrf.mxu0
  %v147 = vadd.f32 %v45, %v146
  %148 = vmatmul.f32.gmra.mxu0 %v85
  %v149 = vpop.f32.mrf.mxu0
  %v150 = vadd.f32 %v45, %v149
  %151 = vmatmul.f32.gmra.mxu0 %v88
  %v152 = vpop.f32.mrf.mxu0
  %v153 = vadd.f32 %v45, %v152
  %154 = vmatmul.f32.gmra.mxu0 %v91
  %v155 = vpop.f32.mrf.mxu0
  %v156 = vadd.f32 %v45, %v155
  %157 = vmatmul.f32.gmra.mxu0 %v94
  %v158 = vpop.f32.mrf.mxu0
  %v159 = vadd.f32 %v45, %v158
  %160 = vdwg.mxu0
  %v161 = vld [vmem:[%s5] sm:$0xff]
  %v162 = vld [vmem:[%s5 + $0x8] sm:$0xff]
  %v163 = vld [vmem:[%s5 + $0x10] sm:$0xff]
  %v164 = vld [vmem:[%s5 + $0x18] sm:$0xff]
  %v165 = vld [vmem:[%s5 + $0x20] sm:$0xff]
  %v166 = vld [vmem:[%s5 + $0x28] sm:$0xff]
  %v167 = vld [vmem:[%s5 + $0x30] sm:$0xff]
  %v168 = vld [vmem:[%s5 + $0x38] sm:$0xff]
  %171 = vrot.lane.b32.xlu0 %v114, 96
  %v172 = vpop.permute.xlu0 %171
  %173 = vrot.lane.b32.xlu0 %v117, 96
  %v174 = vpop.permute.xlu0 %173
  %vm175 = vcmask 64512
  %v176 = vsel %vm175, %v114, 0
  %v178 = vsel %vm175, %v117, 0
  %v180 = vsel %vm175, %v172, 0
  %v182 = vsel %vm175, %v174, 0
  %184 = vmatpush.xpose.msra.mxu0 0.0
  %185 = vmatpush.xpose.msra.mxu0 0.0
  %186 = vmatpush.xpose.msra.mxu0 0.0
  %187 = vmatpush.xpose.msra.mxu0 0.0
  %188 = vmatpush.xpose.msra.mxu0 0.0
  %189 = vmatpush.xpose.msra.mxu0 0.0
  %190 = vmatpush.xpose.msra.mxu0 0.0
  %191 = vmatpush.xpose.msra.mxu0 0.0
  %192 = vmatpush.xpose.msra.mxu0 0.0
  %193 = vmatpush.xpose.msra.mxu0 0.0
  %194 = vmatpush.xpose.msra.mxu0 0.0
  %195 = vmatpush.xpose.msra.mxu0 0.0
  %196 = vmatpush.xpose.msra.mxu0 0.0
  %197 = vmatpush.xpose.msra.mxu0 0.0
  %198 = vmatpush.xpose.msra.mxu0 %v182
  %199 = vmatpush.xpose.msra.mxu0 %v180
  %200 = vmatmul.f32.gmra.mxu0 %v176
  %v201 = vpop.f32.mrf.mxu0
  %v202 = vadd.f32 %v161, %v201
  %203 = vmatmul.f32.gmra.mxu0 %v178
  %v204 = vpop.f32.mrf.mxu0
  %v205 = vadd.f32 %v162, %v204
  %206 = vdwg.mxu0
  %209 = vrot.lane.b32.xlu0 %v120, 96
  %v210 = vpop.permute.xlu0 %209
  %211 = vrot.lane.b32.xlu0 %v123, 96
  %v212 = vpop.permute.xlu0 %211
  %v213 = vsel %vm175, %v120, 0
  %v215 = vsel %vm175, %v123, 0
  %v217 = vsel %vm175, %v210, 0
  %v219 = vsel %vm175, %v212, 0
  %221 = vmatpush.xpose.msra.mxu0 0.0
  %222 = vmatpush.xpose.msra.mxu0 0.0
  %223 = vmatpush.xpose.msra.mxu0 0.0
  %224 = vmatpush.xpose.msra.mxu0 0.0
  %225 = vmatpush.xpose.msra.mxu0 0.0
  %226 = vmatpush.xpose.msra.mxu0 0.0
  %227 = vmatpush.xpose.msra.mxu0 0.0
  %228 = vmatpush.xpose.msra.mxu0 0.0
  %229 = vmatpush.xpose.msra.mxu0 0.0
  %230 = vmatpush.xpose.msra.mxu0 0.0
  %231 = vmatpush.xpose.msra.mxu0 0.0
  %232 = vmatpush.xpose.msra.mxu0 0.0
  %233 = vmatpush.xpose.msra.mxu0 0.0
  %234 = vmatpush.xpose.msra.mxu0 0.0
  %235 = vmatpush.xpose.msra.mxu0 %v219
  %236 = vmatpush.xpose.msra.mxu0 %v217
  %237 = vmatmul.f32.gmra.mxu0 %v213
  %v238 = vpop.f32.mrf.mxu0
  %v239 = vadd.f32 %v161, %v238
  %240 = vmatmul.f32.gmra.mxu0 %v215
  %v241 = vpop.f32.mrf.mxu0
  %v242 = vadd.f32 %v162, %v241
  %243 = vdwg.mxu0
  %246 = vrot.lane.b32.xlu0 %v126, 96
  %v247 = vpop.permute.xlu0 %246
  %248 = vrot.lane.b32.xlu0 %v129, 96
  %v249 = vpop.permute.xlu0 %248
  %v250 = vsel %vm175, %v126, 0
  %v252 = vsel %vm175, %v129, 0
  %v254 = vsel %vm175, %v247, 0
  %v256 = vsel %vm175, %v249, 0
  %258 = vmatpush.xpose.msra.mxu0 0.0
  %259 = vmatpush.xpose.msra.mxu0 0.0
  %260 = vmatpush.xpose.msra.mxu0 0.0
  %261 = vmatpush.xpose.msra.mxu0 0.0
  %262 = vmatpush.xpose.msra.mxu0 0.0
  %263 = vmatpush.xpose.msra.mxu0 0.0
  %264 = vmatpush.xpose.msra.mxu0 0.0
  %265 = vmatpush.xpose.msra.mxu0 0.0
  %266 = vmatpush.xpose.msra.mxu0 0.0
  %267 = vmatpush.xpose.msra.mxu0 0.0
  %268 = vmatpush.xpose.msra.mxu0 0.0
  %269 = vmatpush.xpose.msra.mxu0 0.0
  %270 = vmatpush.xpose.msra.mxu0 0.0
  %271 = vmatpush.xpose.msra.mxu0 0.0
  %272 = vmatpush.xpose.msra.mxu0 %v256
  %273 = vmatpush.xpose.msra.mxu0 %v254
  %274 = vmatmul.f32.gmra.mxu0 %v250
  %v275 = vpop.f32.mrf.mxu0
  %v276 = vadd.f32 %v161, %v275
  %277 = vmatmul.f32.gmra.mxu0 %v252
  %v278 = vpop.f32.mrf.mxu0
  %v279 = vadd.f32 %v162, %v278
  %280 = vdwg.mxu0
  %283 = vrot.lane.b32.xlu0 %v132, 96
  %v284 = vpop.permute.xlu0 %283
  %285 = vrot.lane.b32.xlu0 %v135, 96
  %v286 = vpop.permute.xlu0 %285
  %v287 = vsel %vm175, %v132, 0
  %v289 = vsel %vm175, %v135, 0
  %v291 = vsel %vm175, %v284, 0
  %v293 = vsel %vm175, %v286, 0
  %295 = vmatpush.xpose.msra.mxu0 0.0
  %296 = vmatpush.xpose.msra.mxu0 0.0
  %297 = vmatpush.xpose.msra.mxu0 0.0
  %298 = vmatpush.xpose.msra.mxu0 0.0
  %299 = vmatpush.xpose.msra.mxu0 0.0
  %300 = vmatpush.xpose.msra.mxu0 0.0
  %301 = vmatpush.xpose.msra.mxu0 0.0
  %302 = vmatpush.xpose.msra.mxu0 0.0
  %303 = vmatpush.xpose.msra.mxu0 0.0
  %304 = vmatpush.xpose.msra.mxu0 0.0
  %305 = vmatpush.xpose.msra.mxu0 0.0
  %306 = vmatpush.xpose.msra.mxu0 0.0
  %307 = vmatpush.xpose.msra.mxu0 0.0
  %308 = vmatpush.xpose.msra.mxu0 0.0
  %309 = vmatpush.xpose.msra.mxu0 %v293
  %310 = vmatpush.xpose.msra.mxu0 %v291
  %311 = vmatmul.f32.gmra.mxu0 %v287
  %v312 = vpop.f32.mrf.mxu0
  %v313 = vadd.f32 %v161, %v312
  %314 = vmatmul.f32.gmra.mxu0 %v289
  %v315 = vpop.f32.mrf.mxu0
  %v316 = vadd.f32 %v162, %v315
  %317 = vdwg.mxu0
  %320 = vrot.lane.b32.xlu0 %v138, 96
  %v321 = vpop.permute.xlu0 %320
  %322 = vrot.lane.b32.xlu0 %v141, 96
  %v323 = vpop.permute.xlu0 %322
  %v324 = vsel %vm175, %v138, 0
  %v326 = vsel %vm175, %v141, 0
  %v328 = vsel %vm175, %v321, 0
  %v330 = vsel %vm175, %v323, 0
  %332 = vmatpush.xpose.msra.mxu0 0.0
  %333 = vmatpush.xpose.msra.mxu0 0.0
  %334 = vmatpush.xpose.msra.mxu0 0.0
  %335 = vmatpush.xpose.msra.mxu0 0.0
  %336 = vmatpush.xpose.msra.mxu0 0.0
  %337 = vmatpush.xpose.msra.mxu0 0.0
  %338 = vmatpush.xpose.msra.mxu0 0.0
  %339 = vmatpush.xpose.msra.mxu0 0.0
  %340 = vmatpush.xpose.msra.mxu0 0.0
  %341 = vmatpush.xpose.msra.mxu0 0.0
  %342 = vmatpush.xpose.msra.mxu0 0.0
  %343 = vmatpush.xpose.msra.mxu0 0.0
  %344 = vmatpush.xpose.msra.mxu0 0.0
  %345 = vmatpush.xpose.msra.mxu0 0.0
  %346 = vmatpush.xpose.msra.mxu0 %v330
  %347 = vmatpush.xpose.msra.mxu0 %v328
  %348 = vmatmul.f32.gmra.mxu0 %v324
  %v349 = vpop.f32.mrf.mxu0
  %v350 = vadd.f32 %v161, %v349
  %351 = vmatmul.f32.gmra.mxu0 %v326
  %v352 = vpop.f32.mrf.mxu0
  %v353 = vadd.f32 %v162, %v352
  %354 = vdwg.mxu0
  %357 = vrot.lane.b32.xlu0 %v144, 96
  %v358 = vpop.permute.xlu0 %357
  %359 = vrot.lane.b32.xlu0 %v147, 96
  %v360 = vpop.permute.xlu0 %359
  %v361 = vsel %vm175, %v144, 0
  %v363 = vsel %vm175, %v147, 0
  %v365 = vsel %vm175, %v358, 0
  %v367 = vsel %vm175, %v360, 0
  %369 = vmatpush.xpose.msra.mxu0 0.0
  %370 = vmatpush.xpose.msra.mxu0 0.0
  %371 = vmatpush.xpose.msra.mxu0 0.0
  %372 = vmatpush.xpose.msra.mxu0 0.0
  %373 = vmatpush.xpose.msra.mxu0 0.0
  %374 = vmatpush.xpose.msra.mxu0 0.0
  %375 = vmatpush.xpose.msra.mxu0 0.0
  %376 = vmatpush.xpose.msra.mxu0 0.0
  %377 = vmatpush.xpose.msra.mxu0 0.0
  %378 = vmatpush.xpose.msra.mxu0 0.0
  %379 = vmatpush.xpose.msra.mxu0 0.0
  %380 = vmatpush.xpose.msra.mxu0 0.0
  %381 = vmatpush.xpose.msra.mxu0 0.0
  %382 = vmatpush.xpose.msra.mxu0 0.0
  %383 = vmatpush.xpose.msra.mxu0 %v367
  %384 = vmatpush.xpose.msra.mxu0 %v365
  %385 = vmatmul.f32.gmra.mxu0 %v361
  %v386 = vpop.f32.mrf.mxu0
  %v387 = vadd.f32 %v161, %v386
  %388 = vmatmul.f32.gmra.mxu0 %v363
  %v389 = vpop.f32.mrf.mxu0
  %v390 = vadd.f32 %v162, %v389
  %391 = vdwg.mxu0
  %394 = vrot.lane.b32.xlu0 %v150, 96
  %v395 = vpop.permute.xlu0 %394
  %396 = vrot.lane.b32.xlu0 %v153, 96
  %v397 = vpop.permute.xlu0 %396
  %v398 = vsel %vm175, %v150, 0
  %v400 = vsel %vm175, %v153, 0
  %v402 = vsel %vm175, %v395, 0
  %v404 = vsel %vm175, %v397, 0
  %406 = vmatpush.xpose.msra.mxu0 0.0
  %407 = vmatpush.xpose.msra.mxu0 0.0
  %408 = vmatpush.xpose.msra.mxu0 0.0
  %409 = vmatpush.xpose.msra.mxu0 0.0
  %410 = vmatpush.xpose.msra.mxu0 0.0
  %411 = vmatpush.xpose.msra.mxu0 0.0
  %412 = vmatpush.xpose.msra.mxu0 0.0
  %413 = vmatpush.xpose.msra.mxu0 0.0
  %414 = vmatpush.xpose.msra.mxu0 0.0
  %415 = vmatpush.xpose.msra.mxu0 0.0
  %416 = vmatpush.xpose.msra.mxu0 0.0
  %417 = vmatpush.xpose.msra.mxu0 0.0
  %418 = vmatpush.xpose.msra.mxu0 0.0
  %419 = vmatpush.xpose.msra.mxu0 0.0
  %420 = vmatpush.xpose.msra.mxu0 %v404
  %421 = vmatpush.xpose.msra.mxu0 %v402
  %422 = vmatmul.f32.gmra.mxu0 %v398
  %v423 = vpop.f32.mrf.mxu0
  %v424 = vadd.f32 %v161, %v423
  %425 = vmatmul.f32.gmra.mxu0 %v400
  %v426 = vpop.f32.mrf.mxu0
  %v427 = vadd.f32 %v162, %v426
  %428 = vdwg.mxu0
  %431 = vrot.lane.b32.xlu0 %v156, 96
  %v432 = vpop.permute.xlu0 %431
  %433 = vrot.lane.b32.xlu0 %v159, 96
  %v434 = vpop.permute.xlu0 %433
  %v435 = vsel %vm175, %v156, 0
  %v437 = vsel %vm175, %v159, 0
  %v439 = vsel %vm175, %v432, 0
  %v441 = vsel %vm175, %v434, 0
  %443 = vmatpush.xpose.msra.mxu0 0.0
  %444 = vmatpush.xpose.msra.mxu0 0.0
  %445 = vmatpush.xpose.msra.mxu0 0.0
  %446 = vmatpush.xpose.msra.mxu0 0.0
  %447 = vmatpush.xpose.msra.mxu0 0.0
  %448 = vmatpush.xpose.msra.mxu0 0.0
  %449 = vmatpush.xpose.msra.mxu0 0.0
  %450 = vmatpush.xpose.msra.mxu0 0.0
  %451 = vmatpush.xpose.msra.mxu0 0.0
  %452 = vmatpush.xpose.msra.mxu0 0.0
  %453 = vmatpush.xpose.msra.mxu0 0.0
  %454 = vmatpush.xpose.msra.mxu0 0.0
  %455 = vmatpush.xpose.msra.mxu0 0.0
  %456 = vmatpush.xpose.msra.mxu0 0.0
  %457 = vmatpush.xpose.msra.mxu0 %v441
  %458 = vmatpush.xpose.msra.mxu0 %v439
  %459 = vmatmul.f32.gmra.mxu0 %v435
  %v460 = vpop.f32.mrf.mxu0
  %v461 = vadd.f32 %v161, %v460
  %462 = vmatmul.f32.gmra.mxu0 %v437
  %v463 = vpop.f32.mrf.mxu0
  %v464 = vadd.f32 %v162, %v463
  %465 = vdwg.mxu0
  %vm466 = vcmask 130048
  %v467 = vsel %vm466, %v202, -inf
  %468 = vmax.xlane.f32.xlu0 %v467
  %v469 = vpop.xlane.xlu0 %468
  %v470 = vsel %vm466, %v205, -inf
  %471 = vmax.xlane.f32.xlu0 %v470
  %v472 = vpop.xlane.xlu0 %471
  %v473 = vsel %vm466, %v239, -inf
  %474 = vmax.xlane.f32.xlu0 %v473
  %v475 = vpop.xlane.xlu0 %474
  %v476 = vsel %vm466, %v242, -inf
  %477 = vmax.xlane.f32.xlu0 %v476
  %v478 = vpop.xlane.xlu0 %477
  %v479 = vsel %vm466, %v276, -inf
  %480 = vmax.xlane.f32.xlu0 %v479
  %v481 = vpop.xlane.xlu0 %480
  %v482 = vsel %vm466, %v279, -inf
  %483 = vmax.xlane.f32.xlu0 %v482
  %v484 = vpop.xlane.xlu0 %483
  %v485 = vsel %vm466, %v313, -inf
  %486 = vmax.xlane.f32.xlu0 %v485
  %v487 = vpop.xlane.xlu0 %486
  %v488 = vsel %vm466, %v316, -inf
  %489 = vmax.xlane.f32.xlu0 %v488
  %v490 = vpop.xlane.xlu0 %489
  %v491 = vsel %vm466, %v350, -inf
  %492 = vmax.xlane.f32.xlu0 %v491
  %v493 = vpop.xlane.xlu0 %492
  %v494 = vsel %vm466, %v353, -inf
  %495 = vmax.xlane.f32.xlu0 %v494
  %v496 = vpop.xlane.xlu0 %495
  %v497 = vsel %vm466, %v387, -inf
  %498 = vmax.xlane.f32.xlu0 %v497
  %v499 = vpop.xlane.xlu0 %498
  %v500 = vsel %vm466, %v390, -inf
  %501 = vmax.xlane.f32.xlu0 %v500
  %v502 = vpop.xlane.xlu0 %501
  %v503 = vsel %vm466, %v424, -inf
  %504 = vmax.xlane.f32.xlu0 %v503
  %v505 = vpop.xlane.xlu0 %504
  %v506 = vsel %vm466, %v427, -inf
  %507 = vmax.xlane.f32.xlu0 %v506
  %v508 = vpop.xlane.xlu0 %507
  %v509 = vsel %vm466, %v461, -inf
  %510 = vmax.xlane.f32.xlu0 %v509
  %v511 = vpop.xlane.xlu0 %510
  %v512 = vsel %vm466, %v464, -inf
  %513 = vmax.xlane.f32.xlu0 %v512
  %v514 = vpop.xlane.xlu0 %513
  %v515 = vsub.f32 %v202, %v469
  %v516 = vsub.f32 %v205, %v472
  %v517 = vsub.f32 %v239, %v475
  %v518 = vsub.f32 %v242, %v478
  %v519 = vsub.f32 %v276, %v481
  %v520 = vsub.f32 %v279, %v484
  %v521 = vsub.f32 %v313, %v487
  %v522 = vsub.f32 %v316, %v490
  %v523 = vsub.f32 %v350, %v493
  %v524 = vsub.f32 %v353, %v496
  %v525 = vsub.f32 %v387, %v499
  %v526 = vsub.f32 %v390, %v502
  %v527 = vsub.f32 %v424, %v505
  %v528 = vsub.f32 %v427, %v508
  %v529 = vsub.f32 %v461, %v511
  %v530 = vsub.f32 %v464, %v514
  %v531 = vmul.f32 %v515, 1.442695
  %v532 = vpow.pop %v531
  %v533 = vmul.f32 %v516, 1.442695
  %v534 = vpow.pop %v533
  %v535 = vmul.f32 %v517, 1.442695
  %v536 = vpow.pop %v535
  %v537 = vmul.f32 %v518, 1.442695
  %v538 = vpow.pop %v537
  %v539 = vmul.f32 %v519, 1.442695
  %v540 = vpow.pop %v539
  %v541 = vmul.f32 %v520, 1.442695
  %v542 = vpow.pop %v541
  %v543 = vmul.f32 %v521, 1.442695
  %v544 = vpow.pop %v543
  %v545 = vmul.f32 %v522, 1.442695
  %v546 = vpow.pop %v545
  %v547 = vmul.f32 %v523, 1.442695
  %v548 = vpow.pop %v547
  %v549 = vmul.f32 %v524, 1.442695
  %v550 = vpow.pop %v549
  %v551 = vmul.f32 %v525, 1.442695
  %v552 = vpow.pop %v551
  %v553 = vmul.f32 %v526, 1.442695
  %v554 = vpow.pop %v553
  %v555 = vmul.f32 %v527, 1.442695
  %v556 = vpow.pop %v555
  %v557 = vmul.f32 %v528, 1.442695
  %v558 = vpow.pop %v557
  %v559 = vmul.f32 %v529, 1.442695
  %v560 = vpow.pop %v559
  %v561 = vmul.f32 %v530, 1.442695
  %v562 = vpow.pop %v561
  %v563 = vsel %vm466, %v532, 0.0
  %564 = vadd.xlane.f32.xlu0 %v563
  %v565 = vpop.xlane.xlu0 %564
  %v566 = vsel %vm466, %v534, 0.0
  %567 = vadd.xlane.f32.xlu0 %v566
  %v568 = vpop.xlane.xlu0 %567
  %v569 = vsel %vm466, %v536, 0.0
  %570 = vadd.xlane.f32.xlu0 %v569
  %v571 = vpop.xlane.xlu0 %570
  %v572 = vsel %vm466, %v538, 0.0
  %573 = vadd.xlane.f32.xlu0 %v572
  %v574 = vpop.xlane.xlu0 %573
  %v575 = vsel %vm466, %v540, 0.0
  %576 = vadd.xlane.f32.xlu0 %v575
  %v577 = vpop.xlane.xlu0 %576
  %v578 = vsel %vm466, %v542, 0.0
  %579 = vadd.xlane.f32.xlu0 %v578
  %v580 = vpop.xlane.xlu0 %579
  %v581 = vsel %vm466, %v544, 0.0
  %582 = vadd.xlane.f32.xlu0 %v581
  %v583 = vpop.xlane.xlu0 %582
  %v584 = vsel %vm466, %v546, 0.0
  %585 = vadd.xlane.f32.xlu0 %v584
  %v586 = vpop.xlane.xlu0 %585
  %v587 = vsel %vm466, %v548, 0.0
  %588 = vadd.xlane.f32.xlu0 %v587
  %v589 = vpop.xlane.xlu0 %588
  %v590 = vsel %vm466, %v550, 0.0
  %591 = vadd.xlane.f32.xlu0 %v590
  %v592 = vpop.xlane.xlu0 %591
  %v593 = vsel %vm466, %v552, 0.0
  %594 = vadd.xlane.f32.xlu0 %v593
  %v595 = vpop.xlane.xlu0 %594
  %v596 = vsel %vm466, %v554, 0.0
  %597 = vadd.xlane.f32.xlu0 %v596
  %v598 = vpop.xlane.xlu0 %597
  %v599 = vsel %vm466, %v556, 0.0
  %600 = vadd.xlane.f32.xlu0 %v599
  %v601 = vpop.xlane.xlu0 %600
  %v602 = vsel %vm466, %v558, 0.0
  %603 = vadd.xlane.f32.xlu0 %v602
  %v604 = vpop.xlane.xlu0 %603
  %v605 = vsel %vm466, %v560, 0.0
  %606 = vadd.xlane.f32.xlu0 %v605
  %v607 = vpop.xlane.xlu0 %606
  %v608 = vsel %vm466, %v562, 0.0
  %609 = vadd.xlane.f32.xlu0 %v608
  %v610 = vpop.xlane.xlu0 %609
  %v611 = vrcp.pop %v565
  %v612 = vrcp.pop %v568
  %v613 = vrcp.pop %v571
  %v614 = vrcp.pop %v574
  %v615 = vrcp.pop %v577
  %v616 = vrcp.pop %v580
  %v617 = vrcp.pop %v583
  %v618 = vrcp.pop %v586
  %v619 = vrcp.pop %v589
  %v620 = vrcp.pop %v592
  %v621 = vrcp.pop %v595
  %v622 = vrcp.pop %v598
  %v623 = vrcp.pop %v601
  %v624 = vrcp.pop %v604
  %v625 = vrcp.pop %v607
  %v626 = vrcp.pop %v610
  %v627 = vmul.f32 %v532, %v611
  %v628 = vmul.f32 %v534, %v612
  %v629 = vmul.f32 %v536, %v613
  %v630 = vmul.f32 %v538, %v614
  %v631 = vmul.f32 %v540, %v615
  %v632 = vmul.f32 %v542, %v616
  %v633 = vmul.f32 %v544, %v617
  %v634 = vmul.f32 %v546, %v618
  %v635 = vmul.f32 %v548, %v619
  %v636 = vmul.f32 %v550, %v620
  %v637 = vmul.f32 %v552, %v621
  %v638 = vmul.f32 %v554, %v622
  %v639 = vmul.f32 %v556, %v623
  %v640 = vmul.f32 %v558, %v624
  %v641 = vmul.f32 %v560, %v625
  %v642 = vmul.f32 %v562, %v626
  %643 = vrot.lane.b32.xlu0 %v114, 64
  %v644 = vpop.permute.xlu0 %643
  %645 = vrot.lane.b32.xlu0 %v117, 64
  %v646 = vpop.permute.xlu0 %645
  %v650 = vsel %vm466, %v627, 0
  %v653 = vsel %vm466, %v628, 0
  %655 = vmatpush.msra.mxu0 0.0
  %656 = vmatpush.msra.mxu0 0.0
  %657 = vmatpush.msra.mxu0 0.0
  %658 = vmatpush.msra.mxu0 0.0
  %659 = vmatpush.msra.mxu0 0.0
  %660 = vmatpush.msra.mxu0 0.0
  %661 = vmatpush.msra.mxu0 0.0
  %662 = vmatpush.msra.mxu0 0.0
  %663 = vmatpush.msra.mxu0 0.0
  %664 = vmatpush.msra.mxu0 0.0
  %665 = vmatpush.msra.mxu0 0.0
  %666 = vmatpush.msra.mxu0 0.0
  %667 = vmatpush.msra.mxu0 0.0
  %668 = vmatpush.msra.mxu0 0.0
  %669 = vmatpush.msra.mxu0 %v646
  %670 = vmatpush.msra.mxu0 %v644
  %671 = vmatmul.f32.gmra.mxu0 %v650
  %v672 = vpop.f32.mrf.mxu0
  %v673 = vadd.f32 0.0, %v672
  %674 = vmatmul.f32.gmra.mxu0 %v653
  %v675 = vpop.f32.mrf.mxu0
  %v676 = vadd.f32 0.0, %v675
  %677 = vdwg.mxu0
  %678 = vrot.lane.b32.xlu0 %v120, 64
  %v679 = vpop.permute.xlu0 %678
  %680 = vrot.lane.b32.xlu0 %v123, 64
  %v681 = vpop.permute.xlu0 %680
  %v685 = vsel %vm466, %v629, 0
  %v688 = vsel %vm466, %v630, 0
  %690 = vmatpush.msra.mxu0 0.0
  %691 = vmatpush.msra.mxu0 0.0
  %692 = vmatpush.msra.mxu0 0.0
  %693 = vmatpush.msra.mxu0 0.0
  %694 = vmatpush.msra.mxu0 0.0
  %695 = vmatpush.msra.mxu0 0.0
  %696 = vmatpush.msra.mxu0 0.0
  %697 = vmatpush.msra.mxu0 0.0
  %698 = vmatpush.msra.mxu0 0.0
  %699 = vmatpush.msra.mxu0 0.0
  %700 = vmatpush.msra.mxu0 0.0
  %701 = vmatpush.msra.mxu0 0.0
  %702 = vmatpush.msra.mxu0 0.0
  %703 = vmatpush.msra.mxu0 0.0
  %704 = vmatpush.msra.mxu0 %v681
  %705 = vmatpush.msra.mxu0 %v679
  %706 = vmatmul.f32.gmra.mxu0 %v685
  %v707 = vpop.f32.mrf.mxu0
  %v708 = vadd.f32 0.0, %v707
  %709 = vmatmul.f32.gmra.mxu0 %v688
  %v710 = vpop.f32.mrf.mxu0
  %v711 = vadd.f32 0.0, %v710
  %712 = vdwg.mxu0
  %713 = vrot.lane.b32.xlu0 %v126, 64
  %v714 = vpop.permute.xlu0 %713
  %715 = vrot.lane.b32.xlu0 %v129, 64
  %v716 = vpop.permute.xlu0 %715
  %v720 = vsel %vm466, %v631, 0
  %v723 = vsel %vm466, %v632, 0
  %725 = vmatpush.msra.mxu0 0.0
  %726 = vmatpush.msra.mxu0 0.0
  %727 = vmatpush.msra.mxu0 0.0
  %728 = vmatpush.msra.mxu0 0.0
  %729 = vmatpush.msra.mxu0 0.0
  %730 = vmatpush.msra.mxu0 0.0
  %731 = vmatpush.msra.mxu0 0.0
  %732 = vmatpush.msra.mxu0 0.0
  %733 = vmatpush.msra.mxu0 0.0
  %734 = vmatpush.msra.mxu0 0.0
  %735 = vmatpush.msra.mxu0 0.0
  %736 = vmatpush.msra.mxu0 0.0
  %737 = vmatpush.msra.mxu0 0.0
  %738 = vmatpush.msra.mxu0 0.0
  %739 = vmatpush.msra.mxu0 %v716
  %740 = vmatpush.msra.mxu0 %v714
  %741 = vmatmul.f32.gmra.mxu0 %v720
  %v742 = vpop.f32.mrf.mxu0
  %v743 = vadd.f32 0.0, %v742
  %744 = vmatmul.f32.gmra.mxu0 %v723
  %v745 = vpop.f32.mrf.mxu0
  %v746 = vadd.f32 0.0, %v745
  %747 = vdwg.mxu0
  %748 = vrot.lane.b32.xlu0 %v132, 64
  %v749 = vpop.permute.xlu0 %748
  %750 = vrot.lane.b32.xlu0 %v135, 64
  %v751 = vpop.permute.xlu0 %750
  %v755 = vsel %vm466, %v633, 0
  %v758 = vsel %vm466, %v634, 0
  %760 = vmatpush.msra.mxu0 0.0
  %761 = vmatpush.msra.mxu0 0.0
  %762 = vmatpush.msra.mxu0 0.0
  %763 = vmatpush.msra.mxu0 0.0
  %764 = vmatpush.msra.mxu0 0.0
  %765 = vmatpush.msra.mxu0 0.0
  %766 = vmatpush.msra.mxu0 0.0
  %767 = vmatpush.msra.mxu0 0.0
  %768 = vmatpush.msra.mxu0 0.0
  %769 = vmatpush.msra.mxu0 0.0
  %770 = vmatpush.msra.mxu0 0.0
  %771 = vmatpush.msra.mxu0 0.0
  %772 = vmatpush.msra.mxu0 0.0
  %773 = vmatpush.msra.mxu0 0.0
  %774 = vmatpush.msra.mxu0 %v751
  %775 = vmatpush.msra.mxu0 %v749
  %776 = vmatmul.f32.gmra.mxu0 %v755
  %v777 = vpop.f32.mrf.mxu0
  %v778 = vadd.f32 0.0, %v777
  %779 = vmatmul.f32.gmra.mxu0 %v758
  %v780 = vpop.f32.mrf.mxu0
  %v781 = vadd.f32 0.0, %v780
  %782 = vdwg.mxu0
  %783 = vrot.lane.b32.xlu0 %v138, 64
  %v784 = vpop.permute.xlu0 %783
  %785 = vrot.lane.b32.xlu0 %v141, 64
  %v786 = vpop.permute.xlu0 %785
  %v790 = vsel %vm466, %v635, 0
  %v793 = vsel %vm466, %v636, 0
  %795 = vmatpush.msra.mxu0 0.0
  %796 = vmatpush.msra.mxu0 0.0
  %797 = vmatpush.msra.mxu0 0.0
  %798 = vmatpush.msra.mxu0 0.0
  %799 = vmatpush.msra.mxu0 0.0
  %800 = vmatpush.msra.mxu0 0.0
  %801 = vmatpush.msra.mxu0 0.0
  %802 = vmatpush.msra.mxu0 0.0
  %803 = vmatpush.msra.mxu0 0.0
  %804 = vmatpush.msra.mxu0 0.0
  %805 = vmatpush.msra.mxu0 0.0
  %806 = vmatpush.msra.mxu0 0.0
  %807 = vmatpush.msra.mxu0 0.0
  %808 = vmatpush.msra.mxu0 0.0
  %809 = vmatpush.msra.mxu0 %v786
  %810 = vmatpush.msra.mxu0 %v784
  %811 = vmatmul.f32.gmra.mxu0 %v790
  %v812 = vpop.f32.mrf.mxu0
  %v813 = vadd.f32 0.0, %v812
  %814 = vmatmul.f32.gmra.mxu0 %v793
  %v815 = vpop.f32.mrf.mxu0
  %v816 = vadd.f32 0.0, %v815
  %817 = vdwg.mxu0
  %818 = vrot.lane.b32.xlu0 %v144, 64
  %v819 = vpop.permute.xlu0 %818
  %820 = vrot.lane.b32.xlu0 %v147, 64
  %v821 = vpop.permute.xlu0 %820
  %v825 = vsel %vm466, %v637, 0
  %v828 = vsel %vm466, %v638, 0
  %830 = vmatpush.msra.mxu0 0.0
  %831 = vmatpush.msra.mxu0 0.0
  %832 = vmatpush.msra.mxu0 0.0
  %833 = vmatpush.msra.mxu0 0.0
  %834 = vmatpush.msra.mxu0 0.0
  %835 = vmatpush.msra.mxu0 0.0
  %836 = vmatpush.msra.mxu0 0.0
  %837 = vmatpush.msra.mxu0 0.0
  %838 = vmatpush.msra.mxu0 0.0
  %839 = vmatpush.msra.mxu0 0.0
  %840 = vmatpush.msra.mxu0 0.0
  %841 = vmatpush.msra.mxu0 0.0
  %842 = vmatpush.msra.mxu0 0.0
  %843 = vmatpush.msra.mxu0 0.0
  %844 = vmatpush.msra.mxu0 %v821
  %845 = vmatpush.msra.mxu0 %v819
  %846 = vmatmul.f32.gmra.mxu0 %v825
  %v847 = vpop.f32.mrf.mxu0
  %v848 = vadd.f32 0.0, %v847
  %849 = vmatmul.f32.gmra.mxu0 %v828
  %v850 = vpop.f32.mrf.mxu0
  %v851 = vadd.f32 0.0, %v850
  %852 = vdwg.mxu0
  %853 = vrot.lane.b32.xlu0 %v150, 64
  %v854 = vpop.permute.xlu0 %853
  %855 = vrot.lane.b32.xlu0 %v153, 64
  %v856 = vpop.permute.xlu0 %855
  %v860 = vsel %vm466, %v639, 0
  %v863 = vsel %vm466, %v640, 0
  %865 = vmatpush.msra.mxu0 0.0
  %866 = vmatpush.msra.mxu0 0.0
  %867 = vmatpush.msra.mxu0 0.0
  %868 = vmatpush.msra.mxu0 0.0
  %869 = vmatpush.msra.mxu0 0.0
  %870 = vmatpush.msra.mxu0 0.0
  %871 = vmatpush.msra.mxu0 0.0
  %872 = vmatpush.msra.mxu0 0.0
  %873 = vmatpush.msra.mxu0 0.0
  %874 = vmatpush.msra.mxu0 0.0
  %875 = vmatpush.msra.mxu0 0.0
  %876 = vmatpush.msra.mxu0 0.0
  %877 = vmatpush.msra.mxu0 0.0
  %878 = vmatpush.msra.mxu0 0.0
  %879 = vmatpush.msra.mxu0 %v856
  %880 = vmatpush.msra.mxu0 %v854
  %881 = vmatmul.f32.gmra.mxu0 %v860
  %v882 = vpop.f32.mrf.mxu0
  %v883 = vadd.f32 0.0, %v882
  %884 = vmatmul.f32.gmra.mxu0 %v863
  %v885 = vpop.f32.mrf.mxu0
  %v886 = vadd.f32 0.0, %v885
  %887 = vdwg.mxu0
  %888 = vrot.lane.b32.xlu0 %v156, 64
  %v889 = vpop.permute.xlu0 %888
  %890 = vrot.lane.b32.xlu0 %v159, 64
  %v891 = vpop.permute.xlu0 %890
  %v895 = vsel %vm466, %v641, 0
  %v898 = vsel %vm466, %v642, 0
  %900 = vmatpush.msra.mxu0 0.0
  %901 = vmatpush.msra.mxu0 0.0
  %902 = vmatpush.msra.mxu0 0.0
  %903 = vmatpush.msra.mxu0 0.0
  %904 = vmatpush.msra.mxu0 0.0
  %905 = vmatpush.msra.mxu0 0.0
  %906 = vmatpush.msra.mxu0 0.0
  %907 = vmatpush.msra.mxu0 0.0
  %908 = vmatpush.msra.mxu0 0.0
  %909 = vmatpush.msra.mxu0 0.0
  %910 = vmatpush.msra.mxu0 0.0
  %911 = vmatpush.msra.mxu0 0.0
  %912 = vmatpush.msra.mxu0 0.0
  %913 = vmatpush.msra.mxu0 0.0
  %914 = vmatpush.msra.mxu0 %v891
  %915 = vmatpush.msra.mxu0 %v889
  %916 = vmatmul.f32.gmra.mxu0 %v895
  %v917 = vpop.f32.mrf.mxu0
  %v918 = vadd.f32 0.0, %v917
  %919 = vmatmul.f32.gmra.mxu0 %v898
  %v920 = vpop.f32.mrf.mxu0
  %v921 = vadd.f32 0.0, %v920
  %922 = vdwg.mxu0
  %923 = vst.msk [vmem:[#allocation2] sm:$0xff] %vm175, %v673
  %924 = vst.msk [vmem:[#allocation2 + $0x8] sm:$0xff] %vm175, %v676
  %925 = vst.msk [vmem:[#allocation2 + $0x10] sm:$0xff] %vm175, %v708
  %926 = vst.msk [vmem:[#allocation2 + $0x18] sm:$0xff] %vm175, %v711
  %927 = vst.msk [vmem:[#allocation2 + $0x20] sm:$0xff] %vm175, %v743
  %928 = vst.msk [vmem:[#allocation2 + $0x28] sm:$0xff] %vm175, %v746
  %929 = vst.msk [vmem:[#allocation2 + $0x30] sm:$0xff] %vm175, %v778
  %930 = vst.msk [vmem:[#allocation2 + $0x38] sm:$0xff] %vm175, %v781
  %931 = vst.msk [vmem:[#allocation2 + $0x40] sm:$0xff] %vm175, %v813
  %932 = vst.msk [vmem:[#allocation2 + $0x48] sm:$0xff] %vm175, %v816
  %933 = vst.msk [vmem:[#allocation2 + $0x50] sm:$0xff] %vm175, %v848
  %934 = vst.msk [vmem:[#allocation2 + $0x58] sm:$0xff] %vm175, %v851
  %935 = vst.msk [vmem:[#allocation2 + $0x60] sm:$0xff] %vm175, %v883
  %936 = vst.msk [vmem:[#allocation2 + $0x68] sm:$0xff] %vm175, %v886
  %937 = vst.msk [vmem:[#allocation2 + $0x70] sm:$0xff] %vm175, %v918
  %938 = vst.msk [vmem:[#allocation2 + $0x78] sm:$0xff] %vm175, %v921
  %939 = vrot.lane.b32.xlu0 %v114, 120
  %v940 = vpop.permute.xlu0 %939
  %941 = vrot.lane.b32.xlu0 %v117, 120
  %v942 = vpop.permute.xlu0 %941
  %943 = vrot.lane.b32.xlu0 %v114, 88
  %v944 = vpop.permute.xlu0 %943
  %945 = vrot.lane.b32.xlu0 %v117, 88
  %v946 = vpop.permute.xlu0 %945
  %v947 = vsel %vm175, %v940, 0
  %v949 = vsel %vm175, %v942, 0
  %v951 = vsel %vm175, %v944, 0
  %v953 = vsel %vm175, %v946, 0
  %955 = vmatpush.xpose.msra.mxu0 0.0
  %956 = vmatpush.xpose.msra.mxu0 0.0
  %957 = vmatpush.xpose.msra.mxu0 0.0
  %958 = vmatpush.xpose.msra.mxu0 0.0
  %959 = vmatpush.xpose.msra.mxu0 0.0
  %960 = vmatpush.xpose.msra.mxu0 0.0
  %961 = vmatpush.xpose.msra.mxu0 0.0
  %962 = vmatpush.xpose.msra.mxu0 0.0
  %963 = vmatpush.xpose.msra.mxu0 0.0
  %964 = vmatpush.xpose.msra.mxu0 0.0
  %965 = vmatpush.xpose.msra.mxu0 0.0
  %966 = vmatpush.xpose.msra.mxu0 0.0
  %967 = vmatpush.xpose.msra.mxu0 0.0
  %968 = vmatpush.xpose.msra.mxu0 0.0
  %969 = vmatpush.xpose.msra.mxu0 %v953
  %970 = vmatpush.xpose.msra.mxu0 %v951
  %971 = vmatmul.f32.gmra.mxu0 %v947
  %v972 = vpop.f32.mrf.mxu0
  %v973 = vadd.f32 %v163, %v972
  %974 = vmatmul.f32.gmra.mxu0 %v949
  %v975 = vpop.f32.mrf.mxu0
  %v976 = vadd.f32 %v164, %v975
  %977 = vdwg.mxu0
  %978 = vrot.lane.b32.xlu0 %v120, 120
  %v979 = vpop.permute.xlu0 %978
  %980 = vrot.lane.b32.xlu0 %v123, 120
  %v981 = vpop.permute.xlu0 %980
  %982 = vrot.lane.b32.xlu0 %v120, 88
  %v983 = vpop.permute.xlu0 %982
  %984 = vrot.lane.b32.xlu0 %v123, 88
  %v985 = vpop.permute.xlu0 %984
  %v986 = vsel %vm175, %v979, 0
  %v988 = vsel %vm175, %v981, 0
  %v990 = vsel %vm175, %v983, 0
  %v992 = vsel %vm175, %v985, 0
  %994 = vmatpush.xpose.msra.mxu0 0.0
  %995 = vmatpush.xpose.msra.mxu0 0.0
  %996 = vmatpush.xpose.msra.mxu0 0.0
  %997 = vmatpush.xpose.msra.mxu0 0.0
  %998 = vmatpush.xpose.msra.mxu0 0.0
  %999 = vmatpush.xpose.msra.mxu0 0.0
  %1000 = vmatpush.xpose.msra.mxu0 0.0
  %1001 = vmatpush.xpose.msra.mxu0 0.0
  %1002 = vmatpush.xpose.msra.mxu0 0.0
  %1003 = vmatpush.xpose.msra.mxu0 0.0
  %1004 = vmatpush.xpose.msra.mxu0 0.0
  %1005 = vmatpush.xpose.msra.mxu0 0.0
  %1006 = vmatpush.xpose.msra.mxu0 0.0
  %1007 = vmatpush.xpose.msra.mxu0 0.0
  %1008 = vmatpush.xpose.msra.mxu0 %v992
  %1009 = vmatpush.xpose.msra.mxu0 %v990
  %1010 = vmatmul.f32.gmra.mxu0 %v986
  %v1011 = vpop.f32.mrf.mxu0
  %v1012 = vadd.f32 %v163, %v1011
  %1013 = vmatmul.f32.gmra.mxu0 %v988
  %v1014 = vpop.f32.mrf.mxu0
  %v1015 = vadd.f32 %v164, %v1014
  %1016 = vdwg.mxu0
  %1017 = vrot.lane.b32.xlu0 %v126, 120
  %v1018 = vpop.permute.xlu0 %1017
  %1019 = vrot.lane.b32.xlu0 %v129, 120
  %v1020 = vpop.permute.xlu0 %1019
  %1021 = vrot.lane.b32.xlu0 %v126, 88
  %v1022 = vpop.permute.xlu0 %1021
  %1023 = vrot.lane.b32.xlu0 %v129, 88
  %v1024 = vpop.permute.xlu0 %1023
  %v1025 = vsel %vm175, %v1018, 0
  %v1027 = vsel %vm175, %v1020, 0
  %v1029 = vsel %vm175, %v1022, 0
  %v1031 = vsel %vm175, %v1024, 0
  %1033 = vmatpush.xpose.msra.mxu0 0.0
  %1034 = vmatpush.xpose.msra.mxu0 0.0
  %1035 = vmatpush.xpose.msra.mxu0 0.0
  %1036 = vmatpush.xpose.msra.mxu0 0.0
  %1037 = vmatpush.xpose.msra.mxu0 0.0
  %1038 = vmatpush.xpose.msra.mxu0 0.0
  %1039 = vmatpush.xpose.msra.mxu0 0.0
  %1040 = vmatpush.xpose.msra.mxu0 0.0
  %1041 = vmatpush.xpose.msra.mxu0 0.0
  %1042 = vmatpush.xpose.msra.mxu0 0.0
  %1043 = vmatpush.xpose.msra.mxu0 0.0
  %1044 = vmatpush.xpose.msra.mxu0 0.0
  %1045 = vmatpush.xpose.msra.mxu0 0.0
  %1046 = vmatpush.xpose.msra.mxu0 0.0
  %1047 = vmatpush.xpose.msra.mxu0 %v1031
  %1048 = vmatpush.xpose.msra.mxu0 %v1029
  %1049 = vmatmul.f32.gmra.mxu0 %v1025
  %v1050 = vpop.f32.mrf.mxu0
  %v1051 = vadd.f32 %v163, %v1050
  %1052 = vmatmul.f32.gmra.mxu0 %v1027
  %v1053 = vpop.f32.mrf.mxu0
  %v1054 = vadd.f32 %v164, %v1053
  %1055 = vdwg.mxu0
  %1056 = vrot.lane.b32.xlu0 %v132, 120
  %v1057 = vpop.permute.xlu0 %1056
  %1058 = vrot.lane.b32.xlu0 %v135, 120
  %v1059 = vpop.permute.xlu0 %1058
  %1060 = vrot.lane.b32.xlu0 %v132, 88
  %v1061 = vpop.permute.xlu0 %1060
  %1062 = vrot.lane.b32.xlu0 %v135, 88
  %v1063 = vpop.permute.xlu0 %1062
  %v1064 = vsel %vm175, %v1057, 0
  %v1066 = vsel %vm175, %v1059, 0
  %v1068 = vsel %vm175, %v1061, 0
  %v1070 = vsel %vm175, %v1063, 0
  %1072 = vmatpush.xpose.msra.mxu0 0.0
  %1073 = vmatpush.xpose.msra.mxu0 0.0
  %1074 = vmatpush.xpose.msra.mxu0 0.0
  %1075 = vmatpush.xpose.msra.mxu0 0.0
  %1076 = vmatpush.xpose.msra.mxu0 0.0
  %1077 = vmatpush.xpose.msra.mxu0 0.0
  %1078 = vmatpush.xpose.msra.mxu0 0.0
  %1079 = vmatpush.xpose.msra.mxu0 0.0
  %1080 = vmatpush.xpose.msra.mxu0 0.0
  %1081 = vmatpush.xpose.msra.mxu0 0.0
  %1082 = vmatpush.xpose.msra.mxu0 0.0
  %1083 = vmatpush.xpose.msra.mxu0 0.0
  %1084 = vmatpush.xpose.msra.mxu0 0.0
  %1085 = vmatpush.xpose.msra.mxu0 0.0
  %1086 = vmatpush.xpose.msra.mxu0 %v1070
  %1087 = vmatpush.xpose.msra.mxu0 %v1068
  %1088 = vmatmul.f32.gmra.mxu0 %v1064
  %v1089 = vpop.f32.mrf.mxu0
  %v1090 = vadd.f32 %v163, %v1089
  %1091 = vmatmul.f32.gmra.mxu0 %v1066
  %v1092 = vpop.f32.mrf.mxu0
  %v1093 = vadd.f32 %v164, %v1092
  %1094 = vdwg.mxu0
  %1095 = vrot.lane.b32.xlu0 %v138, 120
  %v1096 = vpop.permute.xlu0 %1095
  %1097 = vrot.lane.b32.xlu0 %v141, 120
  %v1098 = vpop.permute.xlu0 %1097
  %1099 = vrot.lane.b32.xlu0 %v138, 88
  %v1100 = vpop.permute.xlu0 %1099
  %1101 = vrot.lane.b32.xlu0 %v141, 88
  %v1102 = vpop.permute.xlu0 %1101
  %v1103 = vsel %vm175, %v1096, 0
  %v1105 = vsel %vm175, %v1098, 0
  %v1107 = vsel %vm175, %v1100, 0
  %v1109 = vsel %vm175, %v1102, 0
  %1111 = vmatpush.xpose.msra.mxu0 0.0
  %1112 = vmatpush.xpose.msra.mxu0 0.0
  %1113 = vmatpush.xpose.msra.mxu0 0.0
  %1114 = vmatpush.xpose.msra.mxu0 0.0
  %1115 = vmatpush.xpose.msra.mxu0 0.0
  %1116 = vmatpush.xpose.msra.mxu0 0.0
  %1117 = vmatpush.xpose.msra.mxu0 0.0
  %1118 = vmatpush.xpose.msra.mxu0 0.0
  %1119 = vmatpush.xpose.msra.mxu0 0.0
  %1120 = vmatpush.xpose.msra.mxu0 0.0
  %1121 = vmatpush.xpose.msra.mxu0 0.0
  %1122 = vmatpush.xpose.msra.mxu0 0.0
  %1123 = vmatpush.xpose.msra.mxu0 0.0
  %1124 = vmatpush.xpose.msra.mxu0 0.0
  %1125 = vmatpush.xpose.msra.mxu0 %v1109
  %1126 = vmatpush.xpose.msra.mxu0 %v1107
  %1127 = vmatmul.f32.gmra.mxu0 %v1103
  %v1128 = vpop.f32.mrf.mxu0
  %v1129 = vadd.f32 %v163, %v1128
  %1130 = vmatmul.f32.gmra.mxu0 %v1105
  %v1131 = vpop.f32.mrf.mxu0
  %v1132 = vadd.f32 %v164, %v1131
  %1133 = vdwg.mxu0
  %1134 = vrot.lane.b32.xlu0 %v144, 120
  %v1135 = vpop.permute.xlu0 %1134
  %1136 = vrot.lane.b32.xlu0 %v147, 120
  %v1137 = vpop.permute.xlu0 %1136
  %1138 = vrot.lane.b32.xlu0 %v144, 88
  %v1139 = vpop.permute.xlu0 %1138
  %1140 = vrot.lane.b32.xlu0 %v147, 88
  %v1141 = vpop.permute.xlu0 %1140
  %v1142 = vsel %vm175, %v1135, 0
  %v1144 = vsel %vm175, %v1137, 0
  %v1146 = vsel %vm175, %v1139, 0
  %v1148 = vsel %vm175, %v1141, 0
  %1150 = vmatpush.xpose.msra.mxu0 0.0
  %1151 = vmatpush.xpose.msra.mxu0 0.0
  %1152 = vmatpush.xpose.msra.mxu0 0.0
  %1153 = vmatpush.xpose.msra.mxu0 0.0
  %1154 = vmatpush.xpose.msra.mxu0 0.0
  %1155 = vmatpush.xpose.msra.mxu0 0.0
  %1156 = vmatpush.xpose.msra.mxu0 0.0
  %1157 = vmatpush.xpose.msra.mxu0 0.0
  %1158 = vmatpush.xpose.msra.mxu0 0.0
  %1159 = vmatpush.xpose.msra.mxu0 0.0
  %1160 = vmatpush.xpose.msra.mxu0 0.0
  %1161 = vmatpush.xpose.msra.mxu0 0.0
  %1162 = vmatpush.xpose.msra.mxu0 0.0
  %1163 = vmatpush.xpose.msra.mxu0 0.0
  %1164 = vmatpush.xpose.msra.mxu0 %v1148
  %1165 = vmatpush.xpose.msra.mxu0 %v1146
  %1166 = vmatmul.f32.gmra.mxu0 %v1142
  %v1167 = vpop.f32.mrf.mxu0
  %v1168 = vadd.f32 %v163, %v1167
  %1169 = vmatmul.f32.gmra.mxu0 %v1144
  %v1170 = vpop.f32.mrf.mxu0
  %v1171 = vadd.f32 %v164, %v1170
  %1172 = vdwg.mxu0
  %1173 = vrot.lane.b32.xlu0 %v150, 120
  %v1174 = vpop.permute.xlu0 %1173
  %1175 = vrot.lane.b32.xlu0 %v153, 120
  %v1176 = vpop.permute.xlu0 %1175
  %1177 = vrot.lane.b32.xlu0 %v150, 88
  %v1178 = vpop.permute.xlu0 %1177
  %1179 = vrot.lane.b32.xlu0 %v153, 88
  %v1180 = vpop.permute.xlu0 %1179
  %v1181 = vsel %vm175, %v1174, 0
  %v1183 = vsel %vm175, %v1176, 0
  %v1185 = vsel %vm175, %v1178, 0
  %v1187 = vsel %vm175, %v1180, 0
  %1189 = vmatpush.xpose.msra.mxu0 0.0
  %1190 = vmatpush.xpose.msra.mxu0 0.0
  %1191 = vmatpush.xpose.msra.mxu0 0.0
  %1192 = vmatpush.xpose.msra.mxu0 0.0
  %1193 = vmatpush.xpose.msra.mxu0 0.0
  %1194 = vmatpush.xpose.msra.mxu0 0.0
  %1195 = vmatpush.xpose.msra.mxu0 0.0
  %1196 = vmatpush.xpose.msra.mxu0 0.0
  %1197 = vmatpush.xpose.msra.mxu0 0.0
  %1198 = vmatpush.xpose.msra.mxu0 0.0
  %1199 = vmatpush.xpose.msra.mxu0 0.0
  %1200 = vmatpush.xpose.msra.mxu0 0.0
  %1201 = vmatpush.xpose.msra.mxu0 0.0
  %1202 = vmatpush.xpose.msra.mxu0 0.0
  %1203 = vmatpush.xpose.msra.mxu0 %v1187
  %1204 = vmatpush.xpose.msra.mxu0 %v1185
  %1205 = vmatmul.f32.gmra.mxu0 %v1181
  %v1206 = vpop.f32.mrf.mxu0
  %v1207 = vadd.f32 %v163, %v1206
  %1208 = vmatmul.f32.gmra.mxu0 %v1183
  %v1209 = vpop.f32.mrf.mxu0
  %v1210 = vadd.f32 %v164, %v1209
  %1211 = vdwg.mxu0
  %1212 = vrot.lane.b32.xlu0 %v156, 120
  %v1213 = vpop.permute.xlu0 %1212
  %1214 = vrot.lane.b32.xlu0 %v159, 120
  %v1215 = vpop.permute.xlu0 %1214
  %1216 = vrot.lane.b32.xlu0 %v156, 88
  %v1217 = vpop.permute.xlu0 %1216
  %1218 = vrot.lane.b32.xlu0 %v159, 88
  %v1219 = vpop.permute.xlu0 %1218
  %v1220 = vsel %vm175, %v1213, 0
  %v1222 = vsel %vm175, %v1215, 0
  %v1224 = vsel %vm175, %v1217, 0
  %v1226 = vsel %vm175, %v1219, 0
  %1228 = vmatpush.xpose.msra.mxu0 0.0
  %1229 = vmatpush.xpose.msra.mxu0 0.0
  %1230 = vmatpush.xpose.msra.mxu0 0.0
  %1231 = vmatpush.xpose.msra.mxu0 0.0
  %1232 = vmatpush.xpose.msra.mxu0 0.0
  %1233 = vmatpush.xpose.msra.mxu0 0.0
  %1234 = vmatpush.xpose.msra.mxu0 0.0
  %1235 = vmatpush.xpose.msra.mxu0 0.0
  %1236 = vmatpush.xpose.msra.mxu0 0.0
  %1237 = vmatpush.xpose.msra.mxu0 0.0
  %1238 = vmatpush.xpose.msra.mxu0 0.0
  %1239 = vmatpush.xpose.msra.mxu0 0.0
  %1240 = vmatpush.xpose.msra.mxu0 0.0
  %1241 = vmatpush.xpose.msra.mxu0 0.0
  %1242 = vmatpush.xpose.msra.mxu0 %v1226
  %1243 = vmatpush.xpose.msra.mxu0 %v1224
  %1244 = vmatmul.f32.gmra.mxu0 %v1220
  %v1245 = vpop.f32.mrf.mxu0
  %v1246 = vadd.f32 %v163, %v1245
  %1247 = vmatmul.f32.gmra.mxu0 %v1222
  %v1248 = vpop.f32.mrf.mxu0
  %v1249 = vadd.f32 %v164, %v1248
  %1250 = vdwg.mxu0
  %v1251 = vsel %vm466, %v973, -inf
  %1252 = vmax.xlane.f32.xlu0 %v1251
  %v1253 = vpop.xlane.xlu0 %1252
  %v1254 = vsel %vm466, %v976, -inf
  %1255 = vmax.xlane.f32.xlu0 %v1254
  %v1256 = vpop.xlane.xlu0 %1255
  %v1257 = vsel %vm466, %v1012, -inf
  %1258 = vmax.xlane.f32.xlu0 %v1257
  %v1259 = vpop.xlane.xlu0 %1258
  %v1260 = vsel %vm466, %v1015, -inf
  %1261 = vmax.xlane.f32.xlu0 %v1260
  %v1262 = vpop.xlane.xlu0 %1261
  %v1263 = vsel %vm466, %v1051, -inf
  %1264 = vmax.xlane.f32.xlu0 %v1263
  %v1265 = vpop.xlane.xlu0 %1264
  %v1266 = vsel %vm466, %v1054, -inf
  %1267 = vmax.xlane.f32.xlu0 %v1266
  %v1268 = vpop.xlane.xlu0 %1267
  %v1269 = vsel %vm466, %v1090, -inf
  %1270 = vmax.xlane.f32.xlu0 %v1269
  %v1271 = vpop.xlane.xlu0 %1270
  %v1272 = vsel %vm466, %v1093, -inf
  %1273 = vmax.xlane.f32.xlu0 %v1272
  %v1274 = vpop.xlane.xlu0 %1273
  %v1275 = vsel %vm466, %v1129, -inf
  %1276 = vmax.xlane.f32.xlu0 %v1275
  %v1277 = vpop.xlane.xlu0 %1276
  %v1278 = vsel %vm466, %v1132, -inf
  %1279 = vmax.xlane.f32.xlu0 %v1278
  %v1280 = vpop.xlane.xlu0 %1279
  %v1281 = vsel %vm466, %v1168, -inf
  %1282 = vmax.xlane.f32.xlu0 %v1281
  %v1283 = vpop.xlane.xlu0 %1282
  %v1284 = vsel %vm466, %v1171, -inf
  %1285 = vmax.xlane.f32.xlu0 %v1284
  %v1286 = vpop.xlane.xlu0 %1285
  %v1287 = vsel %vm466, %v1207, -inf
  %1288 = vmax.xlane.f32.xlu0 %v1287
  %v1289 = vpop.xlane.xlu0 %1288
  %v1290 = vsel %vm466, %v1210, -inf
  %1291 = vmax.xlane.f32.xlu0 %v1290
  %v1292 = vpop.xlane.xlu0 %1291
  %v1293 = vsel %vm466, %v1246, -inf
  %1294 = vmax.xlane.f32.xlu0 %v1293
  %v1295 = vpop.xlane.xlu0 %1294
  %v1296 = vsel %vm466, %v1249, -inf
  %1297 = vmax.xlane.f32.xlu0 %v1296
  %v1298 = vpop.xlane.xlu0 %1297
  %v1299 = vsub.f32 %v973, %v1253
  %v1300 = vsub.f32 %v976, %v1256
  %v1301 = vsub.f32 %v1012, %v1259
  %v1302 = vsub.f32 %v1015, %v1262
  %v1303 = vsub.f32 %v1051, %v1265
  %v1304 = vsub.f32 %v1054, %v1268
  %v1305 = vsub.f32 %v1090, %v1271
  %v1306 = vsub.f32 %v1093, %v1274
  %v1307 = vsub.f32 %v1129, %v1277
  %v1308 = vsub.f32 %v1132, %v1280
  %v1309 = vsub.f32 %v1168, %v1283
  %v1310 = vsub.f32 %v1171, %v1286
  %v1311 = vsub.f32 %v1207, %v1289
  %v1312 = vsub.f32 %v1210, %v1292
  %v1313 = vsub.f32 %v1246, %v1295
  %v1314 = vsub.f32 %v1249, %v1298
  %v1315 = vmul.f32 %v1299, 1.442695
  %v1316 = vpow.pop %v1315
  %v1317 = vmul.f32 %v1300, 1.442695
  %v1318 = vpow.pop %v1317
  %v1319 = vmul.f32 %v1301, 1.442695
  %v1320 = vpow.pop %v1319
  %v1321 = vmul.f32 %v1302, 1.442695
  %v1322 = vpow.pop %v1321
  %v1323 = vmul.f32 %v1303, 1.442695
  %v1324 = vpow.pop %v1323
  %v1325 = vmul.f32 %v1304, 1.442695
  %v1326 = vpow.pop %v1325
  %v1327 = vmul.f32 %v1305, 1.442695
  %v1328 = vpow.pop %v1327
  %v1329 = vmul.f32 %v1306, 1.442695
  %v1330 = vpow.pop %v1329
  %v1331 = vmul.f32 %v1307, 1.442695
  %v1332 = vpow.pop %v1331
  %v1333 = vmul.f32 %v1308, 1.442695
  %v1334 = vpow.pop %v1333
  %v1335 = vmul.f32 %v1309, 1.442695
  %v1336 = vpow.pop %v1335
  %v1337 = vmul.f32 %v1310, 1.442695
  %v1338 = vpow.pop %v1337
  %v1339 = vmul.f32 %v1311, 1.442695
  %v1340 = vpow.pop %v1339
  %v1341 = vmul.f32 %v1312, 1.442695
  %v1342 = vpow.pop %v1341
  %v1343 = vmul.f32 %v1313, 1.442695
  %v1344 = vpow.pop %v1343
  %v1345 = vmul.f32 %v1314, 1.442695
  %v1346 = vpow.pop %v1345
  %v1347 = vsel %vm466, %v1316, 0.0
  %1348 = vadd.xlane.f32.xlu0 %v1347
  %v1349 = vpop.xlane.xlu0 %1348
  %v1350 = vsel %vm466, %v1318, 0.0
  %1351 = vadd.xlane.f32.xlu0 %v1350
  %v1352 = vpop.xlane.xlu0 %1351
  %v1353 = vsel %vm466, %v1320, 0.0
  %1354 = vadd.xlane.f32.xlu0 %v1353
  %v1355 = vpop.xlane.xlu0 %1354
  %v1356 = vsel %vm466, %v1322, 0.0
  %1357 = vadd.xlane.f32.xlu0 %v1356
  %v1358 = vpop.xlane.xlu0 %1357
  %v1359 = vsel %vm466, %v1324, 0.0
  %1360 = vadd.xlane.f32.xlu0 %v1359
  %v1361 = vpop.xlane.xlu0 %1360
  %v1362 = vsel %vm466, %v1326, 0.0
  %1363 = vadd.xlane.f32.xlu0 %v1362
  %v1364 = vpop.xlane.xlu0 %1363
  %v1365 = vsel %vm466, %v1328, 0.0
  %1366 = vadd.xlane.f32.xlu0 %v1365
  %v1367 = vpop.xlane.xlu0 %1366
  %v1368 = vsel %vm466, %v1330, 0.0
  %1369 = vadd.xlane.f32.xlu0 %v1368
  %v1370 = vpop.xlane.xlu0 %1369
  %v1371 = vsel %vm466, %v1332, 0.0
  %1372 = vadd.xlane.f32.xlu0 %v1371
  %v1373 = vpop.xlane.xlu0 %1372
  %v1374 = vsel %vm466, %v1334, 0.0
  %1375 = vadd.xlane.f32.xlu0 %v1374
  %v1376 = vpop.xlane.xlu0 %1375
  %v1377 = vsel %vm466, %v1336, 0.0
  %1378 = vadd.xlane.f32.xlu0 %v1377
  %v1379 = vpop.xlane.xlu0 %1378
  %v1380 = vsel %vm466, %v1338, 0.0
  %1381 = vadd.xlane.f32.xlu0 %v1380
  %v1382 = vpop.xlane.xlu0 %1381
  %v1383 = vsel %vm466, %v1340, 0.0
  %1384 = vadd.xlane.f32.xlu0 %v1383
  %v1385 = vpop.xlane.xlu0 %1384
  %v1386 = vsel %vm466, %v1342, 0.0
  %1387 = vadd.xlane.f32.xlu0 %v1386
  %v1388 = vpop.xlane.xlu0 %1387
  %v1389 = vsel %vm466, %v1344, 0.0
  %1390 = vadd.xlane.f32.xlu0 %v1389
  %v1391 = vpop.xlane.xlu0 %1390
  %v1392 = vsel %vm466, %v1346, 0.0
  %1393 = vadd.xlane.f32.xlu0 %v1392
  %v1394 = vpop.xlane.xlu0 %1393
  %v1395 = vrcp.pop %v1349
  %v1396 = vrcp.pop %v1352
  %v1397 = vrcp.pop %v1355
  %v1398 = vrcp.pop %v1358
  %v1399 = vrcp.pop %v1361
  %v1400 = vrcp.pop %v1364
  %v1401 = vrcp.pop %v1367
  %v1402 = vrcp.pop %v1370
  %v1403 = vrcp.pop %v1373
  %v1404 = vrcp.pop %v1376
  %v1405 = vrcp.pop %v1379
  %v1406 = vrcp.pop %v1382
  %v1407 = vrcp.pop %v1385
  %v1408 = vrcp.pop %v1388
  %v1409 = vrcp.pop %v1391
  %v1410 = vrcp.pop %v1394
  %v1411 = vmul.f32 %v1316, %v1395
  %v1412 = vmul.f32 %v1318, %v1396
  %v1413 = vmul.f32 %v1320, %v1397
  %v1414 = vmul.f32 %v1322, %v1398
  %v1415 = vmul.f32 %v1324, %v1399
  %v1416 = vmul.f32 %v1326, %v1400
  %v1417 = vmul.f32 %v1328, %v1401
  %v1418 = vmul.f32 %v1330, %v1402
  %v1419 = vmul.f32 %v1332, %v1403
  %v1420 = vmul.f32 %v1334, %v1404
  %v1421 = vmul.f32 %v1336, %v1405
  %v1422 = vmul.f32 %v1338, %v1406
  %v1423 = vmul.f32 %v1340, %v1407
  %v1424 = vmul.f32 %v1342, %v1408
  %v1425 = vmul.f32 %v1344, %v1409
  %v1426 = vmul.f32 %v1346, %v1410
  %1427 = vrot.lane.b32.xlu0 %v114, 56
  %v1428 = vpop.permute.xlu0 %1427
  %1429 = vrot.lane.b32.xlu0 %v117, 56
  %v1430 = vpop.permute.xlu0 %1429
  %v1434 = vsel %vm466, %v1411, 0
  %v1437 = vsel %vm466, %v1412, 0
  %1439 = vmatpush.msra.mxu0 0.0
  %1440 = vmatpush.msra.mxu0 0.0
  %1441 = vmatpush.msra.mxu0 0.0
  %1442 = vmatpush.msra.mxu0 0.0
  %1443 = vmatpush.msra.mxu0 0.0
  %1444 = vmatpush.msra.mxu0 0.0
  %1445 = vmatpush.msra.mxu0 0.0
  %1446 = vmatpush.msra.mxu0 0.0
  %1447 = vmatpush.msra.mxu0 0.0
  %1448 = vmatpush.msra.mxu0 0.0
  %1449 = vmatpush.msra.mxu0 0.0
  %1450 = vmatpush.msra.mxu0 0.0
  %1451 = vmatpush.msra.mxu0 0.0
  %1452 = vmatpush.msra.mxu0 0.0
  %1453 = vmatpush.msra.mxu0 %v1430
  %1454 = vmatpush.msra.mxu0 %v1428
  %1455 = vmatmul.f32.gmra.mxu0 %v1434
  %v1456 = vpop.f32.mrf.mxu0
  %v1457 = vadd.f32 0.0, %v1456
  %1458 = vmatmul.f32.gmra.mxu0 %v1437
  %v1459 = vpop.f32.mrf.mxu0
  %v1460 = vadd.f32 0.0, %v1459
  %1461 = vdwg.mxu0
  %1462 = vrot.lane.b32.xlu0 %v120, 56
  %v1463 = vpop.permute.xlu0 %1462
  %1464 = vrot.lane.b32.xlu0 %v123, 56
  %v1465 = vpop.permute.xlu0 %1464
  %v1469 = vsel %vm466, %v1413, 0
  %v1472 = vsel %vm466, %v1414, 0
  %1474 = vmatpush.msra.mxu0 0.0
  %1475 = vmatpush.msra.mxu0 0.0
  %1476 = vmatpush.msra.mxu0 0.0
  %1477 = vmatpush.msra.mxu0 0.0
  %1478 = vmatpush.msra.mxu0 0.0
  %1479 = vmatpush.msra.mxu0 0.0
  %1480 = vmatpush.msra.mxu0 0.0
  %1481 = vmatpush.msra.mxu0 0.0
  %1482 = vmatpush.msra.mxu0 0.0
  %1483 = vmatpush.msra.mxu0 0.0
  %1484 = vmatpush.msra.mxu0 0.0
  %1485 = vmatpush.msra.mxu0 0.0
  %1486 = vmatpush.msra.mxu0 0.0
  %1487 = vmatpush.msra.mxu0 0.0
  %1488 = vmatpush.msra.mxu0 %v1465
  %1489 = vmatpush.msra.mxu0 %v1463
  %1490 = vmatmul.f32.gmra.mxu0 %v1469
  %v1491 = vpop.f32.mrf.mxu0
  %v1492 = vadd.f32 0.0, %v1491
  %1493 = vmatmul.f32.gmra.mxu0 %v1472
  %v1494 = vpop.f32.mrf.mxu0
  %v1495 = vadd.f32 0.0, %v1494
  %1496 = vdwg.mxu0
  %1497 = vrot.lane.b32.xlu0 %v126, 56
  %v1498 = vpop.permute.xlu0 %1497
  %1499 = vrot.lane.b32.xlu0 %v129, 56
  %v1500 = vpop.permute.xlu0 %1499
  %v1504 = vsel %vm466, %v1415, 0
  %v1507 = vsel %vm466, %v1416, 0
  %1509 = vmatpush.msra.mxu0 0.0
  %1510 = vmatpush.msra.mxu0 0.0
  %1511 = vmatpush.msra.mxu0 0.0
  %1512 = vmatpush.msra.mxu0 0.0
  %1513 = vmatpush.msra.mxu0 0.0
  %1514 = vmatpush.msra.mxu0 0.0
  %1515 = vmatpush.msra.mxu0 0.0
  %1516 = vmatpush.msra.mxu0 0.0
  %1517 = vmatpush.msra.mxu0 0.0
  %1518 = vmatpush.msra.mxu0 0.0
  %1519 = vmatpush.msra.mxu0 0.0
  %1520 = vmatpush.msra.mxu0 0.0
  %1521 = vmatpush.msra.mxu0 0.0
  %1522 = vmatpush.msra.mxu0 0.0
  %1523 = vmatpush.msra.mxu0 %v1500
  %1524 = vmatpush.msra.mxu0 %v1498
  %1525 = vmatmul.f32.gmra.mxu0 %v1504
  %v1526 = vpop.f32.mrf.mxu0
  %v1527 = vadd.f32 0.0, %v1526
  %1528 = vmatmul.f32.gmra.mxu0 %v1507
  %v1529 = vpop.f32.mrf.mxu0
  %v1530 = vadd.f32 0.0, %v1529
  %1531 = vdwg.mxu0
  %1532 = vrot.lane.b32.xlu0 %v132, 56
  %v1533 = vpop.permute.xlu0 %1532
  %1534 = vrot.lane.b32.xlu0 %v135, 56
  %v1535 = vpop.permute.xlu0 %1534
  %v1539 = vsel %vm466, %v1417, 0
  %v1542 = vsel %vm466, %v1418, 0
  %1544 = vmatpush.msra.mxu0 0.0
  %1545 = vmatpush.msra.mxu0 0.0
  %1546 = vmatpush.msra.mxu0 0.0
  %1547 = vmatpush.msra.mxu0 0.0
  %1548 = vmatpush.msra.mxu0 0.0
  %1549 = vmatpush.msra.mxu0 0.0
  %1550 = vmatpush.msra.mxu0 0.0
  %1551 = vmatpush.msra.mxu0 0.0
  %1552 = vmatpush.msra.mxu0 0.0
  %1553 = vmatpush.msra.mxu0 0.0
  %1554 = vmatpush.msra.mxu0 0.0
  %1555 = vmatpush.msra.mxu0 0.0
  %1556 = vmatpush.msra.mxu0 0.0
  %1557 = vmatpush.msra.mxu0 0.0
  %1558 = vmatpush.msra.mxu0 %v1535
  %1559 = vmatpush.msra.mxu0 %v1533
  %1560 = vmatmul.f32.gmra.mxu0 %v1539
  %v1561 = vpop.f32.mrf.mxu0
  %v1562 = vadd.f32 0.0, %v1561
  %1563 = vmatmul.f32.gmra.mxu0 %v1542
  %v1564 = vpop.f32.mrf.mxu0
  %v1565 = vadd.f32 0.0, %v1564
  %1566 = vdwg.mxu0
  %1567 = vrot.lane.b32.xlu0 %v138, 56
  %v1568 = vpop.permute.xlu0 %1567
  %1569 = vrot.lane.b32.xlu0 %v141, 56
  %v1570 = vpop.permute.xlu0 %1569
  %v1574 = vsel %vm466, %v1419, 0
  %v1577 = vsel %vm466, %v1420, 0
  %1579 = vmatpush.msra.mxu0 0.0
  %1580 = vmatpush.msra.mxu0 0.0
  %1581 = vmatpush.msra.mxu0 0.0
  %1582 = vmatpush.msra.mxu0 0.0
  %1583 = vmatpush.msra.mxu0 0.0
  %1584 = vmatpush.msra.mxu0 0.0
  %1585 = vmatpush.msra.mxu0 0.0
  %1586 = vmatpush.msra.mxu0 0.0
  %1587 = vmatpush.msra.mxu0 0.0
  %1588 = vmatpush.msra.mxu0 0.0
  %1589 = vmatpush.msra.mxu0 0.0
  %1590 = vmatpush.msra.mxu0 0.0
  %1591 = vmatpush.msra.mxu0 0.0
  %1592 = vmatpush.msra.mxu0 0.0
  %1593 = vmatpush.msra.mxu0 %v1570
  %1594 = vmatpush.msra.mxu0 %v1568
  %1595 = vmatmul.f32.gmra.mxu0 %v1574
  %v1596 = vpop.f32.mrf.mxu0
  %v1597 = vadd.f32 0.0, %v1596
  %1598 = vmatmul.f32.gmra.mxu0 %v1577
  %v1599 = vpop.f32.mrf.mxu0
  %v1600 = vadd.f32 0.0, %v1599
  %1601 = vdwg.mxu0
  %1602 = vrot.lane.b32.xlu0 %v144, 56
  %v1603 = vpop.permute.xlu0 %1602
  %1604 = vrot.lane.b32.xlu0 %v147, 56
  %v1605 = vpop.permute.xlu0 %1604
  %v1609 = vsel %vm466, %v1421, 0
  %v1612 = vsel %vm466, %v1422, 0
  %1614 = vmatpush.msra.mxu0 0.0
  %1615 = vmatpush.msra.mxu0 0.0
  %1616 = vmatpush.msra.mxu0 0.0
  %1617 = vmatpush.msra.mxu0 0.0
  %1618 = vmatpush.msra.mxu0 0.0
  %1619 = vmatpush.msra.mxu0 0.0
  %1620 = vmatpush.msra.mxu0 0.0
  %1621 = vmatpush.msra.mxu0 0.0
  %1622 = vmatpush.msra.mxu0 0.0
  %1623 = vmatpush.msra.mxu0 0.0
  %1624 = vmatpush.msra.mxu0 0.0
  %1625 = vmatpush.msra.mxu0 0.0
  %1626 = vmatpush.msra.mxu0 0.0
  %1627 = vmatpush.msra.mxu0 0.0
  %1628 = vmatpush.msra.mxu0 %v1605
  %1629 = vmatpush.msra.mxu0 %v1603
  %1630 = vmatmul.f32.gmra.mxu0 %v1609
  %v1631 = vpop.f32.mrf.mxu0
  %v1632 = vadd.f32 0.0, %v1631
  %1633 = vmatmul.f32.gmra.mxu0 %v1612
  %v1634 = vpop.f32.mrf.mxu0
  %v1635 = vadd.f32 0.0, %v1634
  %1636 = vdwg.mxu0
  %1637 = vrot.lane.b32.xlu0 %v150, 56
  %v1638 = vpop.permute.xlu0 %1637
  %1639 = vrot.lane.b32.xlu0 %v153, 56
  %v1640 = vpop.permute.xlu0 %1639
  %v1644 = vsel %vm466, %v1423, 0
  %v1647 = vsel %vm466, %v1424, 0
  %1649 = vmatpush.msra.mxu0 0.0
  %1650 = vmatpush.msra.mxu0 0.0
  %1651 = vmatpush.msra.mxu0 0.0
  %1652 = vmatpush.msra.mxu0 0.0
  %1653 = vmatpush.msra.mxu0 0.0
  %1654 = vmatpush.msra.mxu0 0.0
  %1655 = vmatpush.msra.mxu0 0.0
  %1656 = vmatpush.msra.mxu0 0.0
  %1657 = vmatpush.msra.mxu0 0.0
  %1658 = vmatpush.msra.mxu0 0.0
  %1659 = vmatpush.msra.mxu0 0.0
  %1660 = vmatpush.msra.mxu0 0.0
  %1661 = vmatpush.msra.mxu0 0.0
  %1662 = vmatpush.msra.mxu0 0.0
  %1663 = vmatpush.msra.mxu0 %v1640
  %1664 = vmatpush.msra.mxu0 %v1638
  %1665 = vmatmul.f32.gmra.mxu0 %v1644
  %v1666 = vpop.f32.mrf.mxu0
  %v1667 = vadd.f32 0.0, %v1666
  %1668 = vmatmul.f32.gmra.mxu0 %v1647
  %v1669 = vpop.f32.mrf.mxu0
  %v1670 = vadd.f32 0.0, %v1669
  %1671 = vdwg.mxu0
  %1672 = vrot.lane.b32.xlu0 %v156, 56
  %v1673 = vpop.permute.xlu0 %1672
  %1674 = vrot.lane.b32.xlu0 %v159, 56
  %v1675 = vpop.permute.xlu0 %1674
  %v1679 = vsel %vm466, %v1425, 0
  %v1682 = vsel %vm466, %v1426, 0
  %1684 = vmatpush.msra.mxu0 0.0
  %1685 = vmatpush.msra.mxu0 0.0
  %1686 = vmatpush.msra.mxu0 0.0
  %1687 = vmatpush.msra.mxu0 0.0
  %1688 = vmatpush.msra.mxu0 0.0
  %1689 = vmatpush.msra.mxu0 0.0
  %1690 = vmatpush.msra.mxu0 0.0
  %1691 = vmatpush.msra.mxu0 0.0
  %1692 = vmatpush.msra.mxu0 0.0
  %1693 = vmatpush.msra.mxu0 0.0
  %1694 = vmatpush.msra.mxu0 0.0
  %1695 = vmatpush.msra.mxu0 0.0
  %1696 = vmatpush.msra.mxu0 0.0
  %1697 = vmatpush.msra.mxu0 0.0
  %1698 = vmatpush.msra.mxu0 %v1675
  %1699 = vmatpush.msra.mxu0 %v1673
  %1700 = vmatmul.f32.gmra.mxu0 %v1679
  %v1701 = vpop.f32.mrf.mxu0
  %v1702 = vadd.f32 0.0, %v1701
  %1703 = vmatmul.f32.gmra.mxu0 %v1682
  %v1704 = vpop.f32.mrf.mxu0
  %v1705 = vadd.f32 0.0, %v1704
  %1706 = vdwg.mxu0
  %1723 = vrot.lane.b32.xlu0 %v1457, 8
  %v1724 = vpop.permute.xlu0 %1723
  %1725 = vrot.lane.b32.xlu0 %v1460, 8
  %v1726 = vpop.permute.xlu0 %1725
  %1727 = vrot.lane.b32.xlu0 %v1492, 8
  %v1728 = vpop.permute.xlu0 %1727
  %1729 = vrot.lane.b32.xlu0 %v1495, 8
  %v1730 = vpop.permute.xlu0 %1729
  %1731 = vrot.lane.b32.xlu0 %v1527, 8
  %v1732 = vpop.permute.xlu0 %1731
  %1733 = vrot.lane.b32.xlu0 %v1530, 8
  %v1734 = vpop.permute.xlu0 %1733
  %1735 = vrot.lane.b32.xlu0 %v1562, 8
  %v1736 = vpop.permute.xlu0 %1735
  %1737 = vrot.lane.b32.xlu0 %v1565, 8
  %v1738 = vpop.permute.xlu0 %1737
  %1739 = vrot.lane.b32.xlu0 %v1597, 8
  %v1740 = vpop.permute.xlu0 %1739
  %1741 = vrot.lane.b32.xlu0 %v1600, 8
  %v1742 = vpop.permute.xlu0 %1741
  %1743 = vrot.lane.b32.xlu0 %v1632, 8
  %v1744 = vpop.permute.xlu0 %1743
  %1745 = vrot.lane.b32.xlu0 %v1635, 8
  %v1746 = vpop.permute.xlu0 %1745
  %1747 = vrot.lane.b32.xlu0 %v1667, 8
  %v1748 = vpop.permute.xlu0 %1747
  %1749 = vrot.lane.b32.xlu0 %v1670, 8
  %v1750 = vpop.permute.xlu0 %1749
  %1751 = vrot.lane.b32.xlu0 %v1702, 8
  %v1752 = vpop.permute.xlu0 %1751
  %1753 = vrot.lane.b32.xlu0 %v1705, 8
  %v1754 = vpop.permute.xlu0 %1753
  %vm1771 = vcmask 130112
  %1772 = vst.msk [vmem:[#allocation2] sm:$0xff] %vm1771, %v1724
  %1773 = vst.msk [vmem:[#allocation2 + $0x8] sm:$0xff] %vm1771, %v1726
  %1774 = vst.msk [vmem:[#allocation2 + $0x10] sm:$0xff] %vm1771, %v1728
  %1775 = vst.msk [vmem:[#allocation2 + $0x18] sm:$0xff] %vm1771, %v1730
  %1776 = vst.msk [vmem:[#allocation2 + $0x20] sm:$0xff] %vm1771, %v1732
  %1777 = vst.msk [vmem:[#allocation2 + $0x28] sm:$0xff] %vm1771, %v1734
  %1778 = vst.msk [vmem:[#allocation2 + $0x30] sm:$0xff] %vm1771, %v1736
  %1779 = vst.msk [vmem:[#allocation2 + $0x38] sm:$0xff] %vm1771, %v1738
  %1780 = vst.msk [vmem:[#allocation2 + $0x40] sm:$0xff] %vm1771, %v1740
  %1781 = vst.msk [vmem:[#allocation2 + $0x48] sm:$0xff] %vm1771, %v1742
  %1782 = vst.msk [vmem:[#allocation2 + $0x50] sm:$0xff] %vm1771, %v1744
  %1783 = vst.msk [vmem:[#allocation2 + $0x58] sm:$0xff] %vm1771, %v1746
  %1784 = vst.msk [vmem:[#allocation2 + $0x60] sm:$0xff] %vm1771, %v1748
  %1785 = vst.msk [vmem:[#allocation2 + $0x68] sm:$0xff] %vm1771, %v1750
  %1786 = vst.msk [vmem:[#allocation2 + $0x70] sm:$0xff] %vm1771, %v1752
  %1787 = vst.msk [vmem:[#allocation2 + $0x78] sm:$0xff] %vm1771, %v1754
  %1788 = vrot.lane.b32.xlu0 %v114, 112
  %v1789 = vpop.permute.xlu0 %1788
  %1790 = vrot.lane.b32.xlu0 %v117, 112
  %v1791 = vpop.permute.xlu0 %1790
  %1792 = vrot.lane.b32.xlu0 %v114, 80
  %v1793 = vpop.permute.xlu0 %1792
  %1794 = vrot.lane.b32.xlu0 %v117, 80
  %v1795 = vpop.permute.xlu0 %1794
  %v1796 = vsel %vm175, %v1789, 0
  %v1798 = vsel %vm175, %v1791, 0
  %v1800 = vsel %vm175, %v1793, 0
  %v1802 = vsel %vm175, %v1795, 0
  %1804 = vmatpush.xpose.msra.mxu0 0.0
  %1805 = vmatpush.xpose.msra.mxu0 0.0
  %1806 = vmatpush.xpose.msra.mxu0 0.0
  %1807 = vmatpush.xpose.msra.mxu0 0.0
  %1808 = vmatpush.xpose.msra.mxu0 0.0
  %1809 = vmatpush.xpose.msra.mxu0 0.0
  %1810 = vmatpush.xpose.msra.mxu0 0.0
  %1811 = vmatpush.xpose.msra.mxu0 0.0
  %1812 = vmatpush.xpose.msra.mxu0 0.0
  %1813 = vmatpush.xpose.msra.mxu0 0.0
  %1814 = vmatpush.xpose.msra.mxu0 0.0
  %1815 = vmatpush.xpose.msra.mxu0 0.0
  %1816 = vmatpush.xpose.msra.mxu0 0.0
  %1817 = vmatpush.xpose.msra.mxu0 0.0
  %1818 = vmatpush.xpose.msra.mxu0 %v1802
  %1819 = vmatpush.xpose.msra.mxu0 %v1800
  %1820 = vmatmul.f32.gmra.mxu0 %v1796
  %v1821 = vpop.f32.mrf.mxu0
  %v1822 = vadd.f32 %v165, %v1821
  %1823 = vmatmul.f32.gmra.mxu0 %v1798
  %v1824 = vpop.f32.mrf.mxu0
  %v1825 = vadd.f32 %v166, %v1824
  %1826 = vdwg.mxu0
  %1827 = vrot.lane.b32.xlu0 %v120, 112
  %v1828 = vpop.permute.xlu0 %1827
  %1829 = vrot.lane.b32.xlu0 %v123, 112
  %v1830 = vpop.permute.xlu0 %1829
  %1831 = vrot.lane.b32.xlu0 %v120, 80
  %v1832 = vpop.permute.xlu0 %1831
  %1833 = vrot.lane.b32.xlu0 %v123, 80
  %v1834 = vpop.permute.xlu0 %1833
  %v1835 = vsel %vm175, %v1828, 0
  %v1837 = vsel %vm175, %v1830, 0
  %v1839 = vsel %vm175, %v1832, 0
  %v1841 = vsel %vm175, %v1834, 0
  %1843 = vmatpush.xpose.msra.mxu0 0.0
  %1844 = vmatpush.xpose.msra.mxu0 0.0
  %1845 = vmatpush.xpose.msra.mxu0 0.0
  %1846 = vmatpush.xpose.msra.mxu0 0.0
  %1847 = vmatpush.xpose.msra.mxu0 0.0
  %1848 = vmatpush.xpose.msra.mxu0 0.0
  %1849 = vmatpush.xpose.msra.mxu0 0.0
  %1850 = vmatpush.xpose.msra.mxu0 0.0
  %1851 = vmatpush.xpose.msra.mxu0 0.0
  %1852 = vmatpush.xpose.msra.mxu0 0.0
  %1853 = vmatpush.xpose.msra.mxu0 0.0
  %1854 = vmatpush.xpose.msra.mxu0 0.0
  %1855 = vmatpush.xpose.msra.mxu0 0.0
  %1856 = vmatpush.xpose.msra.mxu0 0.0
  %1857 = vmatpush.xpose.msra.mxu0 %v1841
  %1858 = vmatpush.xpose.msra.mxu0 %v1839
  %1859 = vmatmul.f32.gmra.mxu0 %v1835
  %v1860 = vpop.f32.mrf.mxu0
  %v1861 = vadd.f32 %v165, %v1860
  %1862 = vmatmul.f32.gmra.mxu0 %v1837
  %v1863 = vpop.f32.mrf.mxu0
  %v1864 = vadd.f32 %v166, %v1863
  %1865 = vdwg.mxu0
  %1866 = vrot.lane.b32.xlu0 %v126, 112
  %v1867 = vpop.permute.xlu0 %1866
  %1868 = vrot.lane.b32.xlu0 %v129, 112
  %v1869 = vpop.permute.xlu0 %1868
  %1870 = vrot.lane.b32.xlu0 %v126, 80
  %v1871 = vpop.permute.xlu0 %1870
  %1872 = vrot.lane.b32.xlu0 %v129, 80
  %v1873 = vpop.permute.xlu0 %1872
  %v1874 = vsel %vm175, %v1867, 0
  %v1876 = vsel %vm175, %v1869, 0
  %v1878 = vsel %vm175, %v1871, 0
  %v1880 = vsel %vm175, %v1873, 0
  %1882 = vmatpush.xpose.msra.mxu0 0.0
  %1883 = vmatpush.xpose.msra.mxu0 0.0
  %1884 = vmatpush.xpose.msra.mxu0 0.0
  %1885 = vmatpush.xpose.msra.mxu0 0.0
  %1886 = vmatpush.xpose.msra.mxu0 0.0
  %1887 = vmatpush.xpose.msra.mxu0 0.0
  %1888 = vmatpush.xpose.msra.mxu0 0.0
  %1889 = vmatpush.xpose.msra.mxu0 0.0
  %1890 = vmatpush.xpose.msra.mxu0 0.0
  %1891 = vmatpush.xpose.msra.mxu0 0.0
  %1892 = vmatpush.xpose.msra.mxu0 0.0
  %1893 = vmatpush.xpose.msra.mxu0 0.0
  %1894 = vmatpush.xpose.msra.mxu0 0.0
  %1895 = vmatpush.xpose.msra.mxu0 0.0
  %1896 = vmatpush.xpose.msra.mxu0 %v1880
  %1897 = vmatpush.xpose.msra.mxu0 %v1878
  %1898 = vmatmul.f32.gmra.mxu0 %v1874
  %v1899 = vpop.f32.mrf.mxu0
  %v1900 = vadd.f32 %v165, %v1899
  %1901 = vmatmul.f32.gmra.mxu0 %v1876
  %v1902 = vpop.f32.mrf.mxu0
  %v1903 = vadd.f32 %v166, %v1902
  %1904 = vdwg.mxu0
  %1905 = vrot.lane.b32.xlu0 %v132, 112
  %v1906 = vpop.permute.xlu0 %1905
  %1907 = vrot.lane.b32.xlu0 %v135, 112
  %v1908 = vpop.permute.xlu0 %1907
  %1909 = vrot.lane.b32.xlu0 %v132, 80
  %v1910 = vpop.permute.xlu0 %1909
  %1911 = vrot.lane.b32.xlu0 %v135, 80
  %v1912 = vpop.permute.xlu0 %1911
  %v1913 = vsel %vm175, %v1906, 0
  %v1915 = vsel %vm175, %v1908, 0
  %v1917 = vsel %vm175, %v1910, 0
  %v1919 = vsel %vm175, %v1912, 0
  %1921 = vmatpush.xpose.msra.mxu0 0.0
  %1922 = vmatpush.xpose.msra.mxu0 0.0
  %1923 = vmatpush.xpose.msra.mxu0 0.0
  %1924 = vmatpush.xpose.msra.mxu0 0.0
  %1925 = vmatpush.xpose.msra.mxu0 0.0
  %1926 = vmatpush.xpose.msra.mxu0 0.0
  %1927 = vmatpush.xpose.msra.mxu0 0.0
  %1928 = vmatpush.xpose.msra.mxu0 0.0
  %1929 = vmatpush.xpose.msra.mxu0 0.0
  %1930 = vmatpush.xpose.msra.mxu0 0.0
  %1931 = vmatpush.xpose.msra.mxu0 0.0
  %1932 = vmatpush.xpose.msra.mxu0 0.0
  %1933 = vmatpush.xpose.msra.mxu0 0.0
  %1934 = vmatpush.xpose.msra.mxu0 0.0
  %1935 = vmatpush.xpose.msra.mxu0 %v1919
  %1936 = vmatpush.xpose.msra.mxu0 %v1917
  %1937 = vmatmul.f32.gmra.mxu0 %v1913
  %v1938 = vpop.f32.mrf.mxu0
  %v1939 = vadd.f32 %v165, %v1938
  %1940 = vmatmul.f32.gmra.mxu0 %v1915
  %v1941 = vpop.f32.mrf.mxu0
  %v1942 = vadd.f32 %v166, %v1941
  %1943 = vdwg.mxu0
  %1944 = vrot.lane.b32.xlu0 %v138, 112
  %v1945 = vpop.permute.xlu0 %1944
  %1946 = vrot.lane.b32.xlu0 %v141, 112
  %v1947 = vpop.permute.xlu0 %1946
  %1948 = vrot.lane.b32.xlu0 %v138, 80
  %v1949 = vpop.permute.xlu0 %1948
  %1950 = vrot.lane.b32.xlu0 %v141, 80
  %v1951 = vpop.permute.xlu0 %1950
  %v1952 = vsel %vm175, %v1945, 0
  %v1954 = vsel %vm175, %v1947, 0
  %v1956 = vsel %vm175, %v1949, 0
  %v1958 = vsel %vm175, %v1951, 0
  %1960 = vmatpush.xpose.msra.mxu0 0.0
  %1961 = vmatpush.xpose.msra.mxu0 0.0
  %1962 = vmatpush.xpose.msra.mxu0 0.0
  %1963 = vmatpush.xpose.msra.mxu0 0.0
  %1964 = vmatpush.xpose.msra.mxu0 0.0
  %1965 = vmatpush.xpose.msra.mxu0 0.0
  %1966 = vmatpush.xpose.msra.mxu0 0.0
  %1967 = vmatpush.xpose.msra.mxu0 0.0
  %1968 = vmatpush.xpose.msra.mxu0 0.0
  %1969 = vmatpush.xpose.msra.mxu0 0.0
  %1970 = vmatpush.xpose.msra.mxu0 0.0
  %1971 = vmatpush.xpose.msra.mxu0 0.0
  %1972 = vmatpush.xpose.msra.mxu0 0.0
  %1973 = vmatpush.xpose.msra.mxu0 0.0
  %1974 = vmatpush.xpose.msra.mxu0 %v1958
  %1975 = vmatpush.xpose.msra.mxu0 %v1956
  %1976 = vmatmul.f32.gmra.mxu0 %v1952
  %v1977 = vpop.f32.mrf.mxu0
  %v1978 = vadd.f32 %v165, %v1977
  %1979 = vmatmul.f32.gmra.mxu0 %v1954
  %v1980 = vpop.f32.mrf.mxu0
  %v1981 = vadd.f32 %v166, %v1980
  %1982 = vdwg.mxu0
  %1983 = vrot.lane.b32.xlu0 %v144, 112
  %v1984 = vpop.permute.xlu0 %1983
  %1985 = vrot.lane.b32.xlu0 %v147, 112
  %v1986 = vpop.permute.xlu0 %1985
  %1987 = vrot.lane.b32.xlu0 %v144, 80
  %v1988 = vpop.permute.xlu0 %1987
  %1989 = vrot.lane.b32.xlu0 %v147, 80
  %v1990 = vpop.permute.xlu0 %1989
  %v1991 = vsel %vm175, %v1984, 0
  %v1993 = vsel %vm175, %v1986, 0
  %v1995 = vsel %vm175, %v1988, 0
  %v1997 = vsel %vm175, %v1990, 0
  %1999 = vmatpush.xpose.msra.mxu0 0.0
  %2000 = vmatpush.xpose.msra.mxu0 0.0
  %2001 = vmatpush.xpose.msra.mxu0 0.0
  %2002 = vmatpush.xpose.msra.mxu0 0.0
  %2003 = vmatpush.xpose.msra.mxu0 0.0
  %2004 = vmatpush.xpose.msra.mxu0 0.0
  %2005 = vmatpush.xpose.msra.mxu0 0.0
  %2006 = vmatpush.xpose.msra.mxu0 0.0
  %2007 = vmatpush.xpose.msra.mxu0 0.0
  %2008 = vmatpush.xpose.msra.mxu0 0.0
  %2009 = vmatpush.xpose.msra.mxu0 0.0
  %2010 = vmatpush.xpose.msra.mxu0 0.0
  %2011 = vmatpush.xpose.msra.mxu0 0.0
  %2012 = vmatpush.xpose.msra.mxu0 0.0
  %2013 = vmatpush.xpose.msra.mxu0 %v1997
  %2014 = vmatpush.xpose.msra.mxu0 %v1995
  %2015 = vmatmul.f32.gmra.mxu0 %v1991
  %v2016 = vpop.f32.mrf.mxu0
  %v2017 = vadd.f32 %v165, %v2016
  %2018 = vmatmul.f32.gmra.mxu0 %v1993
  %v2019 = vpop.f32.mrf.mxu0
  %v2020 = vadd.f32 %v166, %v2019
  %2021 = vdwg.mxu0
  %2022 = vrot.lane.b32.xlu0 %v150, 112
  %v2023 = vpop.permute.xlu0 %2022
  %2024 = vrot.lane.b32.xlu0 %v153, 112
  %v2025 = vpop.permute.xlu0 %2024
  %2026 = vrot.lane.b32.xlu0 %v150, 80
  %v2027 = vpop.permute.xlu0 %2026
  %2028 = vrot.lane.b32.xlu0 %v153, 80
  %v2029 = vpop.permute.xlu0 %2028
  %v2030 = vsel %vm175, %v2023, 0
  %v2032 = vsel %vm175, %v2025, 0
  %v2034 = vsel %vm175, %v2027, 0
  %v2036 = vsel %vm175, %v2029, 0
  %2038 = vmatpush.xpose.msra.mxu0 0.0
  %2039 = vmatpush.xpose.msra.mxu0 0.0
  %2040 = vmatpush.xpose.msra.mxu0 0.0
  %2041 = vmatpush.xpose.msra.mxu0 0.0
  %2042 = vmatpush.xpose.msra.mxu0 0.0
  %2043 = vmatpush.xpose.msra.mxu0 0.0
  %2044 = vmatpush.xpose.msra.mxu0 0.0
  %2045 = vmatpush.xpose.msra.mxu0 0.0
  %2046 = vmatpush.xpose.msra.mxu0 0.0
  %2047 = vmatpush.xpose.msra.mxu0 0.0
  %2048 = vmatpush.xpose.msra.mxu0 0.0
  %2049 = vmatpush.xpose.msra.mxu0 0.0
  %2050 = vmatpush.xpose.msra.mxu0 0.0
  %2051 = vmatpush.xpose.msra.mxu0 0.0
  %2052 = vmatpush.xpose.msra.mxu0 %v2036
  %2053 = vmatpush.xpose.msra.mxu0 %v2034
  %2054 = vmatmul.f32.gmra.mxu0 %v2030
  %v2055 = vpop.f32.mrf.mxu0
  %v2056 = vadd.f32 %v165, %v2055
  %2057 = vmatmul.f32.gmra.mxu0 %v2032
  %v2058 = vpop.f32.mrf.mxu0
  %v2059 = vadd.f32 %v166, %v2058
  %2060 = vdwg.mxu0
  %2061 = vrot.lane.b32.xlu0 %v156, 112
  %v2062 = vpop.permute.xlu0 %2061
  %2063 = vrot.lane.b32.xlu0 %v159, 112
  %v2064 = vpop.permute.xlu0 %2063
  %2065 = vrot.lane.b32.xlu0 %v156, 80
  %v2066 = vpop.permute.xlu0 %2065
  %2067 = vrot.lane.b32.xlu0 %v159, 80
  %v2068 = vpop.permute.xlu0 %2067
  %v2069 = vsel %vm175, %v2062, 0
  %v2071 = vsel %vm175, %v2064, 0
  %v2073 = vsel %vm175, %v2066, 0
  %v2075 = vsel %vm175, %v2068, 0
  %2077 = vmatpush.xpose.msra.mxu0 0.0
  %2078 = vmatpush.xpose.msra.mxu0 0.0
  %2079 = vmatpush.xpose.msra.mxu0 0.0
  %2080 = vmatpush.xpose.msra.mxu0 0.0
  %2081 = vmatpush.xpose.msra.mxu0 0.0
  %2082 = vmatpush.xpose.msra.mxu0 0.0
  %2083 = vmatpush.xpose.msra.mxu0 0.0
  %2084 = vmatpush.xpose.msra.mxu0 0.0
  %2085 = vmatpush.xpose.msra.mxu0 0.0
  %2086 = vmatpush.xpose.msra.mxu0 0.0
  %2087 = vmatpush.xpose.msra.mxu0 0.0
  %2088 = vmatpush.xpose.msra.mxu0 0.0
  %2089 = vmatpush.xpose.msra.mxu0 0.0
  %2090 = vmatpush.xpose.msra.mxu0 0.0
  %2091 = vmatpush.xpose.msra.mxu0 %v2075
  %2092 = vmatpush.xpose.msra.mxu0 %v2073
  %2093 = vmatmul.f32.gmra.mxu0 %v2069
  %v2094 = vpop.f32.mrf.mxu0
  %v2095 = vadd.f32 %v165, %v2094
  %2096 = vmatmul.f32.gmra.mxu0 %v2071
  %v2097 = vpop.f32.mrf.mxu0
  %v2098 = vadd.f32 %v166, %v2097
  %2099 = vdwg.mxu0
  %v2100 = vsel %vm466, %v1822, -inf
  %2101 = vmax.xlane.f32.xlu0 %v2100
  %v2102 = vpop.xlane.xlu0 %2101
  %v2103 = vsel %vm466, %v1825, -inf
  %2104 = vmax.xlane.f32.xlu0 %v2103
  %v2105 = vpop.xlane.xlu0 %2104
  %v2106 = vsel %vm466, %v1861, -inf
  %2107 = vmax.xlane.f32.xlu0 %v2106
  %v2108 = vpop.xlane.xlu0 %2107
  %v2109 = vsel %vm466, %v1864, -inf
  %2110 = vmax.xlane.f32.xlu0 %v2109
  %v2111 = vpop.xlane.xlu0 %2110
  %v2112 = vsel %vm466, %v1900, -inf
  %2113 = vmax.xlane.f32.xlu0 %v2112
  %v2114 = vpop.xlane.xlu0 %2113
  %v2115 = vsel %vm466, %v1903, -inf
  %2116 = vmax.xlane.f32.xlu0 %v2115
  %v2117 = vpop.xlane.xlu0 %2116
  %v2118 = vsel %vm466, %v1939, -inf
  %2119 = vmax.xlane.f32.xlu0 %v2118
  %v2120 = vpop.xlane.xlu0 %2119
  %v2121 = vsel %vm466, %v1942, -inf
  %2122 = vmax.xlane.f32.xlu0 %v2121
  %v2123 = vpop.xlane.xlu0 %2122
  %v2124 = vsel %vm466, %v1978, -inf
  %2125 = vmax.xlane.f32.xlu0 %v2124
  %v2126 = vpop.xlane.xlu0 %2125
  %v2127 = vsel %vm466, %v1981, -inf
  %2128 = vmax.xlane.f32.xlu0 %v2127
  %v2129 = vpop.xlane.xlu0 %2128
  %v2130 = vsel %vm466, %v2017, -inf
  %2131 = vmax.xlane.f32.xlu0 %v2130
  %v2132 = vpop.xlane.xlu0 %2131
  %v2133 = vsel %vm466, %v2020, -inf
  %2134 = vmax.xlane.f32.xlu0 %v2133
  %v2135 = vpop.xlane.xlu0 %2134
  %v2136 = vsel %vm466, %v2056, -inf
  %2137 = vmax.xlane.f32.xlu0 %v2136
  %v2138 = vpop.xlane.xlu0 %2137
  %v2139 = vsel %vm466, %v2059, -inf
  %2140 = vmax.xlane.f32.xlu0 %v2139
  %v2141 = vpop.xlane.xlu0 %2140
  %v2142 = vsel %vm466, %v2095, -inf
  %2143 = vmax.xlane.f32.xlu0 %v2142
  %v2144 = vpop.xlane.xlu0 %2143
  %v2145 = vsel %vm466, %v2098, -inf
  %2146 = vmax.xlane.f32.xlu0 %v2145
  %v2147 = vpop.xlane.xlu0 %2146
  %v2148 = vsub.f32 %v1822, %v2102
  %v2149 = vsub.f32 %v1825, %v2105
  %v2150 = vsub.f32 %v1861, %v2108
  %v2151 = vsub.f32 %v1864, %v2111
  %v2152 = vsub.f32 %v1900, %v2114
  %v2153 = vsub.f32 %v1903, %v2117
  %v2154 = vsub.f32 %v1939, %v2120
  %v2155 = vsub.f32 %v1942, %v2123
  %v2156 = vsub.f32 %v1978, %v2126
  %v2157 = vsub.f32 %v1981, %v2129
  %v2158 = vsub.f32 %v2017, %v2132
  %v2159 = vsub.f32 %v2020, %v2135
  %v2160 = vsub.f32 %v2056, %v2138
  %v2161 = vsub.f32 %v2059, %v2141
  %v2162 = vsub.f32 %v2095, %v2144
  %v2163 = vsub.f32 %v2098, %v2147
  %v2164 = vmul.f32 %v2148, 1.442695
  %v2165 = vpow.pop %v2164
  %v2166 = vmul.f32 %v2149, 1.442695
  %v2167 = vpow.pop %v2166
  %v2168 = vmul.f32 %v2150, 1.442695
  %v2169 = vpow.pop %v2168
  %v2170 = vmul.f32 %v2151, 1.442695
  %v2171 = vpow.pop %v2170
  %v2172 = vmul.f32 %v2152, 1.442695
  %v2173 = vpow.pop %v2172
  %v2174 = vmul.f32 %v2153, 1.442695
  %v2175 = vpow.pop %v2174
  %v2176 = vmul.f32 %v2154, 1.442695
  %v2177 = vpow.pop %v2176
  %v2178 = vmul.f32 %v2155, 1.442695
  %v2179 = vpow.pop %v2178
  %v2180 = vmul.f32 %v2156, 1.442695
  %v2181 = vpow.pop %v2180
  %v2182 = vmul.f32 %v2157, 1.442695
  %v2183 = vpow.pop %v2182
  %v2184 = vmul.f32 %v2158, 1.442695
  %v2185 = vpow.pop %v2184
  %v2186 = vmul.f32 %v2159, 1.442695
  %v2187 = vpow.pop %v2186
  %v2188 = vmul.f32 %v2160, 1.442695
  %v2189 = vpow.pop %v2188
  %v2190 = vmul.f32 %v2161, 1.442695
  %v2191 = vpow.pop %v2190
  %v2192 = vmul.f32 %v2162, 1.442695
  %v2193 = vpow.pop %v2192
  %v2194 = vmul.f32 %v2163, 1.442695
  %v2195 = vpow.pop %v2194
  %v2196 = vsel %vm466, %v2165, 0.0
  %2197 = vadd.xlane.f32.xlu0 %v2196
  %v2198 = vpop.xlane.xlu0 %2197
  %v2199 = vsel %vm466, %v2167, 0.0
  %2200 = vadd.xlane.f32.xlu0 %v2199
  %v2201 = vpop.xlane.xlu0 %2200
  %v2202 = vsel %vm466, %v2169, 0.0
  %2203 = vadd.xlane.f32.xlu0 %v2202
  %v2204 = vpop.xlane.xlu0 %2203
  %v2205 = vsel %vm466, %v2171, 0.0
  %2206 = vadd.xlane.f32.xlu0 %v2205
  %v2207 = vpop.xlane.xlu0 %2206
  %v2208 = vsel %vm466, %v2173, 0.0
  %2209 = vadd.xlane.f32.xlu0 %v2208
  %v2210 = vpop.xlane.xlu0 %2209
  %v2211 = vsel %vm466, %v2175, 0.0
  %2212 = vadd.xlane.f32.xlu0 %v2211
  %v2213 = vpop.xlane.xlu0 %2212
  %v2214 = vsel %vm466, %v2177, 0.0
  %2215 = vadd.xlane.f32.xlu0 %v2214
  %v2216 = vpop.xlane.xlu0 %2215
  %v2217 = vsel %vm466, %v2179, 0.0
  %2218 = vadd.xlane.f32.xlu0 %v2217
  %v2219 = vpop.xlane.xlu0 %2218
  %v2220 = vsel %vm466, %v2181, 0.0
  %2221 = vadd.xlane.f32.xlu0 %v2220
  %v2222 = vpop.xlane.xlu0 %2221
  %v2223 = vsel %vm466, %v2183, 0.0
  %2224 = vadd.xlane.f32.xlu0 %v2223
  %v2225 = vpop.xlane.xlu0 %2224
  %v2226 = vsel %vm466, %v2185, 0.0
  %2227 = vadd.xlane.f32.xlu0 %v2226
  %v2228 = vpop.xlane.xlu0 %2227
  %v2229 = vsel %vm466, %v2187, 0.0
  %2230 = vadd.xlane.f32.xlu0 %v2229
  %v2231 = vpop.xlane.xlu0 %2230
  %v2232 = vsel %vm466, %v2189, 0.0
  %2233 = vadd.xlane.f32.xlu0 %v2232
  %v2234 = vpop.xlane.xlu0 %2233
  %v2235 = vsel %vm466, %v2191, 0.0
  %2236 = vadd.xlane.f32.xlu0 %v2235
  %v2237 = vpop.xlane.xlu0 %2236
  %v2238 = vsel %vm466, %v2193, 0.0
  %2239 = vadd.xlane.f32.xlu0 %v2238
  %v2240 = vpop.xlane.xlu0 %2239
  %v2241 = vsel %vm466, %v2195, 0.0
  %2242 = vadd.xlane.f32.xlu0 %v2241
  %v2243 = vpop.xlane.xlu0 %2242
  %v2244 = vrcp.pop %v2198
  %v2245 = vrcp.pop %v2201
  %v2246 = vrcp.pop %v2204
  %v2247 = vrcp.pop %v2207
  %v2248 = vrcp.pop %v2210
  %v2249 = vrcp.pop %v2213
  %v2250 = vrcp.pop %v2216
  %v2251 = vrcp.pop %v2219
  %v2252 = vrcp.pop %v2222
  %v2253 = vrcp.pop %v2225
  %v2254 = vrcp.pop %v2228
  %v2255 = vrcp.pop %v2231
  %v2256 = vrcp.pop %v2234
  %v2257 = vrcp.pop %v2237
  %v2258 = vrcp.pop %v2240
  %v2259 = vrcp.pop %v2243
  %v2260 = vmul.f32 %v2165, %v2244
  %v2261 = vmul.f32 %v2167, %v2245
  %v2262 = vmul.f32 %v2169, %v2246
  %v2263 = vmul.f32 %v2171, %v2247
  %v2264 = vmul.f32 %v2173, %v2248
  %v2265 = vmul.f32 %v2175, %v2249
  %v2266 = vmul.f32 %v2177, %v2250
  %v2267 = vmul.f32 %v2179, %v2251
  %v2268 = vmul.f32 %v2181, %v2252
  %v2269 = vmul.f32 %v2183, %v2253
  %v2270 = vmul.f32 %v2185, %v2254
  %v2271 = vmul.f32 %v2187, %v2255
  %v2272 = vmul.f32 %v2189, %v2256
  %v2273 = vmul.f32 %v2191, %v2257
  %v2274 = vmul.f32 %v2193, %v2258
  %v2275 = vmul.f32 %v2195, %v2259
  %2276 = vrot.lane.b32.xlu0 %v114, 48
  %v2277 = vpop.permute.xlu0 %2276
  %2278 = vrot.lane.b32.xlu0 %v117, 48
  %v2279 = vpop.permute.xlu0 %2278
  %v2283 = vsel %vm466, %v2260, 0
  %v2286 = vsel %vm466, %v2261, 0
  %2288 = vmatpush.msra.mxu0 0.0
  %2289 = vmatpush.msra.mxu0 0.0
  %2290 = vmatpush.msra.mxu0 0.0
  %2291 = vmatpush.msra.mxu0 0.0
  %2292 = vmatpush.msra.mxu0 0.0
  %2293 = vmatpush.msra.mxu0 0.0
  %2294 = vmatpush.msra.mxu0 0.0
  %2295 = vmatpush.msra.mxu0 0.0
  %2296 = vmatpush.msra.mxu0 0.0
  %2297 = vmatpush.msra.mxu0 0.0
  %2298 = vmatpush.msra.mxu0 0.0
  %2299 = vmatpush.msra.mxu0 0.0
  %2300 = vmatpush.msra.mxu0 0.0
  %2301 = vmatpush.msra.mxu0 0.0
  %2302 = vmatpush.msra.mxu0 %v2279
  %2303 = vmatpush.msra.mxu0 %v2277
  %2304 = vmatmul.f32.gmra.mxu0 %v2283
  %v2305 = vpop.f32.mrf.mxu0
  %v2306 = vadd.f32 0.0, %v2305
  %2307 = vmatmul.f32.gmra.mxu0 %v2286
  %v2308 = vpop.f32.mrf.mxu0
  %v2309 = vadd.f32 0.0, %v2308
  %2310 = vdwg.mxu0
  %2311 = vrot.lane.b32.xlu0 %v120, 48
  %v2312 = vpop.permute.xlu0 %2311
  %2313 = vrot.lane.b32.xlu0 %v123, 48
  %v2314 = vpop.permute.xlu0 %2313
  %v2318 = vsel %vm466, %v2262, 0
  %v2321 = vsel %vm466, %v2263, 0
  %2323 = vmatpush.msra.mxu0 0.0
  %2324 = vmatpush.msra.mxu0 0.0
  %2325 = vmatpush.msra.mxu0 0.0
  %2326 = vmatpush.msra.mxu0 0.0
  %2327 = vmatpush.msra.mxu0 0.0
  %2328 = vmatpush.msra.mxu0 0.0
  %2329 = vmatpush.msra.mxu0 0.0
  %2330 = vmatpush.msra.mxu0 0.0
  %2331 = vmatpush.msra.mxu0 0.0
  %2332 = vmatpush.msra.mxu0 0.0
  %2333 = vmatpush.msra.mxu0 0.0
  %2334 = vmatpush.msra.mxu0 0.0
  %2335 = vmatpush.msra.mxu0 0.0
  %2336 = vmatpush.msra.mxu0 0.0
  %2337 = vmatpush.msra.mxu0 %v2314
  %2338 = vmatpush.msra.mxu0 %v2312
  %2339 = vmatmul.f32.gmra.mxu0 %v2318
  %v2340 = vpop.f32.mrf.mxu0
  %v2341 = vadd.f32 0.0, %v2340
  %2342 = vmatmul.f32.gmra.mxu0 %v2321
  %v2343 = vpop.f32.mrf.mxu0
  %v2344 = vadd.f32 0.0, %v2343
  %2345 = vdwg.mxu0
  %2346 = vrot.lane.b32.xlu0 %v126, 48
  %v2347 = vpop.permute.xlu0 %2346
  %2348 = vrot.lane.b32.xlu0 %v129, 48
  %v2349 = vpop.permute.xlu0 %2348
  %v2353 = vsel %vm466, %v2264, 0
  %v2356 = vsel %vm466, %v2265, 0
  %2358 = vmatpush.msra.mxu0 0.0
  %2359 = vmatpush.msra.mxu0 0.0
  %2360 = vmatpush.msra.mxu0 0.0
  %2361 = vmatpush.msra.mxu0 0.0
  %2362 = vmatpush.msra.mxu0 0.0
  %2363 = vmatpush.msra.mxu0 0.0
  %2364 = vmatpush.msra.mxu0 0.0
  %2365 = vmatpush.msra.mxu0 0.0
  %2366 = vmatpush.msra.mxu0 0.0
  %2367 = vmatpush.msra.mxu0 0.0
  %2368 = vmatpush.msra.mxu0 0.0
  %2369 = vmatpush.msra.mxu0 0.0
  %2370 = vmatpush.msra.mxu0 0.0
  %2371 = vmatpush.msra.mxu0 0.0
  %2372 = vmatpush.msra.mxu0 %v2349
  %2373 = vmatpush.msra.mxu0 %v2347
  %2374 = vmatmul.f32.gmra.mxu0 %v2353
  %v2375 = vpop.f32.mrf.mxu0
  %v2376 = vadd.f32 0.0, %v2375
  %2377 = vmatmul.f32.gmra.mxu0 %v2356
  %v2378 = vpop.f32.mrf.mxu0
  %v2379 = vadd.f32 0.0, %v2378
  %2380 = vdwg.mxu0
  %2381 = vrot.lane.b32.xlu0 %v132, 48
  %v2382 = vpop.permute.xlu0 %2381
  %2383 = vrot.lane.b32.xlu0 %v135, 48
  %v2384 = vpop.permute.xlu0 %2383
  %v2388 = vsel %vm466, %v2266, 0
  %v2391 = vsel %vm466, %v2267, 0
  %2393 = vmatpush.msra.mxu0 0.0
  %2394 = vmatpush.msra.mxu0 0.0
  %2395 = vmatpush.msra.mxu0 0.0
  %2396 = vmatpush.msra.mxu0 0.0
  %2397 = vmatpush.msra.mxu0 0.0
  %2398 = vmatpush.msra.mxu0 0.0
  %2399 = vmatpush.msra.mxu0 0.0
  %2400 = vmatpush.msra.mxu0 0.0
  %2401 = vmatpush.msra.mxu0 0.0
  %2402 = vmatpush.msra.mxu0 0.0
  %2403 = vmatpush.msra.mxu0 0.0
  %2404 = vmatpush.msra.mxu0 0.0
  %2405 = vmatpush.msra.mxu0 0.0
  %2406 = vmatpush.msra.mxu0 0.0
  %2407 = vmatpush.msra.mxu0 %v2384
  %2408 = vmatpush.msra.mxu0 %v2382
  %2409 = vmatmul.f32.gmra.mxu0 %v2388
  %v2410 = vpop.f32.mrf.mxu0
  %v2411 = vadd.f32 0.0, %v2410
  %2412 = vmatmul.f32.gmra.mxu0 %v2391
  %v2413 = vpop.f32.mrf.mxu0
  %v2414 = vadd.f32 0.0, %v2413
  %2415 = vdwg.mxu0
  %2416 = vrot.lane.b32.xlu0 %v138, 48
  %v2417 = vpop.permute.xlu0 %2416
  %2418 = vrot.lane.b32.xlu0 %v141, 48
  %v2419 = vpop.permute.xlu0 %2418
  %v2423 = vsel %vm466, %v2268, 0
  %v2426 = vsel %vm466, %v2269, 0
  %2428 = vmatpush.msra.mxu0 0.0
  %2429 = vmatpush.msra.mxu0 0.0
  %2430 = vmatpush.msra.mxu0 0.0
  %2431 = vmatpush.msra.mxu0 0.0
  %2432 = vmatpush.msra.mxu0 0.0
  %2433 = vmatpush.msra.mxu0 0.0
  %2434 = vmatpush.msra.mxu0 0.0
  %2435 = vmatpush.msra.mxu0 0.0
  %2436 = vmatpush.msra.mxu0 0.0
  %2437 = vmatpush.msra.mxu0 0.0
  %2438 = vmatpush.msra.mxu0 0.0
  %2439 = vmatpush.msra.mxu0 0.0
  %2440 = vmatpush.msra.mxu0 0.0
  %2441 = vmatpush.msra.mxu0 0.0
  %2442 = vmatpush.msra.mxu0 %v2419
  %2443 = vmatpush.msra.mxu0 %v2417
  %2444 = vmatmul.f32.gmra.mxu0 %v2423
  %v2445 = vpop.f32.mrf.mxu0
  %v2446 = vadd.f32 0.0, %v2445
  %2447 = vmatmul.f32.gmra.mxu0 %v2426
  %v2448 = vpop.f32.mrf.mxu0
  %v2449 = vadd.f32 0.0, %v2448
  %2450 = vdwg.mxu0
  %2451 = vrot.lane.b32.xlu0 %v144, 48
  %v2452 = vpop.permute.xlu0 %2451
  %2453 = vrot.lane.b32.xlu0 %v147, 48
  %v2454 = vpop.permute.xlu0 %2453
  %v2458 = vsel %vm466, %v2270, 0
  %v2461 = vsel %vm466, %v2271, 0
  %2463 = vmatpush.msra.mxu0 0.0
  %2464 = vmatpush.msra.mxu0 0.0
  %2465 = vmatpush.msra.mxu0 0.0
  %2466 = vmatpush.msra.mxu0 0.0
  %2467 = vmatpush.msra.mxu0 0.0
  %2468 = vmatpush.msra.mxu0 0.0
  %2469 = vmatpush.msra.mxu0 0.0
  %2470 = vmatpush.msra.mxu0 0.0
  %2471 = vmatpush.msra.mxu0 0.0
  %2472 = vmatpush.msra.mxu0 0.0
  %2473 = vmatpush.msra.mxu0 0.0
  %2474 = vmatpush.msra.mxu0 0.0
  %2475 = vmatpush.msra.mxu0 0.0
  %2476 = vmatpush.msra.mxu0 0.0
  %2477 = vmatpush.msra.mxu0 %v2454
  %2478 = vmatpush.msra.mxu0 %v2452
  %2479 = vmatmul.f32.gmra.mxu0 %v2458
  %v2480 = vpop.f32.mrf.mxu0
  %v2481 = vadd.f32 0.0, %v2480
  %2482 = vmatmul.f32.gmra.mxu0 %v2461
  %v2483 = vpop.f32.mrf.mxu0
  %v2484 = vadd.f32 0.0, %v2483
  %2485 = vdwg.mxu0
  %2486 = vrot.lane.b32.xlu0 %v150, 48
  %v2487 = vpop.permute.xlu0 %2486
  %2488 = vrot.lane.b32.xlu0 %v153, 48
  %v2489 = vpop.permute.xlu0 %2488
  %v2493 = vsel %vm466, %v2272, 0
  %v2496 = vsel %vm466, %v2273, 0
  %2498 = vmatpush.msra.mxu0 0.0
  %2499 = vmatpush.msra.mxu0 0.0
  %2500 = vmatpush.msra.mxu0 0.0
  %2501 = vmatpush.msra.mxu0 0.0
  %2502 = vmatpush.msra.mxu0 0.0
  %2503 = vmatpush.msra.mxu0 0.0
  %2504 = vmatpush.msra.mxu0 0.0
  %2505 = vmatpush.msra.mxu0 0.0
  %2506 = vmatpush.msra.mxu0 0.0
  %2507 = vmatpush.msra.mxu0 0.0
  %2508 = vmatpush.msra.mxu0 0.0
  %2509 = vmatpush.msra.mxu0 0.0
  %2510 = vmatpush.msra.mxu0 0.0
  %2511 = vmatpush.msra.mxu0 0.0
  %2512 = vmatpush.msra.mxu0 %v2489
  %2513 = vmatpush.msra.mxu0 %v2487
  %2514 = vmatmul.f32.gmra.mxu0 %v2493
  %v2515 = vpop.f32.mrf.mxu0
  %v2516 = vadd.f32 0.0, %v2515
  %2517 = vmatmul.f32.gmra.mxu0 %v2496
  %v2518 = vpop.f32.mrf.mxu0
  %v2519 = vadd.f32 0.0, %v2518
  %2520 = vdwg.mxu0
  %2521 = vrot.lane.b32.xlu0 %v156, 48
  %v2522 = vpop.permute.xlu0 %2521
  %2523 = vrot.lane.b32.xlu0 %v159, 48
  %v2524 = vpop.permute.xlu0 %2523
  %v2528 = vsel %vm466, %v2274, 0
  %v2531 = vsel %vm466, %v2275, 0
  %2533 = vmatpush.msra.mxu0 0.0
  %2534 = vmatpush.msra.mxu0 0.0
  %2535 = vmatpush.msra.mxu0 0.0
  %2536 = vmatpush.msra.mxu0 0.0
  %2537 = vmatpush.msra.mxu0 0.0
  %2538 = vmatpush.msra.mxu0 0.0
  %2539 = vmatpush.msra.mxu0 0.0
  %2540 = vmatpush.msra.mxu0 0.0
  %2541 = vmatpush.msra.mxu0 0.0
  %2542 = vmatpush.msra.mxu0 0.0
  %2543 = vmatpush.msra.mxu0 0.0
  %2544 = vmatpush.msra.mxu0 0.0
  %2545 = vmatpush.msra.mxu0 0.0
  %2546 = vmatpush.msra.mxu0 0.0
  %2547 = vmatpush.msra.mxu0 %v2524
  %2548 = vmatpush.msra.mxu0 %v2522
  %2549 = vmatmul.f32.gmra.mxu0 %v2528
  %v2550 = vpop.f32.mrf.mxu0
  %v2551 = vadd.f32 0.0, %v2550
  %2552 = vmatmul.f32.gmra.mxu0 %v2531
  %v2553 = vpop.f32.mrf.mxu0
  %v2554 = vadd.f32 0.0, %v2553
  %2555 = vdwg.mxu0
  %2572 = vrot.lane.b32.xlu0 %v2306, 16
  %v2573 = vpop.permute.xlu0 %2572
  %2574 = vrot.lane.b32.xlu0 %v2309, 16
  %v2575 = vpop.permute.xlu0 %2574
  %2576 = vrot.lane.b32.xlu0 %v2341, 16
  %v2577 = vpop.permute.xlu0 %2576
  %2578 = vrot.lane.b32.xlu0 %v2344, 16
  %v2579 = vpop.permute.xlu0 %2578
  %2580 = vrot.lane.b32.xlu0 %v2376, 16
  %v2581 = vpop.permute.xlu0 %2580
  %2582 = vrot.lane.b32.xlu0 %v2379, 16
  %v2583 = vpop.permute.xlu0 %2582
  %2584 = vrot.lane.b32.xlu0 %v2411, 16
  %v2585 = vpop.permute.xlu0 %2584
  %2586 = vrot.lane.b32.xlu0 %v2414, 16
  %v2587 = vpop.permute.xlu0 %2586
  %2588 = vrot.lane.b32.xlu0 %v2446, 16
  %v2589 = vpop.permute.xlu0 %2588
  %2590 = vrot.lane.b32.xlu0 %v2449, 16
  %v2591 = vpop.permute.xlu0 %2590
  %2592 = vrot.lane.b32.xlu0 %v2481, 16
  %v2593 = vpop.permute.xlu0 %2592
  %2594 = vrot.lane.b32.xlu0 %v2484, 16
  %v2595 = vpop.permute.xlu0 %2594
  %2596 = vrot.lane.b32.xlu0 %v2516, 16
  %v2597 = vpop.permute.xlu0 %2596
  %2598 = vrot.lane.b32.xlu0 %v2519, 16
  %v2599 = vpop.permute.xlu0 %2598
  %2600 = vrot.lane.b32.xlu0 %v2551, 16
  %v2601 = vpop.permute.xlu0 %2600
  %2602 = vrot.lane.b32.xlu0 %v2554, 16
  %v2603 = vpop.permute.xlu0 %2602
  %vm2620 = vcmask 195712
  %2621 = vst.msk [vmem:[#allocation2] sm:$0xff] %vm2620, %v2573
  %2622 = vst.msk [vmem:[#allocation2 + $0x8] sm:$0xff] %vm2620, %v2575
  %2623 = vst.msk [vmem:[#allocation2 + $0x10] sm:$0xff] %vm2620, %v2577
  %2624 = vst.msk [vmem:[#allocation2 + $0x18] sm:$0xff] %vm2620, %v2579
  %2625 = vst.msk [vmem:[#allocation2 + $0x20] sm:$0xff] %vm2620, %v2581
  %2626 = vst.msk [vmem:[#allocation2 + $0x28] sm:$0xff] %vm2620, %v2583
  %2627 = vst.msk [vmem:[#allocation2 + $0x30] sm:$0xff] %vm2620, %v2585
  %2628 = vst.msk [vmem:[#allocation2 + $0x38] sm:$0xff] %vm2620, %v2587
  %2629 = vst.msk [vmem:[#allocation2 + $0x40] sm:$0xff] %vm2620, %v2589
  %2630 = vst.msk [vmem:[#allocation2 + $0x48] sm:$0xff] %vm2620, %v2591
  %2631 = vst.msk [vmem:[#allocation2 + $0x50] sm:$0xff] %vm2620, %v2593
  %2632 = vst.msk [vmem:[#allocation2 + $0x58] sm:$0xff] %vm2620, %v2595
  %2633 = vst.msk [vmem:[#allocation2 + $0x60] sm:$0xff] %vm2620, %v2597
  %2634 = vst.msk [vmem:[#allocation2 + $0x68] sm:$0xff] %vm2620, %v2599
  %2635 = vst.msk [vmem:[#allocation2 + $0x70] sm:$0xff] %vm2620, %v2601
  %2636 = vst.msk [vmem:[#allocation2 + $0x78] sm:$0xff] %vm2620, %v2603
  %2637 = vrot.lane.b32.xlu0 %v114, 104
  %v2638 = vpop.permute.xlu0 %2637
  %2639 = vrot.lane.b32.xlu0 %v117, 104
  %v2640 = vpop.permute.xlu0 %2639
  %2641 = vrot.lane.b32.xlu0 %v114, 72
  %v2642 = vpop.permute.xlu0 %2641
  %2643 = vrot.lane.b32.xlu0 %v117, 72
  %v2644 = vpop.permute.xlu0 %2643
  %v2645 = vsel %vm175, %v2638, 0
  %v2647 = vsel %vm175, %v2640, 0
  %v2649 = vsel %vm175, %v2642, 0
  %v2651 = vsel %vm175, %v2644, 0
  %2653 = vmatpush.xpose.msra.mxu0 0.0
  %2654 = vmatpush.xpose.msra.mxu0 0.0
  %2655 = vmatpush.xpose.msra.mxu0 0.0
  %2656 = vmatpush.xpose.msra.mxu0 0.0
  %2657 = vmatpush.xpose.msra.mxu0 0.0
  %2658 = vmatpush.xpose.msra.mxu0 0.0
  %2659 = vmatpush.xpose.msra.mxu0 0.0
  %2660 = vmatpush.xpose.msra.mxu0 0.0
  %2661 = vmatpush.xpose.msra.mxu0 0.0
  %2662 = vmatpush.xpose.msra.mxu0 0.0
  %2663 = vmatpush.xpose.msra.mxu0 0.0
  %2664 = vmatpush.xpose.msra.mxu0 0.0
  %2665 = vmatpush.xpose.msra.mxu0 0.0
  %2666 = vmatpush.xpose.msra.mxu0 0.0
  %2667 = vmatpush.xpose.msra.mxu0 %v2651
  %2668 = vmatpush.xpose.msra.mxu0 %v2649
  %2669 = vmatmul.f32.gmra.mxu0 %v2645
  %v2670 = vpop.f32.mrf.mxu0
  %v2671 = vadd.f32 %v167, %v2670
  %2672 = vmatmul.f32.gmra.mxu0 %v2647
  %v2673 = vpop.f32.mrf.mxu0
  %v2674 = vadd.f32 %v168, %v2673
  %2675 = vdwg.mxu0
  %2676 = vrot.lane.b32.xlu0 %v120, 104
  %v2677 = vpop.permute.xlu0 %2676
  %2678 = vrot.lane.b32.xlu0 %v123, 104
  %v2679 = vpop.permute.xlu0 %2678
  %2680 = vrot.lane.b32.xlu0 %v120, 72
  %v2681 = vpop.permute.xlu0 %2680
  %2682 = vrot.lane.b32.xlu0 %v123, 72
  %v2683 = vpop.permute.xlu0 %2682
  %v2684 = vsel %vm175, %v2677, 0
  %v2686 = vsel %vm175, %v2679, 0
  %v2688 = vsel %vm175, %v2681, 0
  %v2690 = vsel %vm175, %v2683, 0
  %2692 = vmatpush.xpose.msra.mxu0 0.0
  %2693 = vmatpush.xpose.msra.mxu0 0.0
  %2694 = vmatpush.xpose.msra.mxu0 0.0
  %2695 = vmatpush.xpose.msra.mxu0 0.0
  %2696 = vmatpush.xpose.msra.mxu0 0.0
  %2697 = vmatpush.xpose.msra.mxu0 0.0
  %2698 = vmatpush.xpose.msra.mxu0 0.0
  %2699 = vmatpush.xpose.msra.mxu0 0.0
  %2700 = vmatpush.xpose.msra.mxu0 0.0
  %2701 = vmatpush.xpose.msra.mxu0 0.0
  %2702 = vmatpush.xpose.msra.mxu0 0.0
  %2703 = vmatpush.xpose.msra.mxu0 0.0
  %2704 = vmatpush.xpose.msra.mxu0 0.0
  %2705 = vmatpush.xpose.msra.mxu0 0.0
  %2706 = vmatpush.xpose.msra.mxu0 %v2690
  %2707 = vmatpush.xpose.msra.mxu0 %v2688
  %2708 = vmatmul.f32.gmra.mxu0 %v2684
  %v2709 = vpop.f32.mrf.mxu0
  %v2710 = vadd.f32 %v167, %v2709
  %2711 = vmatmul.f32.gmra.mxu0 %v2686
  %v2712 = vpop.f32.mrf.mxu0
  %v2713 = vadd.f32 %v168, %v2712
  %2714 = vdwg.mxu0
  %2715 = vrot.lane.b32.xlu0 %v126, 104
  %v2716 = vpop.permute.xlu0 %2715
  %2717 = vrot.lane.b32.xlu0 %v129, 104
  %v2718 = vpop.permute.xlu0 %2717
  %2719 = vrot.lane.b32.xlu0 %v126, 72
  %v2720 = vpop.permute.xlu0 %2719
  %2721 = vrot.lane.b32.xlu0 %v129, 72
  %v2722 = vpop.permute.xlu0 %2721
  %v2723 = vsel %vm175, %v2716, 0
  %v2725 = vsel %vm175, %v2718, 0
  %v2727 = vsel %vm175, %v2720, 0
  %v2729 = vsel %vm175, %v2722, 0
  %2731 = vmatpush.xpose.msra.mxu0 0.0
  %2732 = vmatpush.xpose.msra.mxu0 0.0
  %2733 = vmatpush.xpose.msra.mxu0 0.0
  %2734 = vmatpush.xpose.msra.mxu0 0.0
  %2735 = vmatpush.xpose.msra.mxu0 0.0
  %2736 = vmatpush.xpose.msra.mxu0 0.0
  %2737 = vmatpush.xpose.msra.mxu0 0.0
  %2738 = vmatpush.xpose.msra.mxu0 0.0
  %2739 = vmatpush.xpose.msra.mxu0 0.0
  %2740 = vmatpush.xpose.msra.mxu0 0.0
  %2741 = vmatpush.xpose.msra.mxu0 0.0
  %2742 = vmatpush.xpose.msra.mxu0 0.0
  %2743 = vmatpush.xpose.msra.mxu0 0.0
  %2744 = vmatpush.xpose.msra.mxu0 0.0
  %2745 = vmatpush.xpose.msra.mxu0 %v2729
  %2746 = vmatpush.xpose.msra.mxu0 %v2727
  %2747 = vmatmul.f32.gmra.mxu0 %v2723
  %v2748 = vpop.f32.mrf.mxu0
  %v2749 = vadd.f32 %v167, %v2748
  %2750 = vmatmul.f32.gmra.mxu0 %v2725
  %v2751 = vpop.f32.mrf.mxu0
  %v2752 = vadd.f32 %v168, %v2751
  %2753 = vdwg.mxu0
  %2754 = vrot.lane.b32.xlu0 %v132, 104
  %v2755 = vpop.permute.xlu0 %2754
  %2756 = vrot.lane.b32.xlu0 %v135, 104
  %v2757 = vpop.permute.xlu0 %2756
  %2758 = vrot.lane.b32.xlu0 %v132, 72
  %v2759 = vpop.permute.xlu0 %2758
  %2760 = vrot.lane.b32.xlu0 %v135, 72
  %v2761 = vpop.permute.xlu0 %2760
  %v2762 = vsel %vm175, %v2755, 0
  %v2764 = vsel %vm175, %v2757, 0
  %v2766 = vsel %vm175, %v2759, 0
  %v2768 = vsel %vm175, %v2761, 0
  %2770 = vmatpush.xpose.msra.mxu0 0.0
  %2771 = vmatpush.xpose.msra.mxu0 0.0
  %2772 = vmatpush.xpose.msra.mxu0 0.0
  %2773 = vmatpush.xpose.msra.mxu0 0.0
  %2774 = vmatpush.xpose.msra.mxu0 0.0
  %2775 = vmatpush.xpose.msra.mxu0 0.0
  %2776 = vmatpush.xpose.msra.mxu0 0.0
  %2777 = vmatpush.xpose.msra.mxu0 0.0
  %2778 = vmatpush.xpose.msra.mxu0 0.0
  %2779 = vmatpush.xpose.msra.mxu0 0.0
  %2780 = vmatpush.xpose.msra.mxu0 0.0
  %2781 = vmatpush.xpose.msra.mxu0 0.0
  %2782 = vmatpush.xpose.msra.mxu0 0.0
  %2783 = vmatpush.xpose.msra.mxu0 0.0
  %2784 = vmatpush.xpose.msra.mxu0 %v2768
  %2785 = vmatpush.xpose.msra.mxu0 %v2766
  %2786 = vmatmul.f32.gmra.mxu0 %v2762
  %v2787 = vpop.f32.mrf.mxu0
  %v2788 = vadd.f32 %v167, %v2787
  %2789 = vmatmul.f32.gmra.mxu0 %v2764
  %v2790 = vpop.f32.mrf.mxu0
  %v2791 = vadd.f32 %v168, %v2790
  %2792 = vdwg.mxu0
  %2793 = vrot.lane.b32.xlu0 %v138, 104
  %v2794 = vpop.permute.xlu0 %2793
  %2795 = vrot.lane.b32.xlu0 %v141, 104
  %v2796 = vpop.permute.xlu0 %2795
  %2797 = vrot.lane.b32.xlu0 %v138, 72
  %v2798 = vpop.permute.xlu0 %2797
  %2799 = vrot.lane.b32.xlu0 %v141, 72
  %v2800 = vpop.permute.xlu0 %2799
  %v2801 = vsel %vm175, %v2794, 0
  %v2803 = vsel %vm175, %v2796, 0
  %v2805 = vsel %vm175, %v2798, 0
  %v2807 = vsel %vm175, %v2800, 0
  %2809 = vmatpush.xpose.msra.mxu0 0.0
  %2810 = vmatpush.xpose.msra.mxu0 0.0
  %2811 = vmatpush.xpose.msra.mxu0 0.0
  %2812 = vmatpush.xpose.msra.mxu0 0.0
  %2813 = vmatpush.xpose.msra.mxu0 0.0
  %2814 = vmatpush.xpose.msra.mxu0 0.0
  %2815 = vmatpush.xpose.msra.mxu0 0.0
  %2816 = vmatpush.xpose.msra.mxu0 0.0
  %2817 = vmatpush.xpose.msra.mxu0 0.0
  %2818 = vmatpush.xpose.msra.mxu0 0.0
  %2819 = vmatpush.xpose.msra.mxu0 0.0
  %2820 = vmatpush.xpose.msra.mxu0 0.0
  %2821 = vmatpush.xpose.msra.mxu0 0.0
  %2822 = vmatpush.xpose.msra.mxu0 0.0
  %2823 = vmatpush.xpose.msra.mxu0 %v2807
  %2824 = vmatpush.xpose.msra.mxu0 %v2805
  %2825 = vmatmul.f32.gmra.mxu0 %v2801
  %v2826 = vpop.f32.mrf.mxu0
  %v2827 = vadd.f32 %v167, %v2826
  %2828 = vmatmul.f32.gmra.mxu0 %v2803
  %v2829 = vpop.f32.mrf.mxu0
  %v2830 = vadd.f32 %v168, %v2829
  %2831 = vdwg.mxu0
  %2832 = vrot.lane.b32.xlu0 %v144, 104
  %v2833 = vpop.permute.xlu0 %2832
  %2834 = vrot.lane.b32.xlu0 %v147, 104
  %v2835 = vpop.permute.xlu0 %2834
  %2836 = vrot.lane.b32.xlu0 %v144, 72
  %v2837 = vpop.permute.xlu0 %2836
  %2838 = vrot.lane.b32.xlu0 %v147, 72
  %v2839 = vpop.permute.xlu0 %2838
  %v2840 = vsel %vm175, %v2833, 0
  %v2842 = vsel %vm175, %v2835, 0
  %v2844 = vsel %vm175, %v2837, 0
  %v2846 = vsel %vm175, %v2839, 0
  %2848 = vmatpush.xpose.msra.mxu0 0.0
  %2849 = vmatpush.xpose.msra.mxu0 0.0
  %2850 = vmatpush.xpose.msra.mxu0 0.0
  %2851 = vmatpush.xpose.msra.mxu0 0.0
  %2852 = vmatpush.xpose.msra.mxu0 0.0
  %2853 = vmatpush.xpose.msra.mxu0 0.0
  %2854 = vmatpush.xpose.msra.mxu0 0.0
  %2855 = vmatpush.xpose.msra.mxu0 0.0
  %2856 = vmatpush.xpose.msra.mxu0 0.0
  %2857 = vmatpush.xpose.msra.mxu0 0.0
  %2858 = vmatpush.xpose.msra.mxu0 0.0
  %2859 = vmatpush.xpose.msra.mxu0 0.0
  %2860 = vmatpush.xpose.msra.mxu0 0.0
  %2861 = vmatpush.xpose.msra.mxu0 0.0
  %2862 = vmatpush.xpose.msra.mxu0 %v2846
  %2863 = vmatpush.xpose.msra.mxu0 %v2844
  %2864 = vmatmul.f32.gmra.mxu0 %v2840
  %v2865 = vpop.f32.mrf.mxu0
  %v2866 = vadd.f32 %v167, %v2865
  %2867 = vmatmul.f32.gmra.mxu0 %v2842
  %v2868 = vpop.f32.mrf.mxu0
  %v2869 = vadd.f32 %v168, %v2868
  %2870 = vdwg.mxu0
  %2871 = vrot.lane.b32.xlu0 %v150, 104
  %v2872 = vpop.permute.xlu0 %2871
  %2873 = vrot.lane.b32.xlu0 %v153, 104
  %v2874 = vpop.permute.xlu0 %2873
  %2875 = vrot.lane.b32.xlu0 %v150, 72
  %v2876 = vpop.permute.xlu0 %2875
  %2877 = vrot.lane.b32.xlu0 %v153, 72
  %v2878 = vpop.permute.xlu0 %2877
  %v2879 = vsel %vm175, %v2872, 0
  %v2881 = vsel %vm175, %v2874, 0
  %v2883 = vsel %vm175, %v2876, 0
  %v2885 = vsel %vm175, %v2878, 0
  %2887 = vmatpush.xpose.msra.mxu0 0.0
  %2888 = vmatpush.xpose.msra.mxu0 0.0
  %2889 = vmatpush.xpose.msra.mxu0 0.0
  %2890 = vmatpush.xpose.msra.mxu0 0.0
  %2891 = vmatpush.xpose.msra.mxu0 0.0
  %2892 = vmatpush.xpose.msra.mxu0 0.0
  %2893 = vmatpush.xpose.msra.mxu0 0.0
  %2894 = vmatpush.xpose.msra.mxu0 0.0
  %2895 = vmatpush.xpose.msra.mxu0 0.0
  %2896 = vmatpush.xpose.msra.mxu0 0.0
  %2897 = vmatpush.xpose.msra.mxu0 0.0
  %2898 = vmatpush.xpose.msra.mxu0 0.0
  %2899 = vmatpush.xpose.msra.mxu0 0.0
  %2900 = vmatpush.xpose.msra.mxu0 0.0
  %2901 = vmatpush.xpose.msra.mxu0 %v2885
  %2902 = vmatpush.xpose.msra.mxu0 %v2883
  %2903 = vmatmul.f32.gmra.mxu0 %v2879
  %v2904 = vpop.f32.mrf.mxu0
  %v2905 = vadd.f32 %v167, %v2904
  %2906 = vmatmul.f32.gmra.mxu0 %v2881
  %v2907 = vpop.f32.mrf.mxu0
  %v2908 = vadd.f32 %v168, %v2907
  %2909 = vdwg.mxu0
  %2910 = vrot.lane.b32.xlu0 %v156, 104
  %v2911 = vpop.permute.xlu0 %2910
  %2912 = vrot.lane.b32.xlu0 %v159, 104
  %v2913 = vpop.permute.xlu0 %2912
  %2914 = vrot.lane.b32.xlu0 %v156, 72
  %v2915 = vpop.permute.xlu0 %2914
  %2916 = vrot.lane.b32.xlu0 %v159, 72
  %v2917 = vpop.permute.xlu0 %2916
  %v2918 = vsel %vm175, %v2911, 0
  %v2920 = vsel %vm175, %v2913, 0
  %v2922 = vsel %vm175, %v2915, 0
  %v2924 = vsel %vm175, %v2917, 0
  %2926 = vmatpush.xpose.msra.mxu0 0.0
  %2927 = vmatpush.xpose.msra.mxu0 0.0
  %2928 = vmatpush.xpose.msra.mxu0 0.0
  %2929 = vmatpush.xpose.msra.mxu0 0.0
  %2930 = vmatpush.xpose.msra.mxu0 0.0
  %2931 = vmatpush.xpose.msra.mxu0 0.0
  %2932 = vmatpush.xpose.msra.mxu0 0.0
  %2933 = vmatpush.xpose.msra.mxu0 0.0
  %2934 = vmatpush.xpose.msra.mxu0 0.0
  %2935 = vmatpush.xpose.msra.mxu0 0.0
  %2936 = vmatpush.xpose.msra.mxu0 0.0
  %2937 = vmatpush.xpose.msra.mxu0 0.0
  %2938 = vmatpush.xpose.msra.mxu0 0.0
  %2939 = vmatpush.xpose.msra.mxu0 0.0
  %2940 = vmatpush.xpose.msra.mxu0 %v2924
  %2941 = vmatpush.xpose.msra.mxu0 %v2922
  %2942 = vmatmul.f32.gmra.mxu0 %v2918
  %v2943 = vpop.f32.mrf.mxu0
  %v2944 = vadd.f32 %v167, %v2943
  %2945 = vmatmul.f32.gmra.mxu0 %v2920
  %v2946 = vpop.f32.mrf.mxu0
  %v2947 = vadd.f32 %v168, %v2946
  %2948 = vdwg.mxu0
  %v2949 = vsel %vm466, %v2671, -inf
  %2950 = vmax.xlane.f32.xlu0 %v2949
  %v2951 = vpop.xlane.xlu0 %2950
  %v2952 = vsel %vm466, %v2674, -inf
  %2953 = vmax.xlane.f32.xlu0 %v2952
  %v2954 = vpop.xlane.xlu0 %2953
  %v2955 = vsel %vm466, %v2710, -inf
  %2956 = vmax.xlane.f32.xlu0 %v2955
  %v2957 = vpop.xlane.xlu0 %2956
  %v2958 = vsel %vm466, %v2713, -inf
  %2959 = vmax.xlane.f32.xlu0 %v2958
  %v2960 = vpop.xlane.xlu0 %2959
  %v2961 = vsel %vm466, %v2749, -inf
  %2962 = vmax.xlane.f32.xlu0 %v2961
  %v2963 = vpop.xlane.xlu0 %2962
  %v2964 = vsel %vm466, %v2752, -inf
  %2965 = vmax.xlane.f32.xlu0 %v2964
  %v2966 = vpop.xlane.xlu0 %2965
  %v2967 = vsel %vm466, %v2788, -inf
  %2968 = vmax.xlane.f32.xlu0 %v2967
  %v2969 = vpop.xlane.xlu0 %2968
  %v2970 = vsel %vm466, %v2791, -inf
  %2971 = vmax.xlane.f32.xlu0 %v2970
  %v2972 = vpop.xlane.xlu0 %2971
  %v2973 = vsel %vm466, %v2827, -inf
  %2974 = vmax.xlane.f32.xlu0 %v2973
  %v2975 = vpop.xlane.xlu0 %2974
  %v2976 = vsel %vm466, %v2830, -inf
  %2977 = vmax.xlane.f32.xlu0 %v2976
  %v2978 = vpop.xlane.xlu0 %2977
  %v2979 = vsel %vm466, %v2866, -inf
  %2980 = vmax.xlane.f32.xlu0 %v2979
  %v2981 = vpop.xlane.xlu0 %2980
  %v2982 = vsel %vm466, %v2869, -inf
  %2983 = vmax.xlane.f32.xlu0 %v2982
  %v2984 = vpop.xlane.xlu0 %2983
  %v2985 = vsel %vm466, %v2905, -inf
  %2986 = vmax.xlane.f32.xlu0 %v2985
  %v2987 = vpop.xlane.xlu0 %2986
  %v2988 = vsel %vm466, %v2908, -inf
  %2989 = vmax.xlane.f32.xlu0 %v2988
  %v2990 = vpop.xlane.xlu0 %2989
  %v2991 = vsel %vm466, %v2944, -inf
  %2992 = vmax.xlane.f32.xlu0 %v2991
  %v2993 = vpop.xlane.xlu0 %2992
  %v2994 = vsel %vm466, %v2947, -inf
  %2995 = vmax.xlane.f32.xlu0 %v2994
  %v2996 = vpop.xlane.xlu0 %2995
  %v2997 = vsub.f32 %v2671, %v2951
  %v2998 = vsub.f32 %v2674, %v2954
  %v2999 = vsub.f32 %v2710, %v2957
  %v3000 = vsub.f32 %v2713, %v2960
  %v3001 = vsub.f32 %v2749, %v2963
  %v3002 = vsub.f32 %v2752, %v2966
  %v3003 = vsub.f32 %v2788, %v2969
  %v3004 = vsub.f32 %v2791, %v2972
  %v3005 = vsub.f32 %v2827, %v2975
  %v3006 = vsub.f32 %v2830, %v2978
  %v3007 = vsub.f32 %v2866, %v2981
  %v3008 = vsub.f32 %v2869, %v2984
  %v3009 = vsub.f32 %v2905, %v2987
  %v3010 = vsub.f32 %v2908, %v2990
  %v3011 = vsub.f32 %v2944, %v2993
  %v3012 = vsub.f32 %v2947, %v2996
  %v3013 = vmul.f32 %v2997, 1.442695
  %v3014 = vpow.pop %v3013
  %v3015 = vmul.f32 %v2998, 1.442695
  %v3016 = vpow.pop %v3015
  %v3017 = vmul.f32 %v2999, 1.442695
  %v3018 = vpow.pop %v3017
  %v3019 = vmul.f32 %v3000, 1.442695
  %v3020 = vpow.pop %v3019
  %v3021 = vmul.f32 %v3001, 1.442695
  %v3022 = vpow.pop %v3021
  %v3023 = vmul.f32 %v3002, 1.442695
  %v3024 = vpow.pop %v3023
  %v3025 = vmul.f32 %v3003, 1.442695
  %v3026 = vpow.pop %v3025
  %v3027 = vmul.f32 %v3004, 1.442695
  %v3028 = vpow.pop %v3027
  %v3029 = vmul.f32 %v3005, 1.442695
  %v3030 = vpow.pop %v3029
  %v3031 = vmul.f32 %v3006, 1.442695
  %v3032 = vpow.pop %v3031
  %v3033 = vmul.f32 %v3007, 1.442695
  %v3034 = vpow.pop %v3033
  %v3035 = vmul.f32 %v3008, 1.442695
  %v3036 = vpow.pop %v3035
  %v3037 = vmul.f32 %v3009, 1.442695
  %v3038 = vpow.pop %v3037
  %v3039 = vmul.f32 %v3010, 1.442695
  %v3040 = vpow.pop %v3039
  %v3041 = vmul.f32 %v3011, 1.442695
  %v3042 = vpow.pop %v3041
  %v3043 = vmul.f32 %v3012, 1.442695
  %v3044 = vpow.pop %v3043
  %v3045 = vsel %vm466, %v3014, 0.0
  %3046 = vadd.xlane.f32.xlu0 %v3045
  %v3047 = vpop.xlane.xlu0 %3046
  %v3048 = vsel %vm466, %v3016, 0.0
  %3049 = vadd.xlane.f32.xlu0 %v3048
  %v3050 = vpop.xlane.xlu0 %3049
  %v3051 = vsel %vm466, %v3018, 0.0
  %3052 = vadd.xlane.f32.xlu0 %v3051
  %v3053 = vpop.xlane.xlu0 %3052
  %v3054 = vsel %vm466, %v3020, 0.0
  %3055 = vadd.xlane.f32.xlu0 %v3054
  %v3056 = vpop.xlane.xlu0 %3055
  %v3057 = vsel %vm466, %v3022, 0.0
  %3058 = vadd.xlane.f32.xlu0 %v3057
  %v3059 = vpop.xlane.xlu0 %3058
  %v3060 = vsel %vm466, %v3024, 0.0
  %3061 = vadd.xlane.f32.xlu0 %v3060
  %v3062 = vpop.xlane.xlu0 %3061
  %v3063 = vsel %vm466, %v3026, 0.0
  %3064 = vadd.xlane.f32.xlu0 %v3063
  %v3065 = vpop.xlane.xlu0 %3064
  %v3066 = vsel %vm466, %v3028, 0.0
  %3067 = vadd.xlane.f32.xlu0 %v3066
  %v3068 = vpop.xlane.xlu0 %3067
  %v3069 = vsel %vm466, %v3030, 0.0
  %3070 = vadd.xlane.f32.xlu0 %v3069
  %v3071 = vpop.xlane.xlu0 %3070
  %v3072 = vsel %vm466, %v3032, 0.0
  %3073 = vadd.xlane.f32.xlu0 %v3072
  %v3074 = vpop.xlane.xlu0 %3073
  %v3075 = vsel %vm466, %v3034, 0.0
  %3076 = vadd.xlane.f32.xlu0 %v3075
  %v3077 = vpop.xlane.xlu0 %3076
  %v3078 = vsel %vm466, %v3036, 0.0
  %3079 = vadd.xlane.f32.xlu0 %v3078
  %v3080 = vpop.xlane.xlu0 %3079
  %v3081 = vsel %vm466, %v3038, 0.0
  %3082 = vadd.xlane.f32.xlu0 %v3081
  %v3083 = vpop.xlane.xlu0 %3082
  %v3084 = vsel %vm466, %v3040, 0.0
  %3085 = vadd.xlane.f32.xlu0 %v3084
  %v3086 = vpop.xlane.xlu0 %3085
  %v3087 = vsel %vm466, %v3042, 0.0
  %3088 = vadd.xlane.f32.xlu0 %v3087
  %v3089 = vpop.xlane.xlu0 %3088
  %v3090 = vsel %vm466, %v3044, 0.0
  %3091 = vadd.xlane.f32.xlu0 %v3090
  %v3092 = vpop.xlane.xlu0 %3091
  %v3093 = vrcp.pop %v3047
  %v3094 = vrcp.pop %v3050
  %v3095 = vrcp.pop %v3053
  %v3096 = vrcp.pop %v3056
  %v3097 = vrcp.pop %v3059
  %v3098 = vrcp.pop %v3062
  %v3099 = vrcp.pop %v3065
  %v3100 = vrcp.pop %v3068
  %v3101 = vrcp.pop %v3071
  %v3102 = vrcp.pop %v3074
  %v3103 = vrcp.pop %v3077
  %v3104 = vrcp.pop %v3080
  %v3105 = vrcp.pop %v3083
  %v3106 = vrcp.pop %v3086
  %v3107 = vrcp.pop %v3089
  %v3108 = vrcp.pop %v3092
  %v3109 = vmul.f32 %v3014, %v3093
  %v3110 = vmul.f32 %v3016, %v3094
  %v3111 = vmul.f32 %v3018, %v3095
  %v3112 = vmul.f32 %v3020, %v3096
  %v3113 = vmul.f32 %v3022, %v3097
  %v3114 = vmul.f32 %v3024, %v3098
  %v3115 = vmul.f32 %v3026, %v3099
  %v3116 = vmul.f32 %v3028, %v3100
  %v3117 = vmul.f32 %v3030, %v3101
  %v3118 = vmul.f32 %v3032, %v3102
  %v3119 = vmul.f32 %v3034, %v3103
  %v3120 = vmul.f32 %v3036, %v3104
  %v3121 = vmul.f32 %v3038, %v3105
  %v3122 = vmul.f32 %v3040, %v3106
  %v3123 = vmul.f32 %v3042, %v3107
  %v3124 = vmul.f32 %v3044, %v3108
  %3125 = vrot.lane.b32.xlu0 %v114, 40
  %v3126 = vpop.permute.xlu0 %3125
  %3127 = vrot.lane.b32.xlu0 %v117, 40
  %v3128 = vpop.permute.xlu0 %3127
  %v3132 = vsel %vm466, %v3109, 0
  %v3135 = vsel %vm466, %v3110, 0
  %3137 = vmatpush.msra.mxu0 0.0
  %3138 = vmatpush.msra.mxu0 0.0
  %3139 = vmatpush.msra.mxu0 0.0
  %3140 = vmatpush.msra.mxu0 0.0
  %3141 = vmatpush.msra.mxu0 0.0
  %3142 = vmatpush.msra.mxu0 0.0
  %3143 = vmatpush.msra.mxu0 0.0
  %3144 = vmatpush.msra.mxu0 0.0
  %3145 = vmatpush.msra.mxu0 0.0
  %3146 = vmatpush.msra.mxu0 0.0
  %3147 = vmatpush.msra.mxu0 0.0
  %3148 = vmatpush.msra.mxu0 0.0
  %3149 = vmatpush.msra.mxu0 0.0
  %3150 = vmatpush.msra.mxu0 0.0
  %3151 = vmatpush.msra.mxu0 %v3128
  %3152 = vmatpush.msra.mxu0 %v3126
  %3153 = vmatmul.f32.gmra.mxu0 %v3132
  %v3154 = vpop.f32.mrf.mxu0
  %v3155 = vadd.f32 0.0, %v3154
  %3156 = vmatmul.f32.gmra.mxu0 %v3135
  %v3157 = vpop.f32.mrf.mxu0
  %v3158 = vadd.f32 0.0, %v3157
  %3159 = vdwg.mxu0
  %3160 = vrot.lane.b32.xlu0 %v120, 40
  %v3161 = vpop.permute.xlu0 %3160
  %3162 = vrot.lane.b32.xlu0 %v123, 40
  %v3163 = vpop.permute.xlu0 %3162
  %v3167 = vsel %vm466, %v3111, 0
  %v3170 = vsel %vm466, %v3112, 0
  %3172 = vmatpush.msra.mxu0 0.0
  %3173 = vmatpush.msra.mxu0 0.0
  %3174 = vmatpush.msra.mxu0 0.0
  %3175 = vmatpush.msra.mxu0 0.0
  %3176 = vmatpush.msra.mxu0 0.0
  %3177 = vmatpush.msra.mxu0 0.0
  %3178 = vmatpush.msra.mxu0 0.0
  %3179 = vmatpush.msra.mxu0 0.0
  %3180 = vmatpush.msra.mxu0 0.0
  %3181 = vmatpush.msra.mxu0 0.0
  %3182 = vmatpush.msra.mxu0 0.0
  %3183 = vmatpush.msra.mxu0 0.0
  %3184 = vmatpush.msra.mxu0 0.0
  %3185 = vmatpush.msra.mxu0 0.0
  %3186 = vmatpush.msra.mxu0 %v3163
  %3187 = vmatpush.msra.mxu0 %v3161
  %3188 = vmatmul.f32.gmra.mxu0 %v3167
  %v3189 = vpop.f32.mrf.mxu0
  %v3190 = vadd.f32 0.0, %v3189
  %3191 = vmatmul.f32.gmra.mxu0 %v3170
  %v3192 = vpop.f32.mrf.mxu0
  %v3193 = vadd.f32 0.0, %v3192
  %3194 = vdwg.mxu0
  %3195 = vrot.lane.b32.xlu0 %v126, 40
  %v3196 = vpop.permute.xlu0 %3195
  %3197 = vrot.lane.b32.xlu0 %v129, 40
  %v3198 = vpop.permute.xlu0 %3197
  %v3202 = vsel %vm466, %v3113, 0
  %v3205 = vsel %vm466, %v3114, 0
  %3207 = vmatpush.msra.mxu0 0.0
  %3208 = vmatpush.msra.mxu0 0.0
  %3209 = vmatpush.msra.mxu0 0.0
  %3210 = vmatpush.msra.mxu0 0.0
  %3211 = vmatpush.msra.mxu0 0.0
  %3212 = vmatpush.msra.mxu0 0.0
  %3213 = vmatpush.msra.mxu0 0.0
  %3214 = vmatpush.msra.mxu0 0.0
  %3215 = vmatpush.msra.mxu0 0.0
  %3216 = vmatpush.msra.mxu0 0.0
  %3217 = vmatpush.msra.mxu0 0.0
  %3218 = vmatpush.msra.mxu0 0.0
  %3219 = vmatpush.msra.mxu0 0.0
  %3220 = vmatpush.msra.mxu0 0.0
  %3221 = vmatpush.msra.mxu0 %v3198
  %3222 = vmatpush.msra.mxu0 %v3196
  %3223 = vmatmul.f32.gmra.mxu0 %v3202
  %v3224 = vpop.f32.mrf.mxu0
  %v3225 = vadd.f32 0.0, %v3224
  %3226 = vmatmul.f32.gmra.mxu0 %v3205
  %v3227 = vpop.f32.mrf.mxu0
  %v3228 = vadd.f32 0.0, %v3227
  %3229 = vdwg.mxu0
  %3230 = vrot.lane.b32.xlu0 %v132, 40
  %v3231 = vpop.permute.xlu0 %3230
  %3232 = vrot.lane.b32.xlu0 %v135, 40
  %v3233 = vpop.permute.xlu0 %3232
  %v3237 = vsel %vm466, %v3115, 0
  %v3240 = vsel %vm466, %v3116, 0
  %3242 = vmatpush.msra.mxu0 0.0
  %3243 = vmatpush.msra.mxu0 0.0
  %3244 = vmatpush.msra.mxu0 0.0
  %3245 = vmatpush.msra.mxu0 0.0
  %3246 = vmatpush.msra.mxu0 0.0
  %3247 = vmatpush.msra.mxu0 0.0
  %3248 = vmatpush.msra.mxu0 0.0
  %3249 = vmatpush.msra.mxu0 0.0
  %3250 = vmatpush.msra.mxu0 0.0
  %3251 = vmatpush.msra.mxu0 0.0
  %3252 = vmatpush.msra.mxu0 0.0
  %3253 = vmatpush.msra.mxu0 0.0
  %3254 = vmatpush.msra.mxu0 0.0
  %3255 = vmatpush.msra.mxu0 0.0
  %3256 = vmatpush.msra.mxu0 %v3233
  %3257 = vmatpush.msra.mxu0 %v3231
  %3258 = vmatmul.f32.gmra.mxu0 %v3237
  %v3259 = vpop.f32.mrf.mxu0
  %v3260 = vadd.f32 0.0, %v3259
  %3261 = vmatmul.f32.gmra.mxu0 %v3240
  %v3262 = vpop.f32.mrf.mxu0
  %v3263 = vadd.f32 0.0, %v3262
  %3264 = vdwg.mxu0
  %3265 = vrot.lane.b32.xlu0 %v138, 40
  %v3266 = vpop.permute.xlu0 %3265
  %3267 = vrot.lane.b32.xlu0 %v141, 40
  %v3268 = vpop.permute.xlu0 %3267
  %v3272 = vsel %vm466, %v3117, 0
  %v3275 = vsel %vm466, %v3118, 0
  %3277 = vmatpush.msra.mxu0 0.0
  %3278 = vmatpush.msra.mxu0 0.0
  %3279 = vmatpush.msra.mxu0 0.0
  %3280 = vmatpush.msra.mxu0 0.0
  %3281 = vmatpush.msra.mxu0 0.0
  %3282 = vmatpush.msra.mxu0 0.0
  %3283 = vmatpush.msra.mxu0 0.0
  %3284 = vmatpush.msra.mxu0 0.0
  %3285 = vmatpush.msra.mxu0 0.0
  %3286 = vmatpush.msra.mxu0 0.0
  %3287 = vmatpush.msra.mxu0 0.0
  %3288 = vmatpush.msra.mxu0 0.0
  %3289 = vmatpush.msra.mxu0 0.0
  %3290 = vmatpush.msra.mxu0 0.0
  %3291 = vmatpush.msra.mxu0 %v3268
  %3292 = vmatpush.msra.mxu0 %v3266
  %3293 = vmatmul.f32.gmra.mxu0 %v3272
  %v3294 = vpop.f32.mrf.mxu0
  %v3295 = vadd.f32 0.0, %v3294
  %3296 = vmatmul.f32.gmra.mxu0 %v3275
  %v3297 = vpop.f32.mrf.mxu0
  %v3298 = vadd.f32 0.0, %v3297
  %3299 = vdwg.mxu0
  %3300 = vrot.lane.b32.xlu0 %v144, 40
  %v3301 = vpop.permute.xlu0 %3300
  %3302 = vrot.lane.b32.xlu0 %v147, 40
  %v3303 = vpop.permute.xlu0 %3302
  %v3307 = vsel %vm466, %v3119, 0
  %v3310 = vsel %vm466, %v3120, 0
  %3312 = vmatpush.msra.mxu0 0.0
  %3313 = vmatpush.msra.mxu0 0.0
  %3314 = vmatpush.msra.mxu0 0.0
  %3315 = vmatpush.msra.mxu0 0.0
  %3316 = vmatpush.msra.mxu0 0.0
  %3317 = vmatpush.msra.mxu0 0.0
  %3318 = vmatpush.msra.mxu0 0.0
  %3319 = vmatpush.msra.mxu0 0.0
  %3320 = vmatpush.msra.mxu0 0.0
  %3321 = vmatpush.msra.mxu0 0.0
  %3322 = vmatpush.msra.mxu0 0.0
  %3323 = vmatpush.msra.mxu0 0.0
  %3324 = vmatpush.msra.mxu0 0.0
  %3325 = vmatpush.msra.mxu0 0.0
  %3326 = vmatpush.msra.mxu0 %v3303
  %3327 = vmatpush.msra.mxu0 %v3301
  %3328 = vmatmul.f32.gmra.mxu0 %v3307
  %v3329 = vpop.f32.mrf.mxu0
  %v3330 = vadd.f32 0.0, %v3329
  %3331 = vmatmul.f32.gmra.mxu0 %v3310
  %v3332 = vpop.f32.mrf.mxu0
  %v3333 = vadd.f32 0.0, %v3332
  %3334 = vdwg.mxu0
  %3335 = vrot.lane.b32.xlu0 %v150, 40
  %v3336 = vpop.permute.xlu0 %3335
  %3337 = vrot.lane.b32.xlu0 %v153, 40
  %v3338 = vpop.permute.xlu0 %3337
  %v3342 = vsel %vm466, %v3121, 0
  %v3345 = vsel %vm466, %v3122, 0
  %3347 = vmatpush.msra.mxu0 0.0
  %3348 = vmatpush.msra.mxu0 0.0
  %3349 = vmatpush.msra.mxu0 0.0
  %3350 = vmatpush.msra.mxu0 0.0
  %3351 = vmatpush.msra.mxu0 0.0
  %3352 = vmatpush.msra.mxu0 0.0
  %3353 = vmatpush.msra.mxu0 0.0
  %3354 = vmatpush.msra.mxu0 0.0
  %3355 = vmatpush.msra.mxu0 0.0
  %3356 = vmatpush.msra.mxu0 0.0
  %3357 = vmatpush.msra.mxu0 0.0
  %3358 = vmatpush.msra.mxu0 0.0
  %3359 = vmatpush.msra.mxu0 0.0
  %3360 = vmatpush.msra.mxu0 0.0
  %3361 = vmatpush.msra.mxu0 %v3338
  %3362 = vmatpush.msra.mxu0 %v3336
  %3363 = vmatmul.f32.gmra.mxu0 %v3342
  %v3364 = vpop.f32.mrf.mxu0
  %v3365 = vadd.f32 0.0, %v3364
  %3366 = vmatmul.f32.gmra.mxu0 %v3345
  %v3367 = vpop.f32.mrf.mxu0
  %v3368 = vadd.f32 0.0, %v3367
  %3369 = vdwg.mxu0
  %3370 = vrot.lane.b32.xlu0 %v156, 40
  %v3371 = vpop.permute.xlu0 %3370
  %3372 = vrot.lane.b32.xlu0 %v159, 40
  %v3373 = vpop.permute.xlu0 %3372
  %v3377 = vsel %vm466, %v3123, 0
  %v3380 = vsel %vm466, %v3124, 0
  %3382 = vmatpush.msra.mxu0 0.0
  %3383 = vmatpush.msra.mxu0 0.0
  %3384 = vmatpush.msra.mxu0 0.0
  %3385 = vmatpush.msra.mxu0 0.0
  %3386 = vmatpush.msra.mxu0 0.0
  %3387 = vmatpush.msra.mxu0 0.0
  %3388 = vmatpush.msra.mxu0 0.0
  %3389 = vmatpush.msra.mxu0 0.0
  %3390 = vmatpush.msra.mxu0 0.0
  %3391 = vmatpush.msra.mxu0 0.0
  %3392 = vmatpush.msra.mxu0 0.0
  %3393 = vmatpush.msra.mxu0 0.0
  %3394 = vmatpush.msra.mxu0 0.0
  %3395 = vmatpush.msra.mxu0 0.0
  %3396 = vmatpush.msra.mxu0 %v3373
  %3397 = vmatpush.msra.mxu0 %v3371
  %3398 = vmatmul.f32.gmra.mxu0 %v3377
  %v3399 = vpop.f32.mrf.mxu0
  %v3400 = vadd.f32 0.0, %v3399
  %3401 = vmatmul.f32.gmra.mxu0 %v3380
  %v3402 = vpop.f32.mrf.mxu0
  %v3403 = vadd.f32 0.0, %v3402
  %3404 = vdwg.mxu0
  %3421 = vrot.lane.b32.xlu0 %v3155, 24
  %v3422 = vpop.permute.xlu0 %3421
  %3423 = vrot.lane.b32.xlu0 %v3158, 24
  %v3424 = vpop.permute.xlu0 %3423
  %3425 = vrot.lane.b32.xlu0 %v3190, 24
  %v3426 = vpop.permute.xlu0 %3425
  %3427 = vrot.lane.b32.xlu0 %v3193, 24
  %v3428 = vpop.permute.xlu0 %3427
  %3429 = vrot.lane.b32.xlu0 %v3225, 24
  %v3430 = vpop.permute.xlu0 %3429
  %3431 = vrot.lane.b32.xlu0 %v3228, 24
  %v3432 = vpop.permute.xlu0 %3431
  %3433 = vrot.lane.b32.xlu0 %v3260, 24
  %v3434 = vpop.permute.xlu0 %3433
  %3435 = vrot.lane.b32.xlu0 %v3263, 24
  %v3436 = vpop.permute.xlu0 %3435
  %3437 = vrot.lane.b32.xlu0 %v3295, 24
  %v3438 = vpop.permute.xlu0 %3437
  %3439 = vrot.lane.b32.xlu0 %v3298, 24
  %v3440 = vpop.permute.xlu0 %3439
  %3441 = vrot.lane.b32.xlu0 %v3330, 24
  %v3442 = vpop.permute.xlu0 %3441
  %3443 = vrot.lane.b32.xlu0 %v3333, 24
  %v3444 = vpop.permute.xlu0 %3443
  %3445 = vrot.lane.b32.xlu0 %v3365, 24
  %v3446 = vpop.permute.xlu0 %3445
  %3447 = vrot.lane.b32.xlu0 %v3368, 24
  %v3448 = vpop.permute.xlu0 %3447
  %3449 = vrot.lane.b32.xlu0 %v3400, 24
  %v3450 = vpop.permute.xlu0 %3449
  %3451 = vrot.lane.b32.xlu0 %v3403, 24
  %v3452 = vpop.permute.xlu0 %3451
  %vm3469 = vcmask 261312
  %3470 = vst.msk [vmem:[#allocation2] sm:$0xff] %vm3469, %v3422
  %3471 = vst.msk [vmem:[#allocation2 + $0x8] sm:$0xff] %vm3469, %v3424
  %3472 = vst.msk [vmem:[#allocation2 + $0x10] sm:$0xff] %vm3469, %v3426
  %3473 = vst.msk [vmem:[#allocation2 + $0x18] sm:$0xff] %vm3469, %v3428
  %3474 = vst.msk [vmem:[#allocation2 + $0x20] sm:$0xff] %vm3469, %v3430
  %3475 = vst.msk [vmem:[#allocation2 + $0x28] sm:$0xff] %vm3469, %v3432
  %3476 = vst.msk [vmem:[#allocation2 + $0x30] sm:$0xff] %vm3469, %v3434
  %3477 = vst.msk [vmem:[#allocation2 + $0x38] sm:$0xff] %vm3469, %v3436
  %3478 = vst.msk [vmem:[#allocation2 + $0x40] sm:$0xff] %vm3469, %v3438
  %3479 = vst.msk [vmem:[#allocation2 + $0x48] sm:$0xff] %vm3469, %v3440
  %3480 = vst.msk [vmem:[#allocation2 + $0x50] sm:$0xff] %vm3469, %v3442
  %3481 = vst.msk [vmem:[#allocation2 + $0x58] sm:$0xff] %vm3469, %v3444
  %3482 = vst.msk [vmem:[#allocation2 + $0x60] sm:$0xff] %vm3469, %v3446
  %3483 = vst.msk [vmem:[#allocation2 + $0x68] sm:$0xff] %vm3469, %v3448
  %3484 = vst.msk [vmem:[#allocation2 + $0x70] sm:$0xff] %vm3469, %v3450
  %3485 = vst.msk [vmem:[#allocation2 + $0x78] sm:$0xff] %vm3469, %v3452
  %v3486 = vld [vmem:[#allocation2] sm:$0xff]
  %v3487 = vld [vmem:[#allocation2 + $0x8] sm:$0xff]
  %v3488 = vld [vmem:[#allocation2 + $0x10] sm:$0xff]
  %v3489 = vld [vmem:[#allocation2 + $0x18] sm:$0xff]
  %v3490 = vld [vmem:[#allocation2 + $0x20] sm:$0xff]
  %v3491 = vld [vmem:[#allocation2 + $0x28] sm:$0xff]
  %v3492 = vld [vmem:[#allocation2 + $0x30] sm:$0xff]
  %v3493 = vld [vmem:[#allocation2 + $0x38] sm:$0xff]
  %v3494 = vld [vmem:[#allocation2 + $0x40] sm:$0xff]
  %v3495 = vld [vmem:[#allocation2 + $0x48] sm:$0xff]
  %v3496 = vld [vmem:[#allocation2 + $0x50] sm:$0xff]
  %v3497 = vld [vmem:[#allocation2 + $0x58] sm:$0xff]
  %v3498 = vld [vmem:[#allocation2 + $0x60] sm:$0xff]
  %v3499 = vld [vmem:[#allocation2 + $0x68] sm:$0xff]
  %v3500 = vld [vmem:[#allocation2 + $0x70] sm:$0xff]
  %v3501 = vld [vmem:[#allocation2 + $0x78] sm:$0xff]
  %v3502 = vld [vmem:[%s3] sm:$0xff]
  %v3503 = vld [vmem:[%s3 + $0x8] sm:$0xff]
  %v3504 = vld [vmem:[%s3 + $0x10] sm:$0xff]
  %v3505 = vld [vmem:[%s3 + $0x18] sm:$0xff]
  %v3506 = vld [vmem:[%s4] sm:$0x1]
  %v3508 = vperm.slane %v3506, 0
  %v3511 = vsel %vm47, %v3486, 0
  %v3514 = vsel %vm47, %v3487, 0
  %v3517 = vsel %vm47, %v3488, 0
  %v3520 = vsel %vm47, %v3489, 0
  %v3523 = vsel %vm47, %v3490, 0
  %v3526 = vsel %vm47, %v3491, 0
  %v3529 = vsel %vm47, %v3492, 0
  %v3532 = vsel %vm47, %v3493, 0
  %v3535 = vsel %vm47, %v3494, 0
  %v3538 = vsel %vm47, %v3495, 0
  %v3541 = vsel %vm47, %v3496, 0
  %v3544 = vsel %vm47, %v3497, 0
  %v3547 = vsel %vm47, %v3498, 0
  %v3550 = vsel %vm47, %v3499, 0
  %v3553 = vsel %vm47, %v3500, 0
  %v3556 = vsel %vm47, %v3501, 0
  %3558 = vmatpush.msra.mxu0 0.0
  %3559 = vmatpush.msra.mxu0 0.0
  %3560 = vmatpush.msra.mxu0 0.0
  %3561 = vmatpush.msra.mxu0 0.0
  %3562 = vmatpush.msra.mxu0 0.0
  %3563 = vmatpush.msra.mxu0 0.0
  %3564 = vmatpush.msra.mxu0 0.0
  %3565 = vmatpush.msra.mxu0 0.0
  %3566 = vmatpush.msra.mxu0 0.0
  %3567 = vmatpush.msra.mxu0 0.0
  %3568 = vmatpush.msra.mxu0 0.0
  %3569 = vmatpush.msra.mxu0 0.0
  %3570 = vmatpush.msra.mxu0 %v3505
  %3571 = vmatpush.msra.mxu0 %v3504
  %3572 = vmatpush.msra.mxu0 %v3503
  %3573 = vmatpush.msra.mxu0 %v3502
  %3574 = vmatmul.f32.gmra.mxu0 %v3511
  %v3575 = vpop.f32.mrf.mxu0
  %v3576 = vadd.f32 %v3508, %v3575
  %3577 = vmatmul.f32.gmra.mxu0 %v3514
  %v3578 = vpop.f32.mrf.mxu0
  %v3579 = vadd.f32 %v3508, %v3578
  %3580 = vmatmul.f32.gmra.mxu0 %v3517
  %v3581 = vpop.f32.mrf.mxu0
  %v3582 = vadd.f32 %v3508, %v3581
  %3583 = vmatmul.f32.gmra.mxu0 %v3520
  %v3584 = vpop.f32.mrf.mxu0
  %v3585 = vadd.f32 %v3508, %v3584
  %3586 = vmatmul.f32.gmra.mxu0 %v3523
  %v3587 = vpop.f32.mrf.mxu0
  %v3588 = vadd.f32 %v3508, %v3587
  %3589 = vmatmul.f32.gmra.mxu0 %v3526
  %v3590 = vpop.f32.mrf.mxu0
  %v3591 = vadd.f32 %v3508, %v3590
  %3592 = vmatmul.f32.gmra.mxu0 %v3529
  %v3593 = vpop.f32.mrf.mxu0
  %v3594 = vadd.f32 %v3508, %v3593
  %3595 = vmatmul.f32.gmra.mxu0 %v3532
  %v3596 = vpop.f32.mrf.mxu0
  %v3597 = vadd.f32 %v3508, %v3596
  %3598 = vmatmul.f32.gmra.mxu0 %v3535
  %v3599 = vpop.f32.mrf.mxu0
  %v3600 = vadd.f32 %v3508, %v3599
  %3601 = vmatmul.f32.gmra.mxu0 %v3538
  %v3602 = vpop.f32.mrf.mxu0
  %v3603 = vadd.f32 %v3508, %v3602
  %3604 = vmatmul.f32.gmra.mxu0 %v3541
  %v3605 = vpop.f32.mrf.mxu0
  %v3606 = vadd.f32 %v3508, %v3605
  %3607 = vmatmul.f32.gmra.mxu0 %v3544
  %v3608 = vpop.f32.mrf.mxu0
  %v3609 = vadd.f32 %v3508, %v3608
  %3610 = vmatmul.f32.gmra.mxu0 %v3547
  %v3611 = vpop.f32.mrf.mxu0
  %v3612 = vadd.f32 %v3508, %v3611
  %3613 = vmatmul.f32.gmra.mxu0 %v3550
  %v3614 = vpop.f32.mrf.mxu0
  %v3615 = vadd.f32 %v3508, %v3614
  %3616 = vmatmul.f32.gmra.mxu0 %v3553
  %v3617 = vpop.f32.mrf.mxu0
  %v3618 = vadd.f32 %v3508, %v3617
  %3619 = vmatmul.f32.gmra.mxu0 %v3556
  %v3620 = vpop.f32.mrf.mxu0
  %v3621 = vadd.f32 %v3508, %v3620
  %3622 = vdwg.mxu0
  %3623 = vst.msk [vmem:[%s6] sm:$0xff] %vm47, %v3576
  %3624 = vst.msk [vmem:[%s6 + $0x8] sm:$0xff] %vm47, %v3579
  %3625 = vst.msk [vmem:[%s6 + $0x10] sm:$0xff] %vm47, %v3582
  %3626 = vst.msk [vmem:[%s6 + $0x18] sm:$0xff] %vm47, %v3585
  %3627 = vst.msk [vmem:[%s6 + $0x20] sm:$0xff] %vm47, %v3588
  %3628 = vst.msk [vmem:[%s6 + $0x28] sm:$0xff] %vm47, %v3591
  %3629 = vst.msk [vmem:[%s6 + $0x30] sm:$0xff] %vm47, %v3594
  %3630 = vst.msk [vmem:[%s6 + $0x38] sm:$0xff] %vm47, %v3597
  %3631 = vst.msk [vmem:[%s6 + $0x40] sm:$0xff] %vm47, %v3600
  %3632 = vst.msk [vmem:[%s6 + $0x48] sm:$0xff] %vm47, %v3603
  %3633 = vst.msk [vmem:[%s6 + $0x50] sm:$0xff] %vm47, %v3606
  %3634 = vst.msk [vmem:[%s6 + $0x58] sm:$0xff] %vm47, %v3609
  %3635 = vst.msk [vmem:[%s6 + $0x60] sm:$0xff] %vm47, %v3612
  %3636 = vst.msk [vmem:[%s6 + $0x68] sm:$0xff] %vm47, %v3615
  %3637 = vst.msk [vmem:[%s6 + $0x70] sm:$0xff] %vm47, %v3618
  %3638 = vst.msk [vmem:[%s6 + $0x78] sm:$0xff] %vm47, %v3621
  // Predicated region
  $region26: #{tpu_custom_call.1} parent=0 // pred_check
    _
  $region27: #{tpu_custom_call.1} parent=0 // pred_check_branch
    %3640 = sbr.rel (0) target = $region29
  $region28: #{tpu_custom_call.1} parent=0 // pred_region
    _
  $region29: #{tpu_custom_call.1} parent=0 // pred_fallthru
    _
  // Predicated region
  $region30: #{tpu_custom_call.1} parent=0 // pred_check
    _
  $region31: #{tpu_custom_call.1} parent=0 // pred_check_branch
    %3642 = sbr.rel (0) target = $region33
  $region32: #{tpu_custom_call.1} parent=0 // pred_region
    _
  $region33: #{tpu_custom_call.1} parent=0 // pred_fallthru
    _

</llo_original>
